<compile_context>
chip_gen: v7x
topology: tpu7x:2x2x1
jax: 0.10.0
libtpu: 0.0.40
codegen_flags: <defaults>
</compile_context>

<pallas_src>
import functools

import jax
import jax.numpy as jnp
from jax.experimental import pallas as pl
from jax.experimental.pallas import tpu as pltpu

EPS = 1e-6  # matches normalize() == GroupNorm(32, C, eps=1e-6, affine=True)


def _resblock1d_kernel(x_ref, w1_ref, b1_ref, g1_ref, be1_ref, agg1_ref,
                       w2_ref, b2_ref, g2_ref, be2_ref, agg2_ref,
                       pool_ref, bcast_ref, mask_l_ref, mask_r_ref,
                       out_ref, *, groups, has_skip, inv_l):
    f32 = jnp.float32
    bf16 = jnp.bfloat16

    x = x_ref[0]                        # (C_in, N) f32, N = bt*L (lane-folded batch)
    pool = pool_ref[...]                # (N, bt)  bf16 0/1 selector: per-sample sum over L
    bcast = bcast_ref[...]              # (bt, N)  bf16 0/1 selector: per-sample broadcast
    mask_l = mask_l_ref[...]            # (1, N)   f32, zero at each sample's first position
    mask_r = mask_r_ref[...]            # (1, N)   f32, zero at each sample's last position
    n = x.shape[1]
    bt = pool.shape[1]

    def group_norm(h, agg_ref, gamma, beta):
        # E[x]/E[x^2] form: 1 pooling dot on stacked [h; h*h] (bf16 operands, f32 accum),
        # 1 tiny f32 group-average dot (skipped when group size == 1),
        # 1 broadcast dot on stacked [scale; shift]  ->  3 MXU dots per GroupNorm.
        c = h.shape[0]
        gs = c // groups
        stacked = jnp.concatenate([h, h * h], axis=0).astype(bf16)            # (2C, N)
        stats = jnp.dot(stacked, pool, preferred_element_type=f32) * inv_l    # (2C, bt)
        m, ex2 = stats[:c], stats[c:]
        if gs > 1:
            cat = jnp.concatenate([m, ex2], axis=1)                            # (C, 2bt)
            cat = jnp.dot(agg_ref[...], cat, preferred_element_type=f32)       # f32: tiny dot
            m, ex2 = cat[:, :bt], cat[:, bt:]
        var = jnp.maximum(ex2 - m * m, 0.0)          # clamp rounding; padded rows stay NaN-free
        scale = gamma * jax.lax.rsqrt(var + EPS)                               # (C, bt)
        shift = beta - m * scale                                               # (C, bt)
        sb = jnp.dot(jnp.concatenate([scale, shift], axis=0).astype(bf16),
                     bcast, preferred_element_type=f32)                        # (2C, N)
        return h * sb[:c] + sb[c:]

    def swish(h):
        # x * sigmoid(x) with sigmoid(x) = 0.5*tanh(x/2) + 0.5 -> one EUP op per element
        return h * (0.5 * jnp.tanh(0.5 * h) + 0.5)

    def taps3(h):
        # k=3 / pad=1 tap slab [x[l-1]; x[l]; x[l+1]]: shifts via pltpu.roll (XLU), per-sample
        # padding masks applied in f32 (portable on v5e), taps stored/concatenated in bf16.
        left = (pltpu.roll(h, shift=1, axis=1) * mask_l).astype(bf16)
        right = (pltpu.roll(h, shift=n - 1, axis=1) * mask_r).astype(bf16)
        return jnp.concatenate([left, h.astype(bf16), right], axis=0)          # (3C, N)

    h = group_norm(x, agg1_ref, g1_ref[...], be1_ref[...])
    h = swish(h)
    h = jnp.dot(w1_ref[...], taps3(h), preferred_element_type=f32) + b1_ref[...]
    h = group_norm(h, agg2_ref, g2_ref[...], be2_ref[...])
    h = swish(h)

    if has_skip:
        # 1x1 skip conv fused into conv2: single dot over K = 3*C_out + C_in, bias pre-fused
        rhs = jnp.concatenate([taps3(h), x.astype(bf16)], axis=0)
        out_ref[0] = jnp.dot(w2_ref[...], rhs, preferred_element_type=f32) + b2_ref[...]
    else:
        # identity skip fast path (in_channels == out_channels): no extra matmul
        out_ref[0] = (jnp.dot(w2_ref[...], taps3(h), preferred_element_type=f32)
                      + b2_ref[...] + x)


def _group_matrix(c, groups):
    gs = c // groups
    idx = jnp.arange(c)
    same = (idx[:, None] // gs) == (idx[None, :] // gs)
    return same.astype(jnp.float32) / float(gs)


def resblock1d_pallas(x, params, groups=32, matmul_dtype=jnp.bfloat16,
                      lane_target=512, min_steps=2):
    B, C_in, L = x.shape
    C_out = params["w1"].shape[0]
    has_skip = "w_skip" in params
    f32 = jnp.float32

    # ---- choose the batch fold: (a) >=128 lanes for dense stores, (b) N ~ lane_target for MXU
    #      fill, (c) keep >= min_steps grid steps when the batch allows it (v7x: 2 TensorCores).
    bt_lane = -(-lane_target // L)
    bt_dense = max(1, -(-128 // L))
    bt_par = max(1, B // min_steps)
    bt = max(bt_dense, min(bt_lane, bt_par))
    b_pad = -(-B // bt) * bt
    nb = b_pad // bt
    n = bt * L

    xp = x.astype(f32)
    if b_pad != B:
        xp = jnp.concatenate([xp, jnp.zeros((b_pad - B, C_in, L), f32)], axis=0)
    if bt == 1:
        xf = xp                      # L already lane-dense: no fold, no host transpose
    else:
        # TODO(synk): for large bt*L this fold/unfold could move in-kernel (pltpu.einshape) to
        # save an HBM round-trip; at these sizes it is one small XLA transpose each way.
        xf = xp.reshape(nb, bt, C_in, L).transpose(0, 2, 1, 3).reshape(nb, C_in, n)

    # ---- conv weights: k=3 taps stacked along K; 1x1 skip conv fused into conv2's K ----
    w1 = jnp.concatenate([params["w1"][:, :, k] for k in range(3)], axis=1)
    w2 = jnp.concatenate([params["w2"][:, :, k] for k in range(3)], axis=1)
    b1 = params["b1"][:, None].astype(f32)
    b2 = params["b2"][:, None].astype(f32)
    if has_skip:
        w2 = jnp.concatenate([w2, params["w_skip"][:, :, 0]], axis=1)   # (C_out, 3*C_out + C_in)
        b2 = b2 + params["b_skip"][:, None].astype(f32)
    w1 = w1.astype(matmul_dtype)
    w2 = w2.astype(matmul_dtype)

    g1 = params["gamma1"][:, None].astype(f32)
    be1 = params["beta1"][:, None].astype(f32)
    g2 = params["gamma2"][:, None].astype(f32)
    be2 = params["beta2"][:, None].astype(f32)
    agg1 = _group_matrix(C_in, groups)
    agg2 = _group_matrix(C_out, groups)

    # ---- per-sample pooling / broadcast selectors (0/1, exact in bf16) + conv padding masks ----
    pos = jnp.arange(n)
    chunk = pos // L
    pool = (chunk[:, None] == jnp.arange(bt)[None, :]).astype(matmul_dtype)    # (n, bt)
    bcast = (jnp.arange(bt)[:, None] == chunk[None, :]).astype(matmul_dtype)   # (bt, n)
    mask_l = (pos % L != 0).astype(f32)[None, :]                               # (1, n)
    mask_r = (pos % L != (L - 1)).astype(f32)[None, :]                         # (1, n)

    def _const_spec(shape):
        zeros = (0,) * len(shape)
        return pl.BlockSpec(shape, lambda i, _z=zeros: _z)

    grid_spec = pltpu.PrefetchScalarGridSpec(
        num_scalar_prefetch=0,
        grid=(nb,),
        in_specs=[
            pl.BlockSpec((1, C_in, n), lambda i: (i, 0, 0)),   # x (folded)
            _const_spec(w1.shape), _const_spec(b1.shape),
            _const_spec(g1.shape), _const_spec(be1.shape), _const_spec(agg1.shape),
            _const_spec(w2.shape), _const_spec(b2.shape),
            _const_spec(g2.shape), _const_spec(be2.shape), _const_spec(agg2.shape),
            _const_spec(pool.shape), _const_spec(bcast.shape),
            _const_spec(mask_l.shape), _const_spec(mask_r.shape),
        ],
        out_specs=pl.BlockSpec((1, C_out, n), lambda i: (i, 0, 0)),
    )

    # VMEM footprint estimate per grid step (double-buffered I/O, bf16 tap slab, f32 temps);
    # request ~2x with a 16 MiB floor and 48 MiB cap (never 100% of v7x's 64 MiB).
    est = (4 * n * 2 * (C_in + C_out)
           + 2 * n * (3 * C_out + C_in)
           + 4 * n * (3 * C_out + 2 * C_in)
           + 2 * (w1.size + w2.size)
           + 4 * (agg1.size + agg2.size + pool.size + bcast.size + 2 * n)
           + (1 << 20))
    vmem_limit = int(min(max(2 * est, 16 << 20), 48 << 20))

    out = pl.pallas_call(
        functools.partial(_resblock1d_kernel, groups=groups, has_skip=has_skip,
                          inv_l=1.0 / float(L)),
        out_shape=jax.ShapeDtypeStruct((nb, C_out, n), f32),
        grid_spec=grid_spec,
        compiler_params=pltpu.CompilerParams(
            dimension_semantics=("parallel",),          # batch steps are independent
            vmem_limit_bytes=vmem_limit),
    )(xf, w1, b1, g1, be1, agg1, w2, b2, g2, be2, agg2, pool, bcast, mask_l, mask_r)

    if bt > 1:
        out = out.reshape(nb, C_out, bt, L).transpose(0, 2, 1, 3).reshape(b_pad, C_out, L)
    return out[:B]


# ---------------- pure-JAX reference (for verification) ----------------
def _groupnorm_ref(x, gamma, beta, groups):
    B, C, L = x.shape
    xr = x.reshape(B, groups, (C // groups) * L)
    mean = xr.mean(-1, keepdims=True)
    var = xr.var(-1, keepdims=True)
    xn = ((xr - mean) / jnp.sqrt(var + EPS)).reshape(B, C, L)
    return xn * gamma[None, :, None] + beta[None, :, None]


def _conv1d_ref(x, w, b, pad):
    y = jax.lax.conv_general_dilated(
        x, w, window_strides=(1,), padding=[(pad, pad)],
        dimension_numbers=("NCH", "OIH", "NCH"))
    return y + b[None, :, None]


def resblock1d_ref(x, params, groups=32):
    h = _groupnorm_ref(x, params["gamma1"], params["beta1"], groups)
    h = h * jax.nn.sigmoid(h)
    h = _conv1d_ref(h, params["w1"], params["b1"], 1)
    h = _groupnorm_ref(h, params["gamma2"], params["beta2"], groups)
    h = h * jax.nn.sigmoid(h)
    h = _conv1d_ref(h, params["w2"], params["b2"], 1)
    if "w_skip" in params:
        skip = _conv1d_ref(x, params["w_skip"], params["b_skip"], 0)
    else:
        skip = x
    return h + skip


if __name__ == "__main__":
    # C_in=64 / C_out=128 with groups=32 -> group sizes 2 and 4 (real GroupNorm reduction,
    # plus the in!=out 1x1 skip conv that the module only creates in that case).
    B, C_in, C_out, L = 2, 64, 128, 16
    GROUPS = 32

    key = jax.random.PRNGKey(0)
    ks = jax.random.split(key, 11)
    params = {
        "w1": 0.1 * jax.random.normal(ks[0], (C_out, C_in, 3), jnp.float32),
        "b1": 0.1 * jax.random.normal(ks[1], (C_out,), jnp.float32),
        "gamma1": 1.0 + 0.1 * jax.random.normal(ks[2], (C_in,), jnp.float32),
        "beta1": 0.1 * jax.random.normal(ks[3], (C_in,), jnp.float32),
        "w2": 0.1 * jax.random.normal(ks[4], (C_out, C_out, 3), jnp.float32),
        "b2": 0.1 * jax.random.normal(ks[5], (C_out,), jnp.float32),
        "gamma2": 1.0 + 0.1 * jax.random.normal(ks[6], (C_out,), jnp.float32),
        "beta2": 0.1 * jax.random.normal(ks[7], (C_out,), jnp.float32),
        "w_skip": 0.1 * jax.random.normal(ks[8], (C_out, C_in, 1), jnp.float32),
        "b_skip": 0.1 * jax.random.normal(ks[9], (C_out,), jnp.float32),
    }
    x = jax.random.normal(ks[10], (B, C_in, L), jnp.float32)

    out = resblock1d_pallas(x, params, groups=GROUPS)
    out = jax.block_until_ready(out)

    ref = resblock1d_ref(x, params, groups=GROUPS)
    assert out.shape == (B, C_out, L)
    max_err = float(jnp.max(jnp.abs(out - ref)))
    # bf16 matmul operands (conv weights, taps, GroupNorm pool/bcast) with f32 accumulation.
    assert jnp.allclose(out, ref, atol=5e-2, rtol=5e-2), f"max abs err = {max_err}"

    print("KERNEL_OK")
</pallas_src>

<mosaic_0001>
module attributes {stable_mosaic.version = 11 : i64} {
  func.func @_resblock1d_kernel(%arg0: i32, %arg1: memref<1x64x128xf32, #tpu.memory_space<vmem>>, %arg2: memref<128x192xbf16, #tpu.memory_space<vmem>>, %arg3: memref<128x1xf32, #tpu.memory_space<vmem>>, %arg4: memref<64x1xf32, #tpu.memory_space<vmem>>, %arg5: memref<64x1xf32, #tpu.memory_space<vmem>>, %arg6: memref<64x64xf32, #tpu.memory_space<vmem>>, %arg7: memref<128x448xbf16, #tpu.memory_space<vmem>>, %arg8: memref<128x1xf32, #tpu.memory_space<vmem>>, %arg9: memref<128x1xf32, #tpu.memory_space<vmem>>, %arg10: memref<128x1xf32, #tpu.memory_space<vmem>>, %arg11: memref<128x128xf32, #tpu.memory_space<vmem>>, %arg12: memref<128x8xbf16, #tpu.memory_space<vmem>>, %arg13: memref<8x128xbf16, #tpu.memory_space<vmem>>, %arg14: memref<1x128xf32, #tpu.memory_space<vmem>>, %arg15: memref<1x128xf32, #tpu.memory_space<vmem>>, %arg16: memref<1x128x128xf32, #tpu.memory_space<vmem>>) attributes {dimension_semantics = [#tpu.dimension_semantics<parallel>], iteration_bounds = array<i64: 1>, scalar_prefetch = 0 : i64, scratch_operands = 0 : i64, tpu.core_type = #tpu.core_type<tc>, window_params = [{transform_indices = @transform_0, window_bounds = array<i64: 1, 64, 128>}, {pipeline_mode = #tpu.pipeline_mode<synchronous>, transform_indices = @transform_1, window_bounds = array<i64: 128, 192>}, {pipeline_mode = #tpu.pipeline_mode<synchronous>, transform_indices = @transform_2, window_bounds = array<i64: 128, 1>}, {pipeline_mode = #tpu.pipeline_mode<synchronous>, transform_indices = @transform_3, window_bounds = array<i64: 64, 1>}, {pipeline_mode = #tpu.pipeline_mode<synchronous>, transform_indices = @transform_4, window_bounds = array<i64: 64, 1>}, {pipeline_mode = #tpu.pipeline_mode<synchronous>, transform_indices = @transform_5, window_bounds = array<i64: 64, 64>}, {pipeline_mode = #tpu.pipeline_mode<synchronous>, transform_indices = @transform_6, window_bounds = array<i64: 128, 448>}, {pipeline_mode = #tpu.pipeline_mode<synchronous>, transform_indices = @transform_7, window_bounds = array<i64: 128, 1>}, {pipeline_mode = #tpu.pipeline_mode<synchronous>, transform_indices = @transform_8, window_bounds = array<i64: 128, 1>}, {pipeline_mode = #tpu.pipeline_mode<synchronous>, transform_indices = @transform_9, window_bounds = array<i64: 128, 1>}, {pipeline_mode = #tpu.pipeline_mode<synchronous>, transform_indices = @transform_10, window_bounds = array<i64: 128, 128>}, {pipeline_mode = #tpu.pipeline_mode<synchronous>, transform_indices = @transform_11, window_bounds = array<i64: 128, 8>}, {pipeline_mode = #tpu.pipeline_mode<synchronous>, transform_indices = @transform_12, window_bounds = array<i64: 8, 128>}, {pipeline_mode = #tpu.pipeline_mode<synchronous>, transform_indices = @transform_13, window_bounds = array<i64: 1, 128>}, {pipeline_mode = #tpu.pipeline_mode<synchronous>, transform_indices = @transform_14, window_bounds = array<i64: 1, 128>}, {transform_indices = @transform_15, window_bounds = array<i64: 1, 128, 128>}]} {
    %c0 = arith.constant 0 : index
    %c0_0 = arith.constant 0 : index
    %c0_1 = arith.constant 0 : index
    %0 = vector.load %arg1[%c0, %c0_0, %c0_1] : memref<1x64x128xf32, #tpu.memory_space<vmem>>, vector<1x64x128xf32>
    %1 = vector.shape_cast %0 : vector<1x64x128xf32> to vector<64x128xf32>
    %c0_2 = arith.constant 0 : index
    %c0_3 = arith.constant 0 : index
    %2 = vector.load %arg12[%c0_2, %c0_3] : memref<128x8xbf16, #tpu.memory_space<vmem>>, vector<128x8xbf16>
    %c0_4 = arith.constant 0 : index
    %c0_5 = arith.constant 0 : index
    %3 = vector.load %arg13[%c0_4, %c0_5] : memref<8x128xbf16, #tpu.memory_space<vmem>>, vector<8x128xbf16>
    %c0_6 = arith.constant 0 : index
    %c0_7 = arith.constant 0 : index
    %4 = vector.load %arg14[%c0_6, %c0_7] : memref<1x128xf32, #tpu.memory_space<vmem>>, vector<1x128xf32>
    %c0_8 = arith.constant 0 : index
    %c0_9 = arith.constant 0 : index
    %5 = vector.load %arg15[%c0_8, %c0_9] : memref<1x128xf32, #tpu.memory_space<vmem>>, vector<1x128xf32>
    %c0_10 = arith.constant 0 : index
    %c0_11 = arith.constant 0 : index
    %6 = vector.load %arg4[%c0_10, %c0_11] : memref<64x1xf32, #tpu.memory_space<vmem>>, vector<64x1xf32>
    %c0_12 = arith.constant 0 : index
    %c0_13 = arith.constant 0 : index
    %7 = vector.load %arg5[%c0_12, %c0_13] : memref<64x1xf32, #tpu.memory_space<vmem>>, vector<64x1xf32>
    %8 = arith.mulf %1, %1 : vector<64x128xf32>
    %9 = tpu.concatenate %1, %8 in 0 : vector<64x128xf32>, vector<64x128xf32> -> vector<128x128xf32>
    %10 = arith.truncf %9 : vector<128x128xf32> to vector<128x128xbf16>
    %cst = arith.constant dense<0.000000e+00> : vector<128x8xf32>
    %11 = tpu.matmul %10, %2, %cst {dimension_numbers = #tpu.dot_dimension_numbers<[1], [0], [0], [1], [0, 0, 1, 1], [], []>} : vector<128x128xbf16>, vector<128x8xbf16>, vector<128x8xf32> -> vector<128x8xf32>
    %cst_14 = arith.constant 6.250000e-02 : f32
    %12 = vector.broadcast %cst_14 : f32 to vector<128x8xf32>
    %13 = arith.mulf %11, %12 : vector<128x8xf32>
    %14 = vector.extract_strided_slice %13 {offsets = [0, 0], sizes = [64, 8], strides = [1, 1]} : vector<128x8xf32> to vector<64x8xf32>
    %15 = vector.extract_strided_slice %13 {offsets = [64, 0], sizes = [64, 8], strides = [1, 1]} : vector<128x8xf32> to vector<64x8xf32>
    %16 = tpu.concatenate %14, %15 in 1 : vector<64x8xf32>, vector<64x8xf32> -> vector<64x16xf32>
    %c0_15 = arith.constant 0 : index
    %c0_16 = arith.constant 0 : index
    %17 = vector.load %arg6[%c0_15, %c0_16] : memref<64x64xf32, #tpu.memory_space<vmem>>, vector<64x64xf32>
    %cst_17 = arith.constant dense<0.000000e+00> : vector<64x16xf32>
    %18 = tpu.matmul %17, %16, %cst_17 {dimension_numbers = #tpu.dot_dimension_numbers<[1], [0], [0], [1], [0, 0, 1, 1], [], []>} : vector<64x64xf32>, vector<64x16xf32>, vector<64x16xf32> -> vector<64x16xf32>
    %19 = vector.extract_strided_slice %18 {offsets = [0, 0], sizes = [64, 8], strides = [1, 1]} : vector<64x16xf32> to vector<64x8xf32>
    %20 = vector.extract_strided_slice %18 {offsets = [0, 8], sizes = [64, 8], strides = [1, 1]} : vector<64x16xf32> to vector<64x8xf32>
    %21 = arith.mulf %19, %19 : vector<64x8xf32>
    %22 = arith.subf %20, %21 : vector<64x8xf32>
    %cst_18 = arith.constant 0.000000e+00 : f32
    %23 = vector.broadcast %cst_18 : f32 to vector<64x8xf32>
    %24 = arith.maximumf %22, %23 : vector<64x8xf32>
    %cst_19 = arith.constant 9.99999997E-7 : f32
    %25 = vector.broadcast %cst_19 : f32 to vector<64x8xf32>
    %26 = arith.addf %24, %25 : vector<64x8xf32>
    %27 = math.rsqrt %26 : vector<64x8xf32>
    %28 = vector.broadcast %6 : vector<64x1xf32> to vector<64x8xf32>
    %29 = arith.mulf %28, %27 : vector<64x8xf32>
    %30 = arith.mulf %19, %29 : vector<64x8xf32>
    %31 = vector.broadcast %7 : vector<64x1xf32> to vector<64x8xf32>
    %32 = arith.subf %31, %30 : vector<64x8xf32>
    %33 = tpu.concatenate %29, %32 in 0 : vector<64x8xf32>, vector<64x8xf32> -> vector<128x8xf32>
    %34 = arith.truncf %33 : vector<128x8xf32> to vector<128x8xbf16>
    %cst_20 = arith.constant dense<0.000000e+00> : vector<128x128xf32>
    %35 = tpu.matmul %34, %3, %cst_20 {dimension_numbers = #tpu.dot_dimension_numbers<[1], [0], [0], [1], [0, 0, 1, 1], [], []>} : vector<128x8xbf16>, vector<8x128xbf16>, vector<128x128xf32> -> vector<128x128xf32>
    %36 = vector.extract_strided_slice %35 {offsets = [0, 0], sizes = [64, 128], strides = [1, 1]} : vector<128x128xf32> to vector<64x128xf32>
    %37 = arith.mulf %1, %36 : vector<64x128xf32>
    %38 = vector.extract_strided_slice %35 {offsets = [64, 0], sizes = [64, 128], strides = [1, 1]} : vector<128x128xf32> to vector<64x128xf32>
    %39 = arith.addf %37, %38 : vector<64x128xf32>
    %cst_21 = arith.constant 5.000000e-01 : f32
    %40 = vector.broadcast %cst_21 : f32 to vector<64x128xf32>
    %41 = arith.mulf %40, %39 : vector<64x128xf32>
    %42 = math.tanh %41 : vector<64x128xf32>
    %cst_22 = arith.constant 5.000000e-01 : f32
    %43 = vector.broadcast %cst_22 : f32 to vector<64x128xf32>
    %44 = arith.mulf %43, %42 : vector<64x128xf32>
    %cst_23 = arith.constant 5.000000e-01 : f32
    %45 = vector.broadcast %cst_23 : f32 to vector<64x128xf32>
    %46 = arith.addf %44, %45 : vector<64x128xf32>
    %47 = arith.mulf %39, %46 : vector<64x128xf32>
    %c0_24 = arith.constant 0 : index
    %c0_25 = arith.constant 0 : index
    %48 = vector.load %arg2[%c0_24, %c0_25] : memref<128x192xbf16, #tpu.memory_space<vmem>>, vector<128x192xbf16>
    %c1_i32 = arith.constant 1 : i32
    %49 = tpu.dynamic_rotate %47 by %c1_i32 dim 1 : vector<64x128xf32>, i32 -> vector<64x128xf32>
    %50 = vector.broadcast %4 : vector<1x128xf32> to vector<64x128xf32>
    %51 = arith.mulf %49, %50 : vector<64x128xf32>
    %52 = arith.truncf %51 : vector<64x128xf32> to vector<64x128xbf16>
    %c127_i32 = arith.constant 127 : i32
    %53 = tpu.dynamic_rotate %47 by %c127_i32 dim 1 : vector<64x128xf32>, i32 -> vector<64x128xf32>
    %54 = vector.broadcast %5 : vector<1x128xf32> to vector<64x128xf32>
    %55 = arith.mulf %53, %54 : vector<64x128xf32>
    %56 = arith.truncf %55 : vector<64x128xf32> to vector<64x128xbf16>
    %57 = arith.truncf %47 : vector<64x128xf32> to vector<64x128xbf16>
    %58 = tpu.concatenate %52, %57, %56 in 0 : vector<64x128xbf16>, vector<64x128xbf16>, vector<64x128xbf16> -> vector<192x128xbf16>
    %cst_26 = arith.constant dense<0.000000e+00> : vector<128x128xf32>
    %59 = tpu.matmul %48, %58, %cst_26 {dimension_numbers = #tpu.dot_dimension_numbers<[1], [0], [0], [1], [0, 0, 1, 1], [], []>} : vector<128x192xbf16>, vector<192x128xbf16>, vector<128x128xf32> -> vector<128x128xf32>
    %c0_27 = arith.constant 0 : index
    %c0_28 = arith.constant 0 : index
    %60 = vector.load %arg3[%c0_27, %c0_28] : memref<128x1xf32, #tpu.memory_space<vmem>>, vector<128x1xf32>
    %61 = vector.broadcast %60 : vector<128x1xf32> to vector<128x128xf32>
    %62 = arith.addf %59, %61 : vector<128x128xf32>
    %c0_29 = arith.constant 0 : index
    %c0_30 = arith.constant 0 : index
    %63 = vector.load %arg9[%c0_29, %c0_30] : memref<128x1xf32, #tpu.memory_space<vmem>>, vector<128x1xf32>
    %c0_31 = arith.constant 0 : index
    %c0_32 = arith.constant 0 : index
    %64 = vector.load %arg10[%c0_31, %c0_32] : memref<128x1xf32, #tpu.memory_space<vmem>>, vector<128x1xf32>
    %65 = arith.mulf %62, %62 : vector<128x128xf32>
    %66 = tpu.concatenate %62, %65 in 0 : vector<128x128xf32>, vector<128x128xf32> -> vector<256x128xf32>
    %67 = arith.truncf %66 : vector<256x128xf32> to vector<256x128xbf16>
    %cst_33 = arith.constant dense<0.000000e+00> : vector<256x8xf32>
    %68 = tpu.matmul %67, %2, %cst_33 {dimension_numbers = #tpu.dot_dimension_numbers<[1], [0], [0], [1], [0, 0, 1, 1], [], []>} : vector<256x128xbf16>, vector<128x8xbf16>, vector<256x8xf32> -> vector<256x8xf32>
    %cst_34 = arith.constant 6.250000e-02 : f32
    %69 = vector.broadcast %cst_34 : f32 to vector<256x8xf32>
    %70 = arith.mulf %68, %69 : vector<256x8xf32>
    %71 = vector.extract_strided_slice %70 {offsets = [0, 0], sizes = [128, 8], strides = [1, 1]} : vector<256x8xf32> to vector<128x8xf32>
    %72 = vector.extract_strided_slice %70 {offsets = [128, 0], sizes = [128, 8], strides = [1, 1]} : vector<256x8xf32> to vector<128x8xf32>
    %73 = tpu.concatenate %71, %72 in 1 : vector<128x8xf32>, vector<128x8xf32> -> vector<128x16xf32>
    %c0_35 = arith.constant 0 : index
    %c0_36 = arith.constant 0 : index
    %74 = vector.load %arg11[%c0_35, %c0_36] : memref<128x128xf32, #tpu.memory_space<vmem>>, vector<128x128xf32>
    %cst_37 = arith.constant dense<0.000000e+00> : vector<128x16xf32>
    %75 = tpu.matmul %74, %73, %cst_37 {dimension_numbers = #tpu.dot_dimension_numbers<[1], [0], [0], [1], [0, 0, 1, 1], [], []>} : vector<128x128xf32>, vector<128x16xf32>, vector<128x16xf32> -> vector<128x16xf32>
    %76 = vector.extract_strided_slice %75 {offsets = [0, 0], sizes = [128, 8], strides = [1, 1]} : vector<128x16xf32> to vector<128x8xf32>
    %77 = vector.extract_strided_slice %75 {offsets = [0, 8], sizes = [128, 8], strides = [1, 1]} : vector<128x16xf32> to vector<128x8xf32>
    %78 = arith.mulf %76, %76 : vector<128x8xf32>
    %79 = arith.subf %77, %78 : vector<128x8xf32>
    %cst_38 = arith.constant 0.000000e+00 : f32
    %80 = vector.broadcast %cst_38 : f32 to vector<128x8xf32>
    %81 = arith.maximumf %79, %80 : vector<128x8xf32>
    %cst_39 = arith.constant 9.99999997E-7 : f32
    %82 = vector.broadcast %cst_39 : f32 to vector<128x8xf32>
    %83 = arith.addf %81, %82 : vector<128x8xf32>
    %84 = math.rsqrt %83 : vector<128x8xf32>
    %85 = vector.broadcast %63 : vector<128x1xf32> to vector<128x8xf32>
    %86 = arith.mulf %85, %84 : vector<128x8xf32>
    %87 = arith.mulf %76, %86 : vector<128x8xf32>
    %88 = vector.broadcast %64 : vector<128x1xf32> to vector<128x8xf32>
    %89 = arith.subf %88, %87 : vector<128x8xf32>
    %90 = tpu.concatenate %86, %89 in 0 : vector<128x8xf32>, vector<128x8xf32> -> vector<256x8xf32>
    %91 = arith.truncf %90 : vector<256x8xf32> to vector<256x8xbf16>
    %cst_40 = arith.constant dense<0.000000e+00> : vector<256x128xf32>
    %92 = tpu.matmul %91, %3, %cst_40 {dimension_numbers = #tpu.dot_dimension_numbers<[1], [0], [0], [1], [0, 0, 1, 1], [], []>} : vector<256x8xbf16>, vector<8x128xbf16>, vector<256x128xf32> -> vector<256x128xf32>
    %93 = vector.extract_strided_slice %92 {offsets = [0, 0], sizes = [128, 128], strides = [1, 1]} : vector<256x128xf32> to vector<128x128xf32>
    %94 = arith.mulf %62, %93 : vector<128x128xf32>
    %95 = vector.extract_strided_slice %92 {offsets = [128, 0], sizes = [128, 128], strides = [1, 1]} : vector<256x128xf32> to vector<128x128xf32>
    %96 = arith.addf %94, %95 : vector<128x128xf32>
    %cst_41 = arith.constant 5.000000e-01 : f32
    %97 = vector.broadcast %cst_41 : f32 to vector<128x128xf32>
    %98 = arith.mulf %97, %96 : vector<128x128xf32>
    %99 = math.tanh %98 : vector<128x128xf32>
    %cst_42 = arith.constant 5.000000e-01 : f32
    %100 = vector.broadcast %cst_42 : f32 to vector<128x128xf32>
    %101 = arith.mulf %100, %99 : vector<128x128xf32>
    %cst_43 = arith.constant 5.000000e-01 : f32
    %102 = vector.broadcast %cst_43 : f32 to vector<128x128xf32>
    %103 = arith.addf %101, %102 : vector<128x128xf32>
    %104 = arith.mulf %96, %103 : vector<128x128xf32>
    %c1_i32_44 = arith.constant 1 : i32
    %105 = tpu.dynamic_rotate %104 by %c1_i32_44 dim 1 : vector<128x128xf32>, i32 -> vector<128x128xf32>
    %106 = vector.broadcast %4 : vector<1x128xf32> to vector<128x128xf32>
    %107 = arith.mulf %105, %106 : vector<128x128xf32>
    %108 = arith.truncf %107 : vector<128x128xf32> to vector<128x128xbf16>
    %c127_i32_45 = arith.constant 127 : i32
    %109 = tpu.dynamic_rotate %104 by %c127_i32_45 dim 1 : vector<128x128xf32>, i32 -> vector<128x128xf32>
    %110 = vector.broadcast %5 : vector<1x128xf32> to vector<128x128xf32>
    %111 = arith.mulf %109, %110 : vector<128x128xf32>
    %112 = arith.truncf %111 : vector<128x128xf32> to vector<128x128xbf16>
    %113 = arith.truncf %104 : vector<128x128xf32> to vector<128x128xbf16>
    %114 = tpu.concatenate %108, %113, %112 in 0 : vector<128x128xbf16>, vector<128x128xbf16>, vector<128x128xbf16> -> vector<384x128xbf16>
    %115 = arith.truncf %1 : vector<64x128xf32> to vector<64x128xbf16>
    %116 = tpu.concatenate %114, %115 in 0 : vector<384x128xbf16>, vector<64x128xbf16> -> vector<448x128xbf16>
    %c0_46 = arith.constant 0 : index
    %c0_47 = arith.constant 0 : index
    %117 = vector.load %arg7[%c0_46, %c0_47] : memref<128x448xbf16, #tpu.memory_space<vmem>>, vector<128x448xbf16>
    %cst_48 = arith.constant dense<0.000000e+00> : vector<128x128xf32>
    %118 = tpu.matmul %117, %116, %cst_48 {dimension_numbers = #tpu.dot_dimension_numbers<[1], [0], [0], [1], [0, 0, 1, 1], [], []>} : vector<128x448xbf16>, vector<448x128xbf16>, vector<128x128xf32> -> vector<128x128xf32>
    %c0_49 = arith.constant 0 : index
    %c0_50 = arith.constant 0 : index
    %119 = vector.load %arg8[%c0_49, %c0_50] : memref<128x1xf32, #tpu.memory_space<vmem>>, vector<128x1xf32>
    %120 = vector.broadcast %119 : vector<128x1xf32> to vector<128x128xf32>
    %121 = arith.addf %118, %120 : vector<128x128xf32>
    %c0_51 = arith.constant 0 : index
    %c0_52 = arith.constant 0 : index
    %c0_53 = arith.constant 0 : index
    %122 = vector.load %arg16[%c0_51, %c0_52, %c0_53] : memref<1x128x128xf32, #tpu.memory_space<vmem>>, vector<1x128x128xf32>
    %123 = vector.shape_cast %122 : vector<1x128x128xf32> to vector<128x128xf32>
    %124 = vector.shape_cast %121 : vector<128x128xf32> to vector<1x128x128xf32>
    tpu.vector_store %arg16[%c0_51, %c0_52, %c0_53], %124 {strides = array<i32>} : memref<1x128x128xf32, #tpu.memory_space<vmem>>, vector<1x128x128xf32>,
    return
  }
  func.func @transform_0(%arg0: i32) -> (i32, i32, i32) {
    %c0_i32 = arith.constant 0 : i32
    %c0_i32_0 = arith.constant 0 : i32
    %c0_i32_1 = arith.constant 0 : i32
    return %arg0, %c0_i32, %c0_i32_0 : i32, i32, i32
  }
  func.func @transform_1(%arg0: i32) -> (i32, i32) {
    %c0_i32 = arith.constant 0 : i32
    %c0_i32_0 = arith.constant 0 : i32
    %c0_i32_1 = arith.constant 0 : i32
    return %c0_i32, %c0_i32_0 : i32, i32
  }
  func.func @transform_2(%arg0: i32) -> (i32, i32) {
    %c0_i32 = arith.constant 0 : i32
    %c0_i32_0 = arith.constant 0 : i32
    %c0_i32_1 = arith.constant 0 : i32
    return %c0_i32, %c0_i32_0 : i32, i32
  }
  func.func @transform_3(%arg0: i32) -> (i32, i32) {
    %c0_i32 = arith.constant 0 : i32
    %c0_i32_0 = arith.constant 0 : i32
    %c0_i32_1 = arith.constant 0 : i32
    return %c0_i32, %c0_i32_0 : i32, i32
  }
  func.func @transform_4(%arg0: i32) -> (i32, i32) {
    %c0_i32 = arith.constant 0 : i32
    %c0_i32_0 = arith.constant 0 : i32
    %c0_i32_1 = arith.constant 0 : i32
    return %c0_i32, %c0_i32_0 : i32, i32
  }
  func.func @transform_5(%arg0: i32) -> (i32, i32) {
    %c0_i32 = arith.constant 0 : i32
    %c0_i32_0 = arith.constant 0 : i32
    %c0_i32_1 = arith.constant 0 : i32
    return %c0_i32, %c0_i32_0 : i32, i32
  }
  func.func @transform_6(%arg0: i32) -> (i32, i32) {
    %c0_i32 = arith.constant 0 : i32
    %c0_i32_0 = arith.constant 0 : i32
    %c0_i32_1 = arith.constant 0 : i32
    return %c0_i32, %c0_i32_0 : i32, i32
  }
  func.func @transform_7(%arg0: i32) -> (i32, i32) {
    %c0_i32 = arith.constant 0 : i32
    %c0_i32_0 = arith.constant 0 : i32
    %c0_i32_1 = arith.constant 0 : i32
    return %c0_i32, %c0_i32_0 : i32, i32
  }
  func.func @transform_8(%arg0: i32) -> (i32, i32) {
    %c0_i32 = arith.constant 0 : i32
    %c0_i32_0 = arith.constant 0 : i32
    %c0_i32_1 = arith.constant 0 : i32
    return %c0_i32, %c0_i32_0 : i32, i32
  }
  func.func @transform_9(%arg0: i32) -> (i32, i32) {
    %c0_i32 = arith.constant 0 : i32
    %c0_i32_0 = arith.constant 0 : i32
    %c0_i32_1 = arith.constant 0 : i32
    return %c0_i32, %c0_i32_0 : i32, i32
  }
  func.func @transform_10(%arg0: i32) -> (i32, i32) {
    %c0_i32 = arith.constant 0 : i32
    %c0_i32_0 = arith.constant 0 : i32
    %c0_i32_1 = arith.constant 0 : i32
    return %c0_i32, %c0_i32_0 : i32, i32
  }
  func.func @transform_11(%arg0: i32) -> (i32, i32) {
    %c0_i32 = arith.constant 0 : i32
    %c0_i32_0 = arith.constant 0 : i32
    %c0_i32_1 = arith.constant 0 : i32
    return %c0_i32, %c0_i32_0 : i32, i32
  }
  func.func @transform_12(%arg0: i32) -> (i32, i32) {
    %c0_i32 = arith.constant 0 : i32
    %c0_i32_0 = arith.constant 0 : i32
    %c0_i32_1 = arith.constant 0 : i32
    return %c0_i32, %c0_i32_0 : i32, i32
  }
  func.func @transform_13(%arg0: i32) -> (i32, i32) {
    %c0_i32 = arith.constant 0 : i32
    %c0_i32_0 = arith.constant 0 : i32
    %c0_i32_1 = arith.constant 0 : i32
    return %c0_i32, %c0_i32_0 : i32, i32
  }
  func.func @transform_14(%arg0: i32) -> (i32, i32) {
    %c0_i32 = arith.constant 0 : i32
    %c0_i32_0 = arith.constant 0 : i32
    %c0_i32_1 = arith.constant 0 : i32
    return %c0_i32, %c0_i32_0 : i32, i32
  }
  func.func @transform_15(%arg0: i32) -> (i32, i32, i32) {
    %c0_i32 = arith.constant 0 : i32
    %c0_i32_0 = arith.constant 0 : i32
    %c0_i32_1 = arith.constant 0 : i32
    return %arg0, %c0_i32, %c0_i32_0 : i32, i32, i32
  }
}

</mosaic_0001>

<llo_original>
// kernel: tpu_custom_call.1
$region0: #{tpu_custom_call.1}
  #allocation0 [shape = 'u32[]', space=smem, size = 0x4, offset = 0x4, fixed_abs, tag = 'smem constant byte address 0x4 - core index']
  #allocation1 [shape = 'u32[144,128]{1,0:T(1,128)}', space=vmem, size = 0x12000, scoped, tag = 'internal scratch']
  %s0 = inlined_call_operand.vmem [shape: f32[1,64,128], index: 0, kind: input, shape index: {}]
  %s1 = inlined_call_operand.vmem [shape: bf16[128,192], index: 1, kind: input, shape index: {}]
  %s2 = inlined_call_operand.vmem [shape: f32[128,1], index: 2, kind: input, shape index: {}]
  %s3 = inlined_call_operand.vmem [shape: f32[64,1], index: 3, kind: input, shape index: {}]
  %s4 = inlined_call_operand.vmem [shape: f32[64,1], index: 4, kind: input, shape index: {}]
  %s5 = inlined_call_operand.vmem [shape: f32[64,64], index: 5, kind: input, shape index: {}]
  %s6 = inlined_call_operand.vmem [shape: bf16[128,448], index: 6, kind: input, shape index: {}]
  %s7 = inlined_call_operand.vmem [shape: f32[128,1], index: 7, kind: input, shape index: {}]
  %s8 = inlined_call_operand.vmem [shape: f32[128,1], index: 8, kind: input, shape index: {}]
  %s9 = inlined_call_operand.vmem [shape: f32[128,1], index: 9, kind: input, shape index: {}]
  %s10 = inlined_call_operand.vmem [shape: f32[128,128], index: 10, kind: input, shape index: {}]
  %s11 = inlined_call_operand.vmem [shape: bf16[128,8], index: 11, kind: input, shape index: {}]
  %s12 = inlined_call_operand.vmem [shape: bf16[8,128], index: 12, kind: input, shape index: {}]
  %s13 = inlined_call_operand.vmem [shape: f32[1,128], index: 13, kind: input, shape index: {}]
  %s14 = inlined_call_operand.vmem [shape: f32[1,128], index: 14, kind: input, shape index: {}]
  %s15 = inlined_call_operand.hbm [shape: f32[1,128,128], index: 15, kind: output, shape index: {}]
  %s16 = sld [smem:[#allocation0]]
  $region70: #{tpu_custom_call.1} parent=0
    _
  %s18 = ssub.s32 1, %s16
  %s19 = scalar_select 0, %s18, %s16
  $region1: #{tpu_custom_call.1} parent=0
    #allocation2 [shape = 'u8[65536]{0}', space=vmem, size = 0x10000, scoped, tag = 'output window, operand 0, single buffered']
    #allocation3 [shape = 's32[1]{0}', space=sflag, size = 0x4, scoped, tag = 'scoped memory for tpu_custom_call.1']
    %20 = vsyncpa [#allocation3], 0
    // Predicated region
    $region2: #{tpu_custom_call.1} parent=1 // pred_check
      _
    $region3: #{tpu_custom_call.1} parent=1 // pred_check_branch
      %22 = sbr.rel (0) target = $region5
    $region4: #{tpu_custom_call.1} parent=1 // pred_region
      _
    $region5: #{tpu_custom_call.1} parent=1 // pred_fallthru
      _
    // Predicated region
    $region6: #{tpu_custom_call.1} parent=1 // pred_check
      _
    $region7: #{tpu_custom_call.1} parent=1 // pred_check_branch
      %24 = sbr.rel (0) target = $region9
    $region8: #{tpu_custom_call.1} parent=1 // pred_region
      _
    $region9: #{tpu_custom_call.1} parent=1 // pred_fallthru
      _
    // Predicated region
    $region10: #{tpu_custom_call.1} parent=1 // pred_check
      _
    $region11: #{tpu_custom_call.1} parent=1 // pred_check_branch
      %26 = sbr.rel (0) target = $region13
    $region12: #{tpu_custom_call.1} parent=1 // pred_region
      _
    $region13: #{tpu_custom_call.1} parent=1 // pred_fallthru
      _
    // Predicated region
    $region14: #{tpu_custom_call.1} parent=1 // pred_check
      _
    $region15: #{tpu_custom_call.1} parent=1 // pred_check_branch
      %28 = sbr.rel (0) target = $region17
    $region16: #{tpu_custom_call.1} parent=1 // pred_region
      _
    $region17: #{tpu_custom_call.1} parent=1 // pred_fallthru
      _
    // Predicated region
    $region18: #{tpu_custom_call.1} parent=1 // pred_check
      _
    $region19: #{tpu_custom_call.1} parent=1 // pred_check_branch
      %30 = sbr.rel (0) target = $region21
    $region20: #{tpu_custom_call.1} parent=1 // pred_region
      _
    $region21: #{tpu_custom_call.1} parent=1 // pred_fallthru
      _
    // Predicated region
    $region22: #{tpu_custom_call.1} parent=1 // pred_check
      _
    $region23: #{tpu_custom_call.1} parent=1 // pred_check_branch
      %32 = sbr.rel (0) target = $region25
    $region24: #{tpu_custom_call.1} parent=1 // pred_region
      _
    $region25: #{tpu_custom_call.1} parent=1 // pred_fallthru
      _
    // Predicated region
    $region26: #{tpu_custom_call.1} parent=1 // pred_check
      _
    $region27: #{tpu_custom_call.1} parent=1 // pred_check_branch
      %34 = sbr.rel (0) target = $region29
    $region28: #{tpu_custom_call.1} parent=1 // pred_region
      _
    $region29: #{tpu_custom_call.1} parent=1 // pred_fallthru
      _
    // Predicated region
    $region30: #{tpu_custom_call.1} parent=1 // pred_check
      _
    $region31: #{tpu_custom_call.1} parent=1 // pred_check_branch
      %36 = sbr.rel (0) target = $region33
    $region32: #{tpu_custom_call.1} parent=1 // pred_region
      _
    $region33: #{tpu_custom_call.1} parent=1 // pred_fallthru
      _
    // Predicated region
    $region34: #{tpu_custom_call.1} parent=1 // pred_check
      _
    $region35: #{tpu_custom_call.1} parent=1 // pred_check_branch
      %38 = sbr.rel (0) target = $region37
    $region36: #{tpu_custom_call.1} parent=1 // pred_region
      _
    $region37: #{tpu_custom_call.1} parent=1 // pred_fallthru
      _
    // Predicated region
    $region38: #{tpu_custom_call.1} parent=1 // pred_check
      _
    $region39: #{tpu_custom_call.1} parent=1 // pred_check_branch
      %40 = sbr.rel (0) target = $region41
    $region40: #{tpu_custom_call.1} parent=1 // pred_region
      _
    $region41: #{tpu_custom_call.1} parent=1 // pred_fallthru
      _
    // Predicated region
    $region42: #{tpu_custom_call.1} parent=1 // pred_check
      _
    $region43: #{tpu_custom_call.1} parent=1 // pred_check_branch
      %42 = sbr.rel (0) target = $region45
    $region44: #{tpu_custom_call.1} parent=1 // pred_region
      _
    $region45: #{tpu_custom_call.1} parent=1 // pred_fallthru
      _
    // Predicated region
    $region46: #{tpu_custom_call.1} parent=1 // pred_check
      _
    $region47: #{tpu_custom_call.1} parent=1 // pred_check_branch
      %44 = sbr.rel (0) target = $region49
    $region48: #{tpu_custom_call.1} parent=1 // pred_region
      _
    $region49: #{tpu_custom_call.1} parent=1 // pred_fallthru
      _
    // Predicated region
    $region50: #{tpu_custom_call.1} parent=1 // pred_check
      _
    $region51: #{tpu_custom_call.1} parent=1 // pred_check_branch
      %46 = sbr.rel (0) target = $region53
    $region52: #{tpu_custom_call.1} parent=1 // pred_region
      _
    $region53: #{tpu_custom_call.1} parent=1 // pred_fallthru
      _
    // Predicated region
    $region54: #{tpu_custom_call.1} parent=1 // pred_check
      _
    $region55: #{tpu_custom_call.1} parent=1 // pred_check_branch
      %48 = sbr.rel (0) target = $region57
    $region56: #{tpu_custom_call.1} parent=1 // pred_region
      _
    $region57: #{tpu_custom_call.1} parent=1 // pred_fallthru
      _
    // Predicated region
    $region58: #{tpu_custom_call.1} parent=1 // pred_check
      _
    $region59: #{tpu_custom_call.1} parent=1 // pred_check_branch
      %50 = sbr.rel (0) target = $region61
    $region60: #{tpu_custom_call.1} parent=1 // pred_region
      _
    $region61: #{tpu_custom_call.1} parent=1 // pred_fallthru
      _
    %v52 = vld [vmem:[%s0] sm:$0xff]
    %v53 = vld [vmem:[%s0 + $0x8] sm:$0xff]
    %v54 = vld [vmem:[%s0 + $0x10] sm:$0xff]
    %v55 = vld [vmem:[%s0 + $0x18] sm:$0xff]
    %v56 = vld [vmem:[%s0 + $0x20] sm:$0xff]
    %v57 = vld [vmem:[%s0 + $0x28] sm:$0xff]
    %v58 = vld [vmem:[%s0 + $0x30] sm:$0xff]
    %v59 = vld [vmem:[%s0 + $0x38] sm:$0xff]
    %v60 = vld [vmem:[%s11] sm:$0xf]
    %v61 = vld [vmem:[%s11 + $0x4] sm:$0xf]
    %v62 = vld [vmem:[%s11 + $0x8] sm:$0xf]
    %v63 = vld [vmem:[%s11 + $0xc] sm:$0xf]
    %v64 = vld [vmem:[%s11 + $0x10] sm:$0xf]
    %v65 = vld [vmem:[%s11 + $0x14] sm:$0xf]
    %v66 = vld [vmem:[%s11 + $0x18] sm:$0xf]
    %v67 = vld [vmem:[%s11 + $0x1c] sm:$0xf]
    %v68 = vld [vmem:[%s11 + $0x20] sm:$0xf]
    %v69 = vld [vmem:[%s11 + $0x24] sm:$0xf]
    %v70 = vld [vmem:[%s11 + $0x28] sm:$0xf]
    %v71 = vld [vmem:[%s11 + $0x2c] sm:$0xf]
    %v72 = vld [vmem:[%s11 + $0x30] sm:$0xf]
    %v73 = vld [vmem:[%s11 + $0x34] sm:$0xf]
    %v74 = vld [vmem:[%s11 + $0x38] sm:$0xf]
    %v75 = vld [vmem:[%s11 + $0x3c] sm:$0xf]
    %v76 = vld [vmem:[%s12] sm:$0xf]
    %v77 = vld [vmem:[%s13] sm:$0x1]
    %v78 = vld [vmem:[%s14] sm:$0x1]
    %v79 = vld [vmem:[%s3] sm:$0xff]
    %v80 = vld [vmem:[%s3 + $0x8] sm:$0xff]
    %v81 = vld [vmem:[%s3 + $0x10] sm:$0xff]
    %v82 = vld [vmem:[%s3 + $0x18] sm:$0xff]
    %v83 = vld [vmem:[%s3 + $0x20] sm:$0xff]
    %v84 = vld [vmem:[%s3 + $0x28] sm:$0xff]
    %v85 = vld [vmem:[%s3 + $0x30] sm:$0xff]
    %v86 = vld [vmem:[%s3 + $0x38] sm:$0xff]
    %v87 = vld [vmem:[%s4] sm:$0xff]
    %v88 = vld [vmem:[%s4 + $0x8] sm:$0xff]
    %v89 = vld [vmem:[%s4 + $0x10] sm:$0xff]
    %v90 = vld [vmem:[%s4 + $0x18] sm:$0xff]
    %v91 = vld [vmem:[%s4 + $0x20] sm:$0xff]
    %v92 = vld [vmem:[%s4 + $0x28] sm:$0xff]
    %v93 = vld [vmem:[%s4 + $0x30] sm:$0xff]
    %v94 = vld [vmem:[%s4 + $0x38] sm:$0xff]
    %v95 = vmul.f32 %v52, %v52
    %v96 = vmul.f32 %v53, %v53
    %v97 = vmul.f32 %v54, %v54
    %v98 = vmul.f32 %v55, %v55
    %v99 = vmul.f32 %v56, %v56
    %v100 = vmul.f32 %v57, %v57
    %v101 = vmul.f32 %v58, %v58
    %v102 = vmul.f32 %v59, %v59
    %v103 = vpack.c.bf16 %v53, %v52
    %v104 = vpack.c.bf16 %v55, %v54
    %v105 = vpack.c.bf16 %v57, %v56
    %v106 = vpack.c.bf16 %v59, %v58
    %v107 = vpack.c.bf16 %v96, %v95
    %v108 = vpack.c.bf16 %v98, %v97
    %v109 = vpack.c.bf16 %v100, %v99
    %v110 = vpack.c.bf16 %v102, %v101
    %v127 = vunpack.c.l.b16 %v60
    %v128 = vunpack.c.l.b16 %v61
    %v129 = vunpack.c.l.b16 %v62
    %v130 = vunpack.c.l.b16 %v63
    %v131 = vunpack.c.l.b16 %v64
    %v132 = vunpack.c.l.b16 %v65
    %v133 = vunpack.c.l.b16 %v66
    %v134 = vunpack.c.l.b16 %v67
    %v135 = vunpack.c.l.b16 %v68
    %v136 = vunpack.c.l.b16 %v69
    %v137 = vunpack.c.l.b16 %v70
    %v138 = vunpack.c.l.b16 %v71
    %v139 = vunpack.c.l.b16 %v72
    %v140 = vunpack.c.l.b16 %v73
    %v141 = vunpack.c.l.b16 %v74
    %v142 = vunpack.c.l.b16 %v75
    %v143 = vpack.c.b16 %v128, %v127
    %v144 = vpack.c.b16 %v130, %v129
    %v145 = vpack.c.b16 %v132, %v131
    %v146 = vpack.c.b16 %v134, %v133
    %v147 = vpack.c.b16 %v136, %v135
    %v148 = vpack.c.b16 %v138, %v137
    %v149 = vpack.c.b16 %v140, %v139
    %v150 = vpack.c.b16 %v142, %v141
    %159 = vmatprep.subr.bf16.mxu0 0
    %160 = vmatpush1.bf16.msra.mxu0 %v143
    %161 = vmatprep.subr.bf16.mxu0 0
    %162 = vmatpush1.bf16.msra.mxu0 %v144
    %163 = vmatprep.subr.bf16.mxu0 0
    %164 = vmatpush1.bf16.msra.mxu0 %v145
    %165 = vmatprep.subr.bf16.mxu0 0
    %166 = vmatpush1.bf16.msra.mxu0 %v146
    %167 = vmatprep.subr.bf16.mxu0 0
    %168 = vmatpush1.bf16.msra.mxu0 %v147
    %169 = vmatprep.subr.bf16.mxu0 0
    %170 = vmatpush1.bf16.msra.mxu0 %v148
    %171 = vmatprep.subr.bf16.mxu0 0
    %172 = vmatpush1.bf16.msra.mxu0 %v149
    %173 = vmatprep.subr.bf16.mxu0 0
    %174 = vmatpush1.bf16.msra.mxu0 %v150
    %175 = vmatprep.subr.bf16.mxu0 0
    %176 = vmatpush1.bf16.msra.mxu0 0
    %177 = vmatprep.subr.bf16.mxu0 0
    %178 = vmatpush1.bf16.msra.mxu0 0
    %179 = vmatprep.subr.bf16.mxu0 0
    %180 = vmatpush1.bf16.msra.mxu0 0
    %181 = vmatprep.subr.bf16.mxu0 0
    %182 = vmatpush1.bf16.msra.mxu0 0
    %183 = vmatprep.subr.bf16.mxu0 0
    %184 = vmatpush1.bf16.msra.mxu0 0
    %185 = vmatprep.subr.bf16.mxu0 0
    %186 = vmatpush1.bf16.msra.mxu0 0
    %187 = vmatprep.subr.bf16.mxu0 0
    %188 = vmatpush1.bf16.msra.mxu0 0
    %189 = vmatprep.subr.bf16.mxu0 0
    %190 = vmatpush1.bf16.msra.mxu0 0
    %191 = vmatprep.mubr.bf16.mxu0 0
    %192 = vmatmul.mubr.bf16.gmra.mrb[0].mxu0 %v103
    %v193 = vpop.f32.mrb[0].mxu0
    %v194 = vadd.f32 0.0, %v193
    %v195 = vpop.f32.mrb[0].mxu0
    %v196 = vpop.f32.mrb[0].mxu0
    %v197 = vadd.f32 0.0, %v196
    %v198 = vpop.f32.mrb[0].mxu0
    %199 = vmatprep.mubr.bf16.mxu0 0
    %200 = vmatmul.mubr.bf16.gmra.mrb[0].mxu0 %v104
    %v201 = vpop.f32.mrb[0].mxu0
    %v202 = vadd.f32 0.0, %v201
    %v203 = vpop.f32.mrb[0].mxu0
    %v204 = vpop.f32.mrb[0].mxu0
    %v205 = vadd.f32 0.0, %v204
    %v206 = vpop.f32.mrb[0].mxu0
    %207 = vmatprep.mubr.bf16.mxu0 0
    %208 = vmatmul.mubr.bf16.gmra.mrb[0].mxu0 %v105
    %v209 = vpop.f32.mrb[0].mxu0
    %v210 = vadd.f32 0.0, %v209
    %v211 = vpop.f32.mrb[0].mxu0
    %v212 = vpop.f32.mrb[0].mxu0
    %v213 = vadd.f32 0.0, %v212
    %v214 = vpop.f32.mrb[0].mxu0
    %215 = vmatprep.mubr.bf16.mxu0 0
    %216 = vmatmul.mubr.bf16.gmra.mrb[0].mxu0 %v106
    %v217 = vpop.f32.mrb[0].mxu0
    %v218 = vadd.f32 0.0, %v217
    %v219 = vpop.f32.mrb[0].mxu0
    %v220 = vpop.f32.mrb[0].mxu0
    %v221 = vadd.f32 0.0, %v220
    %v222 = vpop.f32.mrb[0].mxu0
    %223 = vmatprep.mubr.bf16.mxu0 0
    %224 = vmatmul.mubr.bf16.gmra.mrb[0].mxu0 %v107
    %v225 = vpop.f32.mrb[0].mxu0
    %v226 = vadd.f32 0.0, %v225
    %v227 = vpop.f32.mrb[0].mxu0
    %v228 = vpop.f32.mrb[0].mxu0
    %v229 = vadd.f32 0.0, %v228
    %v230 = vpop.f32.mrb[0].mxu0
    %231 = vmatprep.mubr.bf16.mxu0 0
    %232 = vmatmul.mubr.bf16.gmra.mrb[0].mxu0 %v108
    %v233 = vpop.f32.mrb[0].mxu0
    %v234 = vadd.f32 0.0, %v233
    %v235 = vpop.f32.mrb[0].mxu0
    %v236 = vpop.f32.mrb[0].mxu0
    %v237 = vadd.f32 0.0, %v236
    %v238 = vpop.f32.mrb[0].mxu0
    %239 = vmatprep.mubr.bf16.mxu0 0
    %240 = vmatmul.mubr.bf16.gmra.mrb[0].mxu0 %v109
    %v241 = vpop.f32.mrb[0].mxu0
    %v242 = vadd.f32 0.0, %v241
    %v243 = vpop.f32.mrb[0].mxu0
    %v244 = vpop.f32.mrb[0].mxu0
    %v245 = vadd.f32 0.0, %v244
    %v246 = vpop.f32.mrb[0].mxu0
    %247 = vmatprep.mubr.bf16.mxu0 0
    %248 = vmatmul.mubr.bf16.gmra.mrb[0].mxu0 %v110
    %v249 = vpop.f32.mrb[0].mxu0
    %v250 = vadd.f32 0.0, %v249
    %v251 = vpop.f32.mrb[0].mxu0
    %v252 = vpop.f32.mrb[0].mxu0
    %v253 = vadd.f32 0.0, %v252
    %v254 = vpop.f32.mrb[0].mxu0
    %255 = vdwg.mxu0
    %v256 = vmul.f32 %v194, 0.0625
    %v257 = vmul.f32 %v197, 0.0625
    %v258 = vmul.f32 %v202, 0.0625
    %v259 = vmul.f32 %v205, 0.0625
    %v260 = vmul.f32 %v210, 0.0625
    %v261 = vmul.f32 %v213, 0.0625
    %v262 = vmul.f32 %v218, 0.0625
    %v263 = vmul.f32 %v221, 0.0625
    %v264 = vmul.f32 %v226, 0.0625
    %v265 = vmul.f32 %v229, 0.0625
    %v266 = vmul.f32 %v234, 0.0625
    %v267 = vmul.f32 %v237, 0.0625
    %v268 = vmul.f32 %v242, 0.0625
    %v269 = vmul.f32 %v245, 0.0625
    %v270 = vmul.f32 %v250, 0.0625
    %v271 = vmul.f32 %v253, 0.0625
    %280 = vrot.lane.b32.xlu0 %v264, 8
    %v281 = vpop.permute.xlu0 %280
    %282 = vrot.lane.b32.xlu0 %v265, 8
    %v283 = vpop.permute.xlu0 %282
    %284 = vrot.lane.b32.xlu0 %v266, 8
    %v285 = vpop.permute.xlu0 %284
    %286 = vrot.lane.b32.xlu0 %v267, 8
    %v287 = vpop.permute.xlu0 %286
    %288 = vrot.lane.b32.xlu0 %v268, 8
    %v289 = vpop.permute.xlu0 %288
    %290 = vrot.lane.b32.xlu0 %v269, 8
    %v291 = vpop.permute.xlu0 %290
    %292 = vrot.lane.b32.xlu0 %v270, 8
    %v293 = vpop.permute.xlu0 %292
    %294 = vrot.lane.b32.xlu0 %v271, 8
    %v295 = vpop.permute.xlu0 %294
    %vm304 = vcmask 64512
    %v305 = vsel %vm304, %v256, %v281
    %v306 = vsel %vm304, %v257, %v283
    %v307 = vsel %vm304, %v258, %v285
    %v308 = vsel %vm304, %v259, %v287
    %v309 = vsel %vm304, %v260, %v289
    %v310 = vsel %vm304, %v261, %v291
    %v311 = vsel %vm304, %v262, %v293
    %v312 = vsel %vm304, %v263, %v295
    %v313 = vld [vmem:[%s5] sm:$0xff]
    %v314 = vld [vmem:[%s5 + $0x8] sm:$0xff]
    %v315 = vld [vmem:[%s5 + $0x10] sm:$0xff]
    %v316 = vld [vmem:[%s5 + $0x18] sm:$0xff]
    %v317 = vld [vmem:[%s5 + $0x20] sm:$0xff]
    %v318 = vld [vmem:[%s5 + $0x28] sm:$0xff]
    %v319 = vld [vmem:[%s5 + $0x30] sm:$0xff]
    %v320 = vld [vmem:[%s5 + $0x38] sm:$0xff]
    %vm321 = vcmask 523264
    %v323 = vsel %vm321, %v313, 0
    %v326 = vsel %vm321, %v314, 0
    %v329 = vsel %vm321, %v315, 0
    %v332 = vsel %vm321, %v316, 0
    %v335 = vsel %vm321, %v317, 0
    %v338 = vsel %vm321, %v318, 0
    %v341 = vsel %vm321, %v319, 0
    %v344 = vsel %vm321, %v320, 0
    %346 = vmatprep.subr.mxu0 0.0
    %347 = vmatpush1.msra.mxu0 %v305
    %348 = vmatprep.subr.mxu0 0.0
    %349 = vmatpush1.msra.mxu0 %v306
    %350 = vmatprep.subr.mxu0 0.0
    %351 = vmatpush1.msra.mxu0 %v307
    %352 = vmatprep.subr.mxu0 0.0
    %353 = vmatpush1.msra.mxu0 %v308
    %354 = vmatprep.subr.mxu0 0.0
    %355 = vmatpush1.msra.mxu0 %v309
    %356 = vmatprep.subr.mxu0 0.0
    %357 = vmatpush1.msra.mxu0 %v310
    %358 = vmatprep.subr.mxu0 0.0
    %359 = vmatpush1.msra.mxu0 %v311
    %360 = vmatprep.subr.mxu0 0.0
    %361 = vmatpush1.msra.mxu0 %v312
    %362 = vmatprep.subr.mxu0 0.0
    %363 = vmatpush1.msra.mxu0 0.0
    %364 = vmatprep.subr.mxu0 0.0
    %365 = vmatpush1.msra.mxu0 0.0
    %366 = vmatprep.subr.mxu0 0.0
    %367 = vmatpush1.msra.mxu0 0.0
    %368 = vmatprep.subr.mxu0 0.0
    %369 = vmatpush1.msra.mxu0 0.0
    %370 = vmatprep.subr.mxu0 0.0
    %371 = vmatpush1.msra.mxu0 0.0
    %372 = vmatprep.subr.mxu0 0.0
    %373 = vmatpush1.msra.mxu0 0.0
    %374 = vmatprep.subr.mxu0 0.0
    %375 = vmatpush1.msra.mxu0 0.0
    %376 = vmatprep.subr.mxu0 0.0
    %377 = vmatpush1.msra.mxu0 0.0
    %378 = vmatprep.subr.mxu0 0.0
    %379 = vmatpush1.msra.mxu0 0.0
    %380 = vmatprep.subr.mxu0 0.0
    %381 = vmatpush1.msra.mxu0 0.0
    %382 = vmatprep.subr.mxu0 0.0
    %383 = vmatpush1.msra.mxu0 0.0
    %384 = vmatprep.subr.mxu0 0.0
    %385 = vmatpush1.msra.mxu0 0.0
    %386 = vmatprep.subr.mxu0 0.0
    %387 = vmatpush1.msra.mxu0 0.0
    %388 = vmatprep.subr.mxu0 0.0
    %389 = vmatpush1.msra.mxu0 0.0
    %390 = vmatprep.subr.mxu0 0.0
    %391 = vmatpush1.msra.mxu0 0.0
    %392 = vmatprep.subr.mxu0 0.0
    %393 = vmatpush1.msra.mxu0 0.0
    %394 = vmatprep.subr.mxu0 0.0
    %395 = vmatpush1.msra.mxu0 0.0
    %396 = vmatprep.subr.mxu0 0.0
    %397 = vmatpush1.msra.mxu0 0.0
    %398 = vmatprep.subr.mxu0 0.0
    %399 = vmatpush1.msra.mxu0 0.0
    %400 = vmatprep.subr.mxu0 0.0
    %401 = vmatpush1.msra.mxu0 0.0
    %402 = vmatprep.subr.mxu0 0.0
    %403 = vmatpush1.msra.mxu0 0.0
    %404 = vmatprep.subr.mxu0 0.0
    %405 = vmatpush1.msra.mxu0 0.0
    %406 = vmatprep.subr.mxu0 0.0
    %407 = vmatpush1.msra.mxu0 0.0
    %408 = vmatprep.subr.mxu0 0.0
    %409 = vmatpush1.msra.mxu0 0.0
    %410 = vmatprep.mubr.f32.mxu0 0.0
    %411 = vmatmul.mubr.f32.gmra.mrb[0].mxu0 %v323
    %v412 = vpop.f32.mrb[0].mxu0
    %v413 = vadd.f32 0.0, %v412
    %v414 = vpop.f32.mrb[0].mxu0
    %415 = vmatprep.mubr.f32.mxu0 0.0
    %416 = vmatmul.mubr.f32.gmra.mrb[0].mxu0 %v326
    %v417 = vpop.f32.mrb[0].mxu0
    %v418 = vadd.f32 0.0, %v417
    %v419 = vpop.f32.mrb[0].mxu0
    %420 = vmatprep.mubr.f32.mxu0 0.0
    %421 = vmatmul.mubr.f32.gmra.mrb[0].mxu0 %v329
    %v422 = vpop.f32.mrb[0].mxu0
    %v423 = vadd.f32 0.0, %v422
    %v424 = vpop.f32.mrb[0].mxu0
    %425 = vmatprep.mubr.f32.mxu0 0.0
    %426 = vmatmul.mubr.f32.gmra.mrb[0].mxu0 %v332
    %v427 = vpop.f32.mrb[0].mxu0
    %v428 = vadd.f32 0.0, %v427
    %v429 = vpop.f32.mrb[0].mxu0
    %430 = vmatprep.mubr.f32.mxu0 0.0
    %431 = vmatmul.mubr.f32.gmra.mrb[0].mxu0 %v335
    %v432 = vpop.f32.mrb[0].mxu0
    %v433 = vadd.f32 0.0, %v432
    %v434 = vpop.f32.mrb[0].mxu0
    %435 = vmatprep.mubr.f32.mxu0 0.0
    %436 = vmatmul.mubr.f32.gmra.mrb[0].mxu0 %v338
    %v437 = vpop.f32.mrb[0].mxu0
    %v438 = vadd.f32 0.0, %v437
    %v439 = vpop.f32.mrb[0].mxu0
    %440 = vmatprep.mubr.f32.mxu0 0.0
    %441 = vmatmul.mubr.f32.gmra.mrb[0].mxu0 %v341
    %v442 = vpop.f32.mrb[0].mxu0
    %v443 = vadd.f32 0.0, %v442
    %v444 = vpop.f32.mrb[0].mxu0
    %445 = vmatprep.mubr.f32.mxu0 0.0
    %446 = vmatmul.mubr.f32.gmra.mrb[0].mxu0 %v344
    %v447 = vpop.f32.mrb[0].mxu0
    %v448 = vadd.f32 0.0, %v447
    %v449 = vpop.f32.mrb[0].mxu0
    %450 = vdwg.mxu0
    %v451 = vmul.f32 %v413, %v413
    %v452 = vmul.f32 %v418, %v418
    %v453 = vmul.f32 %v423, %v423
    %v454 = vmul.f32 %v428, %v428
    %v455 = vmul.f32 %v433, %v433
    %v456 = vmul.f32 %v438, %v438
    %v457 = vmul.f32 %v443, %v443
    %v458 = vmul.f32 %v448, %v448
    %467 = vrot.lane.b32.xlu0 %v451, 8
    %v468 = vpop.permute.xlu0 %467
    %469 = vrot.lane.b32.xlu0 %v452, 8
    %v470 = vpop.permute.xlu0 %469
    %471 = vrot.lane.b32.xlu0 %v453, 8
    %v472 = vpop.permute.xlu0 %471
    %473 = vrot.lane.b32.xlu0 %v454, 8
    %v474 = vpop.permute.xlu0 %473
    %475 = vrot.lane.b32.xlu0 %v455, 8
    %v476 = vpop.permute.xlu0 %475
    %477 = vrot.lane.b32.xlu0 %v456, 8
    %v478 = vpop.permute.xlu0 %477
    %479 = vrot.lane.b32.xlu0 %v457, 8
    %v480 = vpop.permute.xlu0 %479
    %481 = vrot.lane.b32.xlu0 %v458, 8
    %v482 = vpop.permute.xlu0 %481
    %v491 = vsub.f32 %v413, %v468
    %v492 = vsub.f32 %v418, %v470
    %v493 = vsub.f32 %v423, %v472
    %v494 = vsub.f32 %v428, %v474
    %v495 = vsub.f32 %v433, %v476
    %v496 = vsub.f32 %v438, %v478
    %v497 = vsub.f32 %v443, %v480
    %v498 = vsub.f32 %v448, %v482
    %v499 = vmax.f32 %v491, 0.0
    %v500 = vmax.f32 %v492, 0.0
    %v501 = vmax.f32 %v493, 0.0
    %v502 = vmax.f32 %v494, 0.0
    %v503 = vmax.f32 %v495, 0.0
    %v504 = vmax.f32 %v496, 0.0
    %v505 = vmax.f32 %v497, 0.0
    %v506 = vmax.f32 %v498, 0.0
    %v507 = vadd.f32 %v499, 1e-06
    %v508 = vadd.f32 %v500, 1e-06
    %v509 = vadd.f32 %v501, 1e-06
    %v510 = vadd.f32 %v502, 1e-06
    %v511 = vadd.f32 %v503, 1e-06
    %v512 = vadd.f32 %v504, 1e-06
    %v513 = vadd.f32 %v505, 1e-06
    %v514 = vadd.f32 %v506, 1e-06
    %v515 = vrsqrt.pop %v507
    %v516 = vrsqrt.pop %v508
    %v517 = vrsqrt.pop %v509
    %v518 = vrsqrt.pop %v510
    %v519 = vrsqrt.pop %v511
    %v520 = vrsqrt.pop %v512
    %v521 = vrsqrt.pop %v513
    %v522 = vrsqrt.pop %v514
    %524 = vset.pattern.permute.xlu0 0
    %525 = vperm.xlu0 %524, %v79
    %v526 = vpop.permute.xlu0 %525
    %529 = vset.pattern.permute.xlu0 0
    %530 = vperm.xlu0 %529, %v80
    %v531 = vpop.permute.xlu0 %530
    %534 = vset.pattern.permute.xlu0 0
    %535 = vperm.xlu0 %534, %v81
    %v536 = vpop.permute.xlu0 %535
    %539 = vset.pattern.permute.xlu0 0
    %540 = vperm.xlu0 %539, %v82
    %v541 = vpop.permute.xlu0 %540
    %544 = vset.pattern.permute.xlu0 0
    %545 = vperm.xlu0 %544, %v83
    %v546 = vpop.permute.xlu0 %545
    %549 = vset.pattern.permute.xlu0 0
    %550 = vperm.xlu0 %549, %v84
    %v551 = vpop.permute.xlu0 %550
    %554 = vset.pattern.permute.xlu0 0
    %555 = vperm.xlu0 %554, %v85
    %v556 = vpop.permute.xlu0 %555
    %559 = vset.pattern.permute.xlu0 0
    %560 = vperm.xlu0 %559, %v86
    %v561 = vpop.permute.xlu0 %560
    %v563 = vmul.f32 %v526, %v515
    %v564 = vmul.f32 %v531, %v516
    %v565 = vmul.f32 %v536, %v517
    %v566 = vmul.f32 %v541, %v518
    %v567 = vmul.f32 %v546, %v519
    %v568 = vmul.f32 %v551, %v520
    %v569 = vmul.f32 %v556, %v521
    %v570 = vmul.f32 %v561, %v522
    %579 = vrot.lane.b32.xlu0 %v563, 120
    %v580 = vpop.permute.xlu0 %579
    %581 = vrot.lane.b32.xlu0 %v564, 120
    %v582 = vpop.permute.xlu0 %581
    %583 = vrot.lane.b32.xlu0 %v565, 120
    %v584 = vpop.permute.xlu0 %583
    %585 = vrot.lane.b32.xlu0 %v566, 120
    %v586 = vpop.permute.xlu0 %585
    %587 = vrot.lane.b32.xlu0 %v567, 120
    %v588 = vpop.permute.xlu0 %587
    %589 = vrot.lane.b32.xlu0 %v568, 120
    %v590 = vpop.permute.xlu0 %589
    %591 = vrot.lane.b32.xlu0 %v569, 120
    %v592 = vpop.permute.xlu0 %591
    %593 = vrot.lane.b32.xlu0 %v570, 120
    %v594 = vpop.permute.xlu0 %593
    %v603 = vmul.f32 %v413, %v580
    %v604 = vmul.f32 %v418, %v582
    %v605 = vmul.f32 %v423, %v584
    %v606 = vmul.f32 %v428, %v586
    %v607 = vmul.f32 %v433, %v588
    %v608 = vmul.f32 %v438, %v590
    %v609 = vmul.f32 %v443, %v592
    %v610 = vmul.f32 %v448, %v594
    %612 = vset.pattern.permute.xlu0 0
    %613 = vperm.xlu0 %612, %v87
    %v614 = vpop.permute.xlu0 %613
    %617 = vset.pattern.permute.xlu0 0
    %618 = vperm.xlu0 %617, %v88
    %v619 = vpop.permute.xlu0 %618
    %622 = vset.pattern.permute.xlu0 0
    %623 = vperm.xlu0 %622, %v89
    %v624 = vpop.permute.xlu0 %623
    %627 = vset.pattern.permute.xlu0 0
    %628 = vperm.xlu0 %627, %v90
    %v629 = vpop.permute.xlu0 %628
    %632 = vset.pattern.permute.xlu0 0
    %633 = vperm.xlu0 %632, %v91
    %v634 = vpop.permute.xlu0 %633
    %637 = vset.pattern.permute.xlu0 0
    %638 = vperm.xlu0 %637, %v92
    %v639 = vpop.permute.xlu0 %638
    %642 = vset.pattern.permute.xlu0 0
    %643 = vperm.xlu0 %642, %v93
    %v644 = vpop.permute.xlu0 %643
    %647 = vset.pattern.permute.xlu0 0
    %648 = vperm.xlu0 %647, %v94
    %v649 = vpop.permute.xlu0 %648
    %v651 = vsub.f32 %v614, %v603
    %v652 = vsub.f32 %v619, %v604
    %v653 = vsub.f32 %v624, %v605
    %v654 = vsub.f32 %v629, %v606
    %v655 = vsub.f32 %v634, %v607
    %v656 = vsub.f32 %v639, %v608
    %v657 = vsub.f32 %v644, %v609
    %v658 = vsub.f32 %v649, %v610
    %667 = vrot.lane.b32.xlu0 %v651, 8
    %v668 = vpop.permute.xlu0 %667
    %669 = vrot.lane.b32.xlu0 %v652, 8
    %v670 = vpop.permute.xlu0 %669
    %671 = vrot.lane.b32.xlu0 %v653, 8
    %v672 = vpop.permute.xlu0 %671
    %673 = vrot.lane.b32.xlu0 %v654, 8
    %v674 = vpop.permute.xlu0 %673
    %675 = vrot.lane.b32.xlu0 %v655, 8
    %v676 = vpop.permute.xlu0 %675
    %677 = vrot.lane.b32.xlu0 %v656, 8
    %v678 = vpop.permute.xlu0 %677
    %679 = vrot.lane.b32.xlu0 %v657, 8
    %v680 = vpop.permute.xlu0 %679
    %681 = vrot.lane.b32.xlu0 %v658, 8
    %v682 = vpop.permute.xlu0 %681
    %v691 = vpack.c.bf16 %v564, %v563
    %v692 = vpack.c.bf16 %v566, %v565
    %v693 = vpack.c.bf16 %v568, %v567
    %v694 = vpack.c.bf16 %v570, %v569
    %v695 = vpack.c.bf16 %v670, %v668
    %v696 = vpack.c.bf16 %v674, %v672
    %v697 = vpack.c.bf16 %v678, %v676
    %v698 = vpack.c.bf16 %v682, %v680
    %707 = vrot.lane.b32.xlu0 %v691, 120
    %v708 = vpop.permute.xlu0 %707
    %709 = vrot.lane.b32.xlu0 %v692, 120
    %v710 = vpop.permute.xlu0 %709
    %711 = vrot.lane.b32.xlu0 %v693, 120
    %v712 = vpop.permute.xlu0 %711
    %713 = vrot.lane.b32.xlu0 %v694, 120
    %v714 = vpop.permute.xlu0 %713
    %715 = vrot.lane.b32.xlu0 %v695, 120
    %v716 = vpop.permute.xlu0 %715
    %717 = vrot.lane.b32.xlu0 %v696, 120
    %v718 = vpop.permute.xlu0 %717
    %719 = vrot.lane.b32.xlu0 %v697, 120
    %v720 = vpop.permute.xlu0 %719
    %721 = vrot.lane.b32.xlu0 %v698, 120
    %v722 = vpop.permute.xlu0 %721
    %v724 = vsel %vm304, %v708, 0
    %v727 = vsel %vm304, %v710, 0
    %v730 = vsel %vm304, %v712, 0
    %v733 = vsel %vm304, %v714, 0
    %v736 = vsel %vm304, %v716, 0
    %v739 = vsel %vm304, %v718, 0
    %v742 = vsel %vm304, %v720, 0
    %v745 = vsel %vm304, %v722, 0
    %vm747 = vcmask 1043456
    %v749 = vsel %vm747, %v76, 0
    %751 = vmatprep.subr.bf16.mxu0 0
    %752 = vmatpush1.bf16.msra.mxu0 %v749
    %753 = vmatprep.subr.bf16.mxu0 0
    %754 = vmatpush1.bf16.msra.mxu0 0
    %755 = vmatprep.subr.bf16.mxu0 0
    %756 = vmatpush1.bf16.msra.mxu0 0
    %757 = vmatprep.subr.bf16.mxu0 0
    %758 = vmatpush1.bf16.msra.mxu0 0
    %759 = vmatprep.subr.bf16.mxu0 0
    %760 = vmatpush1.bf16.msra.mxu0 0
    %761 = vmatprep.subr.bf16.mxu0 0
    %762 = vmatpush1.bf16.msra.mxu0 0
    %763 = vmatprep.subr.bf16.mxu0 0
    %764 = vmatpush1.bf16.msra.mxu0 0
    %765 = vmatprep.subr.bf16.mxu0 0
    %766 = vmatpush1.bf16.msra.mxu0 0
    %767 = vmatprep.subr.bf16.mxu0 0
    %768 = vmatpush1.bf16.msra.mxu0 0
    %769 = vmatprep.subr.bf16.mxu0 0
    %770 = vmatpush1.bf16.msra.mxu0 0
    %771 = vmatprep.subr.bf16.mxu0 0
    %772 = vmatpush1.bf16.msra.mxu0 0
    %773 = vmatprep.subr.bf16.mxu0 0
    %774 = vmatpush1.bf16.msra.mxu0 0
    %775 = vmatprep.subr.bf16.mxu0 0
    %776 = vmatpush1.bf16.msra.mxu0 0
    %777 = vmatprep.subr.bf16.mxu0 0
    %778 = vmatpush1.bf16.msra.mxu0 0
    %779 = vmatprep.subr.bf16.mxu0 0
    %780 = vmatpush1.bf16.msra.mxu0 0
    %781 = vmatprep.subr.bf16.mxu0 0
    %782 = vmatpush1.bf16.msra.mxu0 0
    %783 = vmatprep.mubr.bf16.mxu0 0
    %784 = vmatmul.mubr.bf16.gmra.mrb[0].mxu0 %v724
    %v785 = vpop.f32.mrb[0].mxu0
    %v786 = vadd.f32 0.0, %v785
    %v787 = vpop.f32.mrb[0].mxu0
    %v788 = vpop.f32.mrb[0].mxu0
    %v789 = vadd.f32 0.0, %v788
    %v790 = vpop.f32.mrb[0].mxu0
    %791 = vmatprep.mubr.bf16.mxu0 0
    %792 = vmatmul.mubr.bf16.gmra.mrb[0].mxu0 %v727
    %v793 = vpop.f32.mrb[0].mxu0
    %v794 = vadd.f32 0.0, %v793
    %v795 = vpop.f32.mrb[0].mxu0
    %v796 = vpop.f32.mrb[0].mxu0
    %v797 = vadd.f32 0.0, %v796
    %v798 = vpop.f32.mrb[0].mxu0
    %799 = vmatprep.mubr.bf16.mxu0 0
    %800 = vmatmul.mubr.bf16.gmra.mrb[0].mxu0 %v730
    %v801 = vpop.f32.mrb[0].mxu0
    %v802 = vadd.f32 0.0, %v801
    %v803 = vpop.f32.mrb[0].mxu0
    %v804 = vpop.f32.mrb[0].mxu0
    %v805 = vadd.f32 0.0, %v804
    %v806 = vpop.f32.mrb[0].mxu0
    %807 = vmatprep.mubr.bf16.mxu0 0
    %808 = vmatmul.mubr.bf16.gmra.mrb[0].mxu0 %v733
    %v809 = vpop.f32.mrb[0].mxu0
    %v810 = vadd.f32 0.0, %v809
    %v811 = vpop.f32.mrb[0].mxu0
    %v812 = vpop.f32.mrb[0].mxu0
    %v813 = vadd.f32 0.0, %v812
    %v814 = vpop.f32.mrb[0].mxu0
    %815 = vmatprep.mubr.bf16.mxu0 0
    %816 = vmatmul.mubr.bf16.gmra.mrb[0].mxu0 %v736
    %v817 = vpop.f32.mrb[0].mxu0
    %v818 = vadd.f32 0.0, %v817
    %v819 = vpop.f32.mrb[0].mxu0
    %v820 = vpop.f32.mrb[0].mxu0
    %v821 = vadd.f32 0.0, %v820
    %v822 = vpop.f32.mrb[0].mxu0
    %823 = vmatprep.mubr.bf16.mxu0 0
    %824 = vmatmul.mubr.bf16.gmra.mrb[0].mxu0 %v739
    %v825 = vpop.f32.mrb[0].mxu0
    %v826 = vadd.f32 0.0, %v825
    %v827 = vpop.f32.mrb[0].mxu0
    %v828 = vpop.f32.mrb[0].mxu0
    %v829 = vadd.f32 0.0, %v828
    %v830 = vpop.f32.mrb[0].mxu0
    %831 = vmatprep.mubr.bf16.mxu0 0
    %832 = vmatmul.mubr.bf16.gmra.mrb[0].mxu0 %v742
    %v833 = vpop.f32.mrb[0].mxu0
    %v834 = vadd.f32 0.0, %v833
    %v835 = vpop.f32.mrb[0].mxu0
    %v836 = vpop.f32.mrb[0].mxu0
    %v837 = vadd.f32 0.0, %v836
    %v838 = vpop.f32.mrb[0].mxu0
    %839 = vmatprep.mubr.bf16.mxu0 0
    %840 = vmatmul.mubr.bf16.gmra.mrb[0].mxu0 %v745
    %v841 = vpop.f32.mrb[0].mxu0
    %v842 = vadd.f32 0.0, %v841
    %v843 = vpop.f32.mrb[0].mxu0
    %v844 = vpop.f32.mrb[0].mxu0
    %v845 = vadd.f32 0.0, %v844
    %v846 = vpop.f32.mrb[0].mxu0
    %847 = vdwg.mxu0
    %v848 = vmul.f32 %v52, %v786
    %v849 = vmul.f32 %v53, %v789
    %v850 = vmul.f32 %v54, %v794
    %v851 = vmul.f32 %v55, %v797
    %v852 = vmul.f32 %v56, %v802
    %v853 = vmul.f32 %v57, %v805
    %v854 = vmul.f32 %v58, %v810
    %v855 = vmul.f32 %v59, %v813
    %v856 = vadd.f32 %v848, %v818
    %v857 = vadd.f32 %v849, %v821
    %v858 = vadd.f32 %v850, %v826
    %v859 = vadd.f32 %v851, %v829
    %v860 = vadd.f32 %v852, %v834
    %v861 = vadd.f32 %v853, %v837
    %v862 = vadd.f32 %v854, %v842
    %v863 = vadd.f32 %v855, %v845
    %v864 = vmul.f32 %v856, 0.5
    %v865 = vmul.f32 %v857, 0.5
    %v866 = vmul.f32 %v858, 0.5
    %v867 = vmul.f32 %v859, 0.5
    %v868 = vmul.f32 %v860, 0.5
    %v869 = vmul.f32 %v861, 0.5
    %v870 = vmul.f32 %v862, 0.5
    %v871 = vmul.f32 %v863, 0.5
    %v872 = vtanh.pop %v864
    %v873 = vtanh.pop %v865
    %v874 = vtanh.pop %v866
    %v875 = vtanh.pop %v867
    %v876 = vtanh.pop %v868
    %v877 = vtanh.pop %v869
    %v878 = vtanh.pop %v870
    %v879 = vtanh.pop %v871
    %v880 = vmul.f32 %v872, 0.5
    %v881 = vmul.f32 %v873, 0.5
    %v882 = vmul.f32 %v874, 0.5
    %v883 = vmul.f32 %v875, 0.5
    %v884 = vmul.f32 %v876, 0.5
    %v885 = vmul.f32 %v877, 0.5
    %v886 = vmul.f32 %v878, 0.5
    %v887 = vmul.f32 %v879, 0.5
    %v888 = vadd.f32 %v880, 0.5
    %v889 = vadd.f32 %v881, 0.5
    %v890 = vadd.f32 %v882, 0.5
    %v891 = vadd.f32 %v883, 0.5
    %v892 = vadd.f32 %v884, 0.5
    %v893 = vadd.f32 %v885, 0.5
    %v894 = vadd.f32 %v886, 0.5
    %v895 = vadd.f32 %v887, 0.5
    %v896 = vmul.f32 %v856, %v888
    %v897 = vmul.f32 %v857, %v889
    %v898 = vmul.f32 %v858, %v890
    %v899 = vmul.f32 %v859, %v891
    %v900 = vmul.f32 %v860, %v892
    %v901 = vmul.f32 %v861, %v893
    %v902 = vmul.f32 %v862, %v894
    %v903 = vmul.f32 %v863, %v895
    %v904 = vld [vmem:[%s1] sm:$0xff]
    %v905 = vld [vmem:[%s1 + $0x8] sm:$0xff]
    %v906 = vld [vmem:[%s1 + $0x10] sm:$0xff]
    %v907 = vld [vmem:[%s1 + $0x18] sm:$0xff]
    %v908 = vld [vmem:[%s1 + $0x20] sm:$0xff]
    %v909 = vld [vmem:[%s1 + $0x28] sm:$0xff]
    %v910 = vld [vmem:[%s1 + $0x30] sm:$0xff]
    %v911 = vld [vmem:[%s1 + $0x38] sm:$0xff]
    %v912 = vld [vmem:[%s1 + $0x40] sm:$0xff]
    %v913 = vld [vmem:[%s1 + $0x48] sm:$0xff]
    %v914 = vld [vmem:[%s1 + $0x50] sm:$0xff]
    %v915 = vld [vmem:[%s1 + $0x58] sm:$0xff]
    %v916 = vld [vmem:[%s1 + $0x60] sm:$0xff]
    %v917 = vld [vmem:[%s1 + $0x68] sm:$0xff]
    %v918 = vld [vmem:[%s1 + $0x70] sm:$0xff]
    %v919 = vld [vmem:[%s1 + $0x78] sm:$0xff]
    %920 = vrot.lane.b32.xlu0 %v896, 1
    %v921 = vpop.permute.xlu0 %920
    %922 = vrot.lane.b32.xlu0 %v897, 1
    %v923 = vpop.permute.xlu0 %922
    %924 = vrot.lane.b32.xlu0 %v898, 1
    %v925 = vpop.permute.xlu0 %924
    %926 = vrot.lane.b32.xlu0 %v899, 1
    %v927 = vpop.permute.xlu0 %926
    %928 = vrot.lane.b32.xlu0 %v900, 1
    %v929 = vpop.permute.xlu0 %928
    %930 = vrot.lane.b32.xlu0 %v901, 1
    %v931 = vpop.permute.xlu0 %930
    %932 = vrot.lane.b32.xlu0 %v902, 1
    %v933 = vpop.permute.xlu0 %932
    %934 = vrot.lane.b32.xlu0 %v903, 1
    %v935 = vpop.permute.xlu0 %934
    %v937 = vlaneseq
    %v938 = vshrl.u32 %v937, 7
    %v939 = vsub.s32 0, %v938
    %v940 = vrot.slane %v77, %v939
    %v942 = vmul.f32 %v921, %v940
    %v943 = vmul.f32 %v923, %v940
    %v944 = vmul.f32 %v925, %v940
    %v945 = vmul.f32 %v927, %v940
    %v946 = vmul.f32 %v929, %v940
    %v947 = vmul.f32 %v931, %v940
    %v948 = vmul.f32 %v933, %v940
    %v949 = vmul.f32 %v935, %v940
    %v950 = vpack.c.bf16 %v943, %v942
    %v951 = vpack.c.bf16 %v945, %v944
    %v952 = vpack.c.bf16 %v947, %v946
    %v953 = vpack.c.bf16 %v949, %v948
    %954 = vrot.lane.b32.xlu0 %v896, 127
    %v955 = vpop.permute.xlu0 %954
    %956 = vrot.lane.b32.xlu0 %v897, 127
    %v957 = vpop.permute.xlu0 %956
    %958 = vrot.lane.b32.xlu0 %v898, 127
    %v959 = vpop.permute.xlu0 %958
    %960 = vrot.lane.b32.xlu0 %v899, 127
    %v961 = vpop.permute.xlu0 %960
    %962 = vrot.lane.b32.xlu0 %v900, 127
    %v963 = vpop.permute.xlu0 %962
    %964 = vrot.lane.b32.xlu0 %v901, 127
    %v965 = vpop.permute.xlu0 %964
    %966 = vrot.lane.b32.xlu0 %v902, 127
    %v967 = vpop.permute.xlu0 %966
    %968 = vrot.lane.b32.xlu0 %v903, 127
    %v969 = vpop.permute.xlu0 %968
    %v971 = vlaneseq
    %v972 = vshrl.u32 %v971, 7
    %v973 = vsub.s32 0, %v972
    %v974 = vrot.slane %v78, %v973
    %v976 = vmul.f32 %v955, %v974
    %v977 = vmul.f32 %v957, %v974
    %v978 = vmul.f32 %v959, %v974
    %v979 = vmul.f32 %v961, %v974
    %v980 = vmul.f32 %v963, %v974
    %v981 = vmul.f32 %v965, %v974
    %v982 = vmul.f32 %v967, %v974
    %v983 = vmul.f32 %v969, %v974
    %v984 = vpack.c.bf16 %v977, %v976
    %v985 = vpack.c.bf16 %v979, %v978
    %v986 = vpack.c.bf16 %v981, %v980
    %v987 = vpack.c.bf16 %v983, %v982
    %v988 = vpack.c.bf16 %v897, %v896
    %v989 = vpack.c.bf16 %v899, %v898
    %v990 = vpack.c.bf16 %v901, %v900
    %v991 = vpack.c.bf16 %v903, %v902
    %v992 = vld [vmem:[%s2] sm:$0xff]
    %v993 = vld [vmem:[%s2 + $0x8] sm:$0xff]
    %v994 = vld [vmem:[%s2 + $0x10] sm:$0xff]
    %v995 = vld [vmem:[%s2 + $0x18] sm:$0xff]
    %v996 = vld [vmem:[%s2 + $0x20] sm:$0xff]
    %v997 = vld [vmem:[%s2 + $0x28] sm:$0xff]
    %v998 = vld [vmem:[%s2 + $0x30] sm:$0xff]
    %v999 = vld [vmem:[%s2 + $0x38] sm:$0xff]
    %v1000 = vld [vmem:[%s2 + $0x40] sm:$0xff]
    %v1001 = vld [vmem:[%s2 + $0x48] sm:$0xff]
    %v1002 = vld [vmem:[%s2 + $0x50] sm:$0xff]
    %v1003 = vld [vmem:[%s2 + $0x58] sm:$0xff]
    %v1004 = vld [vmem:[%s2 + $0x60] sm:$0xff]
    %v1005 = vld [vmem:[%s2 + $0x68] sm:$0xff]
    %v1006 = vld [vmem:[%s2 + $0x70] sm:$0xff]
    %v1007 = vld [vmem:[%s2 + $0x78] sm:$0xff]
    %1009 = vset.pattern.permute.xlu0 0
    %1010 = vperm.xlu0 %1009, %v992
    %v1011 = vpop.permute.xlu0 %1010
    %1014 = vset.pattern.permute.xlu0 0
    %1015 = vperm.xlu0 %1014, %v993
    %v1016 = vpop.permute.xlu0 %1015
    %1019 = vset.pattern.permute.xlu0 0
    %1020 = vperm.xlu0 %1019, %v994
    %v1021 = vpop.permute.xlu0 %1020
    %1024 = vset.pattern.permute.xlu0 0
    %1025 = vperm.xlu0 %1024, %v995
    %v1026 = vpop.permute.xlu0 %1025
    %1029 = vset.pattern.permute.xlu0 0
    %1030 = vperm.xlu0 %1029, %v996
    %v1031 = vpop.permute.xlu0 %1030
    %1034 = vset.pattern.permute.xlu0 0
    %1035 = vperm.xlu0 %1034, %v997
    %v1036 = vpop.permute.xlu0 %1035
    %1039 = vset.pattern.permute.xlu0 0
    %1040 = vperm.xlu0 %1039, %v998
    %v1041 = vpop.permute.xlu0 %1040
    %1044 = vset.pattern.permute.xlu0 0
    %1045 = vperm.xlu0 %1044, %v999
    %v1046 = vpop.permute.xlu0 %1045
    %1049 = vset.pattern.permute.xlu0 0
    %1050 = vperm.xlu0 %1049, %v1000
    %v1051 = vpop.permute.xlu0 %1050
    %1054 = vset.pattern.permute.xlu0 0
    %1055 = vperm.xlu0 %1054, %v1001
    %v1056 = vpop.permute.xlu0 %1055
    %1059 = vset.pattern.permute.xlu0 0
    %1060 = vperm.xlu0 %1059, %v1002
    %v1061 = vpop.permute.xlu0 %1060
    %1064 = vset.pattern.permute.xlu0 0
    %1065 = vperm.xlu0 %1064, %v1003
    %v1066 = vpop.permute.xlu0 %1065
    %1069 = vset.pattern.permute.xlu0 0
    %1070 = vperm.xlu0 %1069, %v1004
    %v1071 = vpop.permute.xlu0 %1070
    %1074 = vset.pattern.permute.xlu0 0
    %1075 = vperm.xlu0 %1074, %v1005
    %v1076 = vpop.permute.xlu0 %1075
    %1079 = vset.pattern.permute.xlu0 0
    %1080 = vperm.xlu0 %1079, %v1006
    %v1081 = vpop.permute.xlu0 %1080
    %1084 = vset.pattern.permute.xlu0 0
    %1085 = vperm.xlu0 %1084, %v1007
    %v1086 = vpop.permute.xlu0 %1085
    %v1104 = vunpack.c.l.b16 %v904
    %v1105 = vunpack.c.h.b16 %v904
    %v1106 = vunpack.c.l.b16 %v905
    %v1107 = vunpack.c.h.b16 %v905
    %v1108 = vunpack.c.l.b16 %v906
    %v1109 = vunpack.c.h.b16 %v906
    %v1110 = vunpack.c.l.b16 %v907
    %v1111 = vunpack.c.h.b16 %v907
    %v1112 = vunpack.c.l.b16 %v908
    %v1113 = vunpack.c.h.b16 %v908
    %v1114 = vunpack.c.l.b16 %v909
    %v1115 = vunpack.c.h.b16 %v909
    %v1116 = vunpack.c.l.b16 %v910
    %v1117 = vunpack.c.h.b16 %v910
    %v1118 = vunpack.c.l.b16 %v911
    %v1119 = vunpack.c.h.b16 %v911
    %v1120 = vunpack.c.l.b16 %v912
    %v1121 = vunpack.c.h.b16 %v912
    %v1122 = vunpack.c.l.b16 %v913
    %v1123 = vunpack.c.h.b16 %v913
    %v1124 = vunpack.c.l.b16 %v914
    %v1125 = vunpack.c.h.b16 %v914
    %v1126 = vunpack.c.l.b16 %v915
    %v1127 = vunpack.c.h.b16 %v915
    %v1128 = vunpack.c.l.b16 %v916
    %v1129 = vunpack.c.h.b16 %v916
    %v1130 = vunpack.c.l.b16 %v917
    %v1131 = vunpack.c.h.b16 %v917
    %v1132 = vunpack.c.l.b16 %v918
    %v1133 = vunpack.c.h.b16 %v918
    %v1134 = vunpack.c.l.b16 %v919
    %v1135 = vunpack.c.h.b16 %v919
    %v1136 = vpack.c.b16 %v1106, %v1104
    %v1137 = vpack.c.b16 %v1107, %v1105
    %v1138 = vpack.c.b16 %v1110, %v1108
    %v1139 = vpack.c.b16 %v1111, %v1109
    %v1140 = vpack.c.b16 %v1114, %v1112
    %v1141 = vpack.c.b16 %v1115, %v1113
    %v1142 = vpack.c.b16 %v1118, %v1116
    %v1143 = vpack.c.b16 %v1119, %v1117
    %v1144 = vpack.c.b16 %v1122, %v1120
    %v1145 = vpack.c.b16 %v1123, %v1121
    %v1146 = vpack.c.b16 %v1126, %v1124
    %v1147 = vpack.c.b16 %v1127, %v1125
    %v1148 = vpack.c.b16 %v1130, %v1128
    %v1149 = vpack.c.b16 %v1131, %v1129
    %v1150 = vpack.c.b16 %v1134, %v1132
    %v1151 = vpack.c.b16 %v1135, %v1133
    %v1161 = vsel %vm321, %v1137, 0
    %v1164 = vsel %vm321, %v1139, 0
    %v1167 = vsel %vm321, %v1141, 0
    %v1170 = vsel %vm321, %v1143, 0
    %v1173 = vsel %vm321, %v1145, 0
    %v1176 = vsel %vm321, %v1147, 0
    %v1179 = vsel %vm321, %v1149, 0
    %v1182 = vsel %vm321, %v1151, 0
    %1184 = vmatprep.subr.bf16.mxu0 0
    %1185 = vmatpush1.bf16.msra.mxu0 %v950
    %1186 = vmatprep.subr.bf16.mxu0 0
    %1187 = vmatpush1.bf16.msra.mxu0 %v951
    %1188 = vmatprep.subr.bf16.mxu0 0
    %1189 = vmatpush1.bf16.msra.mxu0 %v952
    %1190 = vmatprep.subr.bf16.mxu0 0
    %1191 = vmatpush1.bf16.msra.mxu0 %v953
    %1192 = vmatprep.subr.bf16.mxu0 0
    %1193 = vmatpush1.bf16.msra.mxu0 %v988
    %1194 = vmatprep.subr.bf16.mxu0 0
    %1195 = vmatpush1.bf16.msra.mxu0 %v989
    %1196 = vmatprep.subr.bf16.mxu0 0
    %1197 = vmatpush1.bf16.msra.mxu0 %v990
    %1198 = vmatprep.subr.bf16.mxu0 0
    %1199 = vmatpush1.bf16.msra.mxu0 %v991
    %1200 = vmatprep.subr.bf16.mxu0 0
    %1201 = vmatpush1.bf16.msra.mxu0 %v984
    %1202 = vmatprep.subr.bf16.mxu0 0
    %1203 = vmatpush1.bf16.msra.mxu0 %v985
    %1204 = vmatprep.subr.bf16.mxu0 0
    %1205 = vmatpush1.bf16.msra.mxu0 %v986
    %1206 = vmatprep.subr.bf16.mxu0 0
    %1207 = vmatpush1.bf16.msra.mxu0 %v987
    %1208 = vmatprep.subr.bf16.mxu0 0
    %1209 = vmatpush1.bf16.msra.mxu0 0
    %1210 = vmatprep.subr.bf16.mxu0 0
    %1211 = vmatpush1.bf16.msra.mxu0 0
    %1212 = vmatprep.subr.bf16.mxu0 0
    %1213 = vmatpush1.bf16.msra.mxu0 0
    %1214 = vmatprep.subr.bf16.mxu0 0
    %1215 = vmatpush1.bf16.msra.mxu0 0
    %1216 = vmatprep.mubr.bf16.mxu0 %v1161
    %1217 = vmatmul.mubr.bf16.gmra.mrb[0].mxu0 %v1136
    %v1218 = vpop.f32.mrb[0].mxu0
    %v1219 = vadd.f32 %v1011, %v1218
    %v1220 = vpop.f32.mrb[0].mxu0
    %v1221 = vpop.f32.mrb[0].mxu0
    %v1222 = vadd.f32 %v1016, %v1221
    %v1223 = vpop.f32.mrb[0].mxu0
    %1224 = vmatprep.mubr.bf16.mxu0 %v1164
    %1225 = vmatmul.mubr.bf16.gmra.mrb[0].mxu0 %v1138
    %v1226 = vpop.f32.mrb[0].mxu0
    %v1227 = vadd.f32 %v1021, %v1226
    %v1228 = vpop.f32.mrb[0].mxu0
    %v1229 = vpop.f32.mrb[0].mxu0
    %v1230 = vadd.f32 %v1026, %v1229
    %v1231 = vpop.f32.mrb[0].mxu0
    %1232 = vmatprep.mubr.bf16.mxu0 %v1167
    %1233 = vmatmul.mubr.bf16.gmra.mrb[0].mxu0 %v1140
    %v1234 = vpop.f32.mrb[0].mxu0
    %v1235 = vadd.f32 %v1031, %v1234
    %v1236 = vpop.f32.mrb[0].mxu0
    %v1237 = vpop.f32.mrb[0].mxu0
    %v1238 = vadd.f32 %v1036, %v1237
    %v1239 = vpop.f32.mrb[0].mxu0
    %1240 = vmatprep.mubr.bf16.mxu0 %v1170
    %1241 = vmatmul.mubr.bf16.gmra.mrb[0].mxu0 %v1142
    %v1242 = vpop.f32.mrb[0].mxu0
    %v1243 = vadd.f32 %v1041, %v1242
    %v1244 = vpop.f32.mrb[0].mxu0
    %v1245 = vpop.f32.mrb[0].mxu0
    %v1246 = vadd.f32 %v1046, %v1245
    %v1247 = vpop.f32.mrb[0].mxu0
    %1248 = vmatprep.mubr.bf16.mxu0 %v1173
    %1249 = vmatmul.mubr.bf16.gmra.mrb[0].mxu0 %v1144
    %v1250 = vpop.f32.mrb[0].mxu0
    %v1251 = vadd.f32 %v1051, %v1250
    %v1252 = vpop.f32.mrb[0].mxu0
    %v1253 = vpop.f32.mrb[0].mxu0
    %v1254 = vadd.f32 %v1056, %v1253
    %v1255 = vpop.f32.mrb[0].mxu0
    %1256 = vmatprep.mubr.bf16.mxu0 %v1176
    %1257 = vmatmul.mubr.bf16.gmra.mrb[0].mxu0 %v1146
    %v1258 = vpop.f32.mrb[0].mxu0
    %v1259 = vadd.f32 %v1061, %v1258
    %v1260 = vpop.f32.mrb[0].mxu0
    %v1261 = vpop.f32.mrb[0].mxu0
    %v1262 = vadd.f32 %v1066, %v1261
    %v1263 = vpop.f32.mrb[0].mxu0
    %1264 = vmatprep.mubr.bf16.mxu0 %v1179
    %1265 = vmatmul.mubr.bf16.gmra.mrb[0].mxu0 %v1148
    %v1266 = vpop.f32.mrb[0].mxu0
    %v1267 = vadd.f32 %v1071, %v1266
    %v1268 = vpop.f32.mrb[0].mxu0
    %v1269 = vpop.f32.mrb[0].mxu0
    %v1270 = vadd.f32 %v1076, %v1269
    %v1271 = vpop.f32.mrb[0].mxu0
    %1272 = vmatprep.mubr.bf16.mxu0 %v1182
    %1273 = vmatmul.mubr.bf16.gmra.mrb[0].mxu0 %v1150
    %v1274 = vpop.f32.mrb[0].mxu0
    %v1275 = vadd.f32 %v1081, %v1274
    %v1276 = vpop.f32.mrb[0].mxu0
    %v1277 = vpop.f32.mrb[0].mxu0
    %v1278 = vadd.f32 %v1086, %v1277
    %v1279 = vpop.f32.mrb[0].mxu0
    %1280 = vdwg.mxu0
    %v1281 = vld [vmem:[%s8] sm:$0xff]
    %v1282 = vld [vmem:[%s8 + $0x8] sm:$0xff]
    %v1283 = vld [vmem:[%s8 + $0x10] sm:$0xff]
    %v1284 = vld [vmem:[%s8 + $0x18] sm:$0xff]
    %v1285 = vld [vmem:[%s8 + $0x20] sm:$0xff]
    %v1286 = vld [vmem:[%s8 + $0x28] sm:$0xff]
    %v1287 = vld [vmem:[%s8 + $0x30] sm:$0xff]
    %v1288 = vld [vmem:[%s8 + $0x38] sm:$0xff]
    %v1289 = vld [vmem:[%s8 + $0x40] sm:$0xff]
    %v1290 = vld [vmem:[%s8 + $0x48] sm:$0xff]
    %v1291 = vld [vmem:[%s8 + $0x50] sm:$0xff]
    %v1292 = vld [vmem:[%s8 + $0x58] sm:$0xff]
    %v1293 = vld [vmem:[%s8 + $0x60] sm:$0xff]
    %v1294 = vld [vmem:[%s8 + $0x68] sm:$0xff]
    %v1295 = vld [vmem:[%s8 + $0x70] sm:$0xff]
    %v1296 = vld [vmem:[%s8 + $0x78] sm:$0xff]
    %v1297 = vld [vmem:[%s9] sm:$0xff]
    %v1298 = vld [vmem:[%s9 + $0x8] sm:$0xff]
    %v1299 = vld [vmem:[%s9 + $0x10] sm:$0xff]
    %v1300 = vld [vmem:[%s9 + $0x18] sm:$0xff]
    %v1301 = vld [vmem:[%s9 + $0x20] sm:$0xff]
    %v1302 = vld [vmem:[%s9 + $0x28] sm:$0xff]
    %v1303 = vld [vmem:[%s9 + $0x30] sm:$0xff]
    %v1304 = vld [vmem:[%s9 + $0x38] sm:$0xff]
    %v1305 = vld [vmem:[%s9 + $0x40] sm:$0xff]
    %v1306 = vld [vmem:[%s9 + $0x48] sm:$0xff]
    %v1307 = vld [vmem:[%s9 + $0x50] sm:$0xff]
    %v1308 = vld [vmem:[%s9 + $0x58] sm:$0xff]
    %v1309 = vld [vmem:[%s9 + $0x60] sm:$0xff]
    %v1310 = vld [vmem:[%s9 + $0x68] sm:$0xff]
    %v1311 = vld [vmem:[%s9 + $0x70] sm:$0xff]
    %v1312 = vld [vmem:[%s9 + $0x78] sm:$0xff]
    %v1313 = vmul.f32 %v1219, %v1219
    %v1314 = vmul.f32 %v1222, %v1222
    %v1315 = vmul.f32 %v1227, %v1227
    %v1316 = vmul.f32 %v1230, %v1230
    %v1317 = vmul.f32 %v1235, %v1235
    %v1318 = vmul.f32 %v1238, %v1238
    %v1319 = vmul.f32 %v1243, %v1243
    %v1320 = vmul.f32 %v1246, %v1246
    %v1321 = vmul.f32 %v1251, %v1251
    %v1322 = vmul.f32 %v1254, %v1254
    %v1323 = vmul.f32 %v1259, %v1259
    %v1324 = vmul.f32 %v1262, %v1262
    %v1325 = vmul.f32 %v1267, %v1267
    %v1326 = vmul.f32 %v1270, %v1270
    %v1327 = vmul.f32 %v1275, %v1275
    %v1328 = vmul.f32 %v1278, %v1278
    %v1329 = vpack.c.bf16 %v1222, %v1219
    %v1330 = vpack.c.bf16 %v1230, %v1227
    %v1331 = vpack.c.bf16 %v1238, %v1235
    %v1332 = vpack.c.bf16 %v1246, %v1243
    %v1333 = vpack.c.bf16 %v1254, %v1251
    %v1334 = vpack.c.bf16 %v1262, %v1259
    %v1335 = vpack.c.bf16 %v1270, %v1267
    %v1336 = vpack.c.bf16 %v1278, %v1275
    %v1337 = vpack.c.bf16 %v1314, %v1313
    %v1338 = vpack.c.bf16 %v1316, %v1315
    %v1339 = vpack.c.bf16 %v1318, %v1317
    %v1340 = vpack.c.bf16 %v1320, %v1319
    %v1341 = vpack.c.bf16 %v1322, %v1321
    %v1342 = vpack.c.bf16 %v1324, %v1323
    %v1343 = vpack.c.bf16 %v1326, %v1325
    %v1344 = vpack.c.bf16 %v1328, %v1327
    %1345 = vmatprep.subr.bf16.mxu0 0
    %1346 = vmatpush1.bf16.msra.mxu0 %v143
    %1347 = vmatprep.subr.bf16.mxu0 0
    %1348 = vmatpush1.bf16.msra.mxu0 %v144
    %1349 = vmatprep.subr.bf16.mxu0 0
    %1350 = vmatpush1.bf16.msra.mxu0 %v145
    %1351 = vmatprep.subr.bf16.mxu0 0
    %1352 = vmatpush1.bf16.msra.mxu0 %v146
    %1353 = vmatprep.subr.bf16.mxu0 0
    %1354 = vmatpush1.bf16.msra.mxu0 %v147
    %1355 = vmatprep.subr.bf16.mxu0 0
    %1356 = vmatpush1.bf16.msra.mxu0 %v148
    %1357 = vmatprep.subr.bf16.mxu0 0
    %1358 = vmatpush1.bf16.msra.mxu0 %v149
    %1359 = vmatprep.subr.bf16.mxu0 0
    %1360 = vmatpush1.bf16.msra.mxu0 %v150
    %1361 = vmatprep.subr.bf16.mxu0 0
    %1362 = vmatpush1.bf16.msra.mxu0 0
    %1363 = vmatprep.subr.bf16.mxu0 0
    %1364 = vmatpush1.bf16.msra.mxu0 0
    %1365 = vmatprep.subr.bf16.mxu0 0
    %1366 = vmatpush1.bf16.msra.mxu0 0
    %1367 = vmatprep.subr.bf16.mxu0 0
    %1368 = vmatpush1.bf16.msra.mxu0 0
    %1369 = vmatprep.subr.bf16.mxu0 0
    %1370 = vmatpush1.bf16.msra.mxu0 0
    %1371 = vmatprep.subr.bf16.mxu0 0
    %1372 = vmatpush1.bf16.msra.mxu0 0
    %1373 = vmatprep.subr.bf16.mxu0 0
    %1374 = vmatpush1.bf16.msra.mxu0 0
    %1375 = vmatprep.subr.bf16.mxu0 0
    %1376 = vmatpush1.bf16.msra.mxu0 0
    %1377 = vmatprep.mubr.bf16.mxu0 0
    %1378 = vmatmul.mubr.bf16.gmra.mrb[0].mxu0 %v1329
    %v1379 = vpop.f32.mrb[0].mxu0
    %v1380 = vadd.f32 0.0, %v1379
    %v1381 = vpop.f32.mrb[0].mxu0
    %v1382 = vpop.f32.mrb[0].mxu0
    %v1383 = vadd.f32 0.0, %v1382
    %v1384 = vpop.f32.mrb[0].mxu0
    %1385 = vmatprep.mubr.bf16.mxu0 0
    %1386 = vmatmul.mubr.bf16.gmra.mrb[0].mxu0 %v1330
    %v1387 = vpop.f32.mrb[0].mxu0
    %v1388 = vadd.f32 0.0, %v1387
    %v1389 = vpop.f32.mrb[0].mxu0
    %v1390 = vpop.f32.mrb[0].mxu0
    %v1391 = vadd.f32 0.0, %v1390
    %v1392 = vpop.f32.mrb[0].mxu0
    %1393 = vmatprep.mubr.bf16.mxu0 0
    %1394 = vmatmul.mubr.bf16.gmra.mrb[0].mxu0 %v1331
    %v1395 = vpop.f32.mrb[0].mxu0
    %v1396 = vadd.f32 0.0, %v1395
    %v1397 = vpop.f32.mrb[0].mxu0
    %v1398 = vpop.f32.mrb[0].mxu0
    %v1399 = vadd.f32 0.0, %v1398
    %v1400 = vpop.f32.mrb[0].mxu0
    %1401 = vmatprep.mubr.bf16.mxu0 0
    %1402 = vmatmul.mubr.bf16.gmra.mrb[0].mxu0 %v1332
    %v1403 = vpop.f32.mrb[0].mxu0
    %v1404 = vadd.f32 0.0, %v1403
    %v1405 = vpop.f32.mrb[0].mxu0
    %v1406 = vpop.f32.mrb[0].mxu0
    %v1407 = vadd.f32 0.0, %v1406
    %v1408 = vpop.f32.mrb[0].mxu0
    %1409 = vmatprep.mubr.bf16.mxu0 0
    %1410 = vmatmul.mubr.bf16.gmra.mrb[0].mxu0 %v1333
    %v1411 = vpop.f32.mrb[0].mxu0
    %v1412 = vadd.f32 0.0, %v1411
    %v1413 = vpop.f32.mrb[0].mxu0
    %v1414 = vpop.f32.mrb[0].mxu0
    %v1415 = vadd.f32 0.0, %v1414
    %v1416 = vpop.f32.mrb[0].mxu0
    %1417 = vmatprep.mubr.bf16.mxu0 0
    %1418 = vmatmul.mubr.bf16.gmra.mrb[0].mxu0 %v1334
    %v1419 = vpop.f32.mrb[0].mxu0
    %v1420 = vadd.f32 0.0, %v1419
    %v1421 = vpop.f32.mrb[0].mxu0
    %v1422 = vpop.f32.mrb[0].mxu0
    %v1423 = vadd.f32 0.0, %v1422
    %v1424 = vpop.f32.mrb[0].mxu0
    %1425 = vmatprep.mubr.bf16.mxu0 0
    %1426 = vmatmul.mubr.bf16.gmra.mrb[0].mxu0 %v1335
    %v1427 = vpop.f32.mrb[0].mxu0
    %v1428 = vadd.f32 0.0, %v1427
    %v1429 = vpop.f32.mrb[0].mxu0
    %v1430 = vpop.f32.mrb[0].mxu0
    %v1431 = vadd.f32 0.0, %v1430
    %v1432 = vpop.f32.mrb[0].mxu0
    %1433 = vmatprep.mubr.bf16.mxu0 0
    %1434 = vmatmul.mubr.bf16.gmra.mrb[0].mxu0 %v1336
    %v1435 = vpop.f32.mrb[0].mxu0
    %v1436 = vadd.f32 0.0, %v1435
    %v1437 = vpop.f32.mrb[0].mxu0
    %v1438 = vpop.f32.mrb[0].mxu0
    %v1439 = vadd.f32 0.0, %v1438
    %v1440 = vpop.f32.mrb[0].mxu0
    %1441 = vmatprep.mubr.bf16.mxu0 0
    %1442 = vmatmul.mubr.bf16.gmra.mrb[0].mxu0 %v1337
    %v1443 = vpop.f32.mrb[0].mxu0
    %v1444 = vadd.f32 0.0, %v1443
    %v1445 = vpop.f32.mrb[0].mxu0
    %v1446 = vpop.f32.mrb[0].mxu0
    %v1447 = vadd.f32 0.0, %v1446
    %v1448 = vpop.f32.mrb[0].mxu0
    %1449 = vmatprep.mubr.bf16.mxu0 0
    %1450 = vmatmul.mubr.bf16.gmra.mrb[0].mxu0 %v1338
    %v1451 = vpop.f32.mrb[0].mxu0
    %v1452 = vadd.f32 0.0, %v1451
    %v1453 = vpop.f32.mrb[0].mxu0
    %v1454 = vpop.f32.mrb[0].mxu0
    %v1455 = vadd.f32 0.0, %v1454
    %v1456 = vpop.f32.mrb[0].mxu0
    %1457 = vmatprep.mubr.bf16.mxu0 0
    %1458 = vmatmul.mubr.bf16.gmra.mrb[0].mxu0 %v1339
    %v1459 = vpop.f32.mrb[0].mxu0
    %v1460 = vadd.f32 0.0, %v1459
    %v1461 = vpop.f32.mrb[0].mxu0
    %v1462 = vpop.f32.mrb[0].mxu0
    %v1463 = vadd.f32 0.0, %v1462
    %v1464 = vpop.f32.mrb[0].mxu0
    %1465 = vmatprep.mubr.bf16.mxu0 0
    %1466 = vmatmul.mubr.bf16.gmra.mrb[0].mxu0 %v1340
    %v1467 = vpop.f32.mrb[0].mxu0
    %v1468 = vadd.f32 0.0, %v1467
    %v1469 = vpop.f32.mrb[0].mxu0
    %v1470 = vpop.f32.mrb[0].mxu0
    %v1471 = vadd.f32 0.0, %v1470
    %v1472 = vpop.f32.mrb[0].mxu0
    %1473 = vmatprep.mubr.bf16.mxu0 0
    %1474 = vmatmul.mubr.bf16.gmra.mrb[0].mxu0 %v1341
    %v1475 = vpop.f32.mrb[0].mxu0
    %v1476 = vadd.f32 0.0, %v1475
    %v1477 = vpop.f32.mrb[0].mxu0
    %v1478 = vpop.f32.mrb[0].mxu0
    %v1479 = vadd.f32 0.0, %v1478
    %v1480 = vpop.f32.mrb[0].mxu0
    %1481 = vmatprep.mubr.bf16.mxu0 0
    %1482 = vmatmul.mubr.bf16.gmra.mrb[0].mxu0 %v1342
    %v1483 = vpop.f32.mrb[0].mxu0
    %v1484 = vadd.f32 0.0, %v1483
    %v1485 = vpop.f32.mrb[0].mxu0
    %v1486 = vpop.f32.mrb[0].mxu0
    %v1487 = vadd.f32 0.0, %v1486
    %v1488 = vpop.f32.mrb[0].mxu0
    %1489 = vmatprep.mubr.bf16.mxu0 0
    %1490 = vmatmul.mubr.bf16.gmra.mrb[0].mxu0 %v1343
    %v1491 = vpop.f32.mrb[0].mxu0
    %v1492 = vadd.f32 0.0, %v1491
    %v1493 = vpop.f32.mrb[0].mxu0
    %v1494 = vpop.f32.mrb[0].mxu0
    %v1495 = vadd.f32 0.0, %v1494
    %v1496 = vpop.f32.mrb[0].mxu0
    %1497 = vmatprep.mubr.bf16.mxu0 0
    %1498 = vmatmul.mubr.bf16.gmra.mrb[0].mxu0 %v1344
    %v1499 = vpop.f32.mrb[0].mxu0
    %v1500 = vadd.f32 0.0, %v1499
    %v1501 = vpop.f32.mrb[0].mxu0
    %v1502 = vpop.f32.mrb[0].mxu0
    %v1503 = vadd.f32 0.0, %v1502
    %v1504 = vpop.f32.mrb[0].mxu0
    %1505 = vdwg.mxu0
    %v1506 = vmul.f32 %v1380, 0.0625
    %v1507 = vmul.f32 %v1383, 0.0625
    %v1508 = vmul.f32 %v1388, 0.0625
    %v1509 = vmul.f32 %v1391, 0.0625
    %v1510 = vmul.f32 %v1396, 0.0625
    %v1511 = vmul.f32 %v1399, 0.0625
    %v1512 = vmul.f32 %v1404, 0.0625
    %v1513 = vmul.f32 %v1407, 0.0625
    %v1514 = vmul.f32 %v1412, 0.0625
    %v1515 = vmul.f32 %v1415, 0.0625
    %v1516 = vmul.f32 %v1420, 0.0625
    %v1517 = vmul.f32 %v1423, 0.0625
    %v1518 = vmul.f32 %v1428, 0.0625
    %v1519 = vmul.f32 %v1431, 0.0625
    %v1520 = vmul.f32 %v1436, 0.0625
    %v1521 = vmul.f32 %v1439, 0.0625
    %v1522 = vmul.f32 %v1444, 0.0625
    %v1523 = vmul.f32 %v1447, 0.0625
    %v1524 = vmul.f32 %v1452, 0.0625
    %v1525 = vmul.f32 %v1455, 0.0625
    %v1526 = vmul.f32 %v1460, 0.0625
    %v1527 = vmul.f32 %v1463, 0.0625
    %v1528 = vmul.f32 %v1468, 0.0625
    %v1529 = vmul.f32 %v1471, 0.0625
    %v1530 = vmul.f32 %v1476, 0.0625
    %v1531 = vmul.f32 %v1479, 0.0625
    %v1532 = vmul.f32 %v1484, 0.0625
    %v1533 = vmul.f32 %v1487, 0.0625
    %v1534 = vmul.f32 %v1492, 0.0625
    %v1535 = vmul.f32 %v1495, 0.0625
    %v1536 = vmul.f32 %v1500, 0.0625
    %v1537 = vmul.f32 %v1503, 0.0625
    %1554 = vrot.lane.b32.xlu0 %v1522, 8
    %v1555 = vpop.permute.xlu0 %1554
    %1556 = vrot.lane.b32.xlu0 %v1523, 8
    %v1557 = vpop.permute.xlu0 %1556
    %1558 = vrot.lane.b32.xlu0 %v1524, 8
    %v1559 = vpop.permute.xlu0 %1558
    %1560 = vrot.lane.b32.xlu0 %v1525, 8
    %v1561 = vpop.permute.xlu0 %1560
    %1562 = vrot.lane.b32.xlu0 %v1526, 8
    %v1563 = vpop.permute.xlu0 %1562
    %1564 = vrot.lane.b32.xlu0 %v1527, 8
    %v1565 = vpop.permute.xlu0 %1564
    %1566 = vrot.lane.b32.xlu0 %v1528, 8
    %v1567 = vpop.permute.xlu0 %1566
    %1568 = vrot.lane.b32.xlu0 %v1529, 8
    %v1569 = vpop.permute.xlu0 %1568
    %1570 = vrot.lane.b32.xlu0 %v1530, 8
    %v1571 = vpop.permute.xlu0 %1570
    %1572 = vrot.lane.b32.xlu0 %v1531, 8
    %v1573 = vpop.permute.xlu0 %1572
    %1574 = vrot.lane.b32.xlu0 %v1532, 8
    %v1575 = vpop.permute.xlu0 %1574
    %1576 = vrot.lane.b32.xlu0 %v1533, 8
    %v1577 = vpop.permute.xlu0 %1576
    %1578 = vrot.lane.b32.xlu0 %v1534, 8
    %v1579 = vpop.permute.xlu0 %1578
    %1580 = vrot.lane.b32.xlu0 %v1535, 8
    %v1581 = vpop.permute.xlu0 %1580
    %1582 = vrot.lane.b32.xlu0 %v1536, 8
    %v1583 = vpop.permute.xlu0 %1582
    %1584 = vrot.lane.b32.xlu0 %v1537, 8
    %v1585 = vpop.permute.xlu0 %1584
    %v1602 = vsel %vm304, %v1506, %v1555
    %v1603 = vsel %vm304, %v1507, %v1557
    %v1604 = vsel %vm304, %v1508, %v1559
    %v1605 = vsel %vm304, %v1509, %v1561
    %v1606 = vsel %vm304, %v1510, %v1563
    %v1607 = vsel %vm304, %v1511, %v1565
    %v1608 = vsel %vm304, %v1512, %v1567
    %v1609 = vsel %vm304, %v1513, %v1569
    %v1610 = vsel %vm304, %v1514, %v1571
    %v1611 = vsel %vm304, %v1515, %v1573
    %v1612 = vsel %vm304, %v1516, %v1575
    %v1613 = vsel %vm304, %v1517, %v1577
    %v1614 = vsel %vm304, %v1518, %v1579
    %v1615 = vsel %vm304, %v1519, %v1581
    %v1616 = vsel %vm304, %v1520, %v1583
    %v1617 = vsel %vm304, %v1521, %v1585
    %v1618 = vld [vmem:[%s10] sm:$0xff]
    %v1619 = vld [vmem:[%s10 + $0x8] sm:$0xff]
    %v1620 = vld [vmem:[%s10 + $0x10] sm:$0xff]
    %v1621 = vld [vmem:[%s10 + $0x18] sm:$0xff]
    %v1622 = vld [vmem:[%s10 + $0x20] sm:$0xff]
    %v1623 = vld [vmem:[%s10 + $0x28] sm:$0xff]
    %v1624 = vld [vmem:[%s10 + $0x30] sm:$0xff]
    %v1625 = vld [vmem:[%s10 + $0x38] sm:$0xff]
    %v1626 = vld [vmem:[%s10 + $0x40] sm:$0xff]
    %v1627 = vld [vmem:[%s10 + $0x48] sm:$0xff]
    %v1628 = vld [vmem:[%s10 + $0x50] sm:$0xff]
    %v1629 = vld [vmem:[%s10 + $0x58] sm:$0xff]
    %v1630 = vld [vmem:[%s10 + $0x60] sm:$0xff]
    %v1631 = vld [vmem:[%s10 + $0x68] sm:$0xff]
    %v1632 = vld [vmem:[%s10 + $0x70] sm:$0xff]
    %v1633 = vld [vmem:[%s10 + $0x78] sm:$0xff]
    %1634 = vmatprep.subr.mxu0 0.0
    %1635 = vmatpush1.msra.mxu0 %v1602
    %1636 = vmatprep.subr.mxu0 0.0
    %1637 = vmatpush1.msra.mxu0 %v1603
    %1638 = vmatprep.subr.mxu0 0.0
    %1639 = vmatpush1.msra.mxu0 %v1604
    %1640 = vmatprep.subr.mxu0 0.0
    %1641 = vmatpush1.msra.mxu0 %v1605
    %1642 = vmatprep.subr.mxu0 0.0
    %1643 = vmatpush1.msra.mxu0 %v1606
    %1644 = vmatprep.subr.mxu0 0.0
    %1645 = vmatpush1.msra.mxu0 %v1607
    %1646 = vmatprep.subr.mxu0 0.0
    %1647 = vmatpush1.msra.mxu0 %v1608
    %1648 = vmatprep.subr.mxu0 0.0
    %1649 = vmatpush1.msra.mxu0 %v1609
    %1650 = vmatprep.subr.mxu0 0.0
    %1651 = vmatpush1.msra.mxu0 %v1610
    %1652 = vmatprep.subr.mxu0 0.0
    %1653 = vmatpush1.msra.mxu0 %v1611
    %1654 = vmatprep.subr.mxu0 0.0
    %1655 = vmatpush1.msra.mxu0 %v1612
    %1656 = vmatprep.subr.mxu0 0.0
    %1657 = vmatpush1.msra.mxu0 %v1613
    %1658 = vmatprep.subr.mxu0 0.0
    %1659 = vmatpush1.msra.mxu0 %v1614
    %1660 = vmatprep.subr.mxu0 0.0
    %1661 = vmatpush1.msra.mxu0 %v1615
    %1662 = vmatprep.subr.mxu0 0.0
    %1663 = vmatpush1.msra.mxu0 %v1616
    %1664 = vmatprep.subr.mxu0 0.0
    %1665 = vmatpush1.msra.mxu0 %v1617
    %1666 = vmatprep.subr.mxu0 0.0
    %1667 = vmatpush1.msra.mxu0 0.0
    %1668 = vmatprep.subr.mxu0 0.0
    %1669 = vmatpush1.msra.mxu0 0.0
    %1670 = vmatprep.subr.mxu0 0.0
    %1671 = vmatpush1.msra.mxu0 0.0
    %1672 = vmatprep.subr.mxu0 0.0
    %1673 = vmatpush1.msra.mxu0 0.0
    %1674 = vmatprep.subr.mxu0 0.0
    %1675 = vmatpush1.msra.mxu0 0.0
    %1676 = vmatprep.subr.mxu0 0.0
    %1677 = vmatpush1.msra.mxu0 0.0
    %1678 = vmatprep.subr.mxu0 0.0
    %1679 = vmatpush1.msra.mxu0 0.0
    %1680 = vmatprep.subr.mxu0 0.0
    %1681 = vmatpush1.msra.mxu0 0.0
    %1682 = vmatprep.subr.mxu0 0.0
    %1683 = vmatpush1.msra.mxu0 0.0
    %1684 = vmatprep.subr.mxu0 0.0
    %1685 = vmatpush1.msra.mxu0 0.0
    %1686 = vmatprep.subr.mxu0 0.0
    %1687 = vmatpush1.msra.mxu0 0.0
    %1688 = vmatprep.subr.mxu0 0.0
    %1689 = vmatpush1.msra.mxu0 0.0
    %1690 = vmatprep.subr.mxu0 0.0
    %1691 = vmatpush1.msra.mxu0 0.0
    %1692 = vmatprep.subr.mxu0 0.0
    %1693 = vmatpush1.msra.mxu0 0.0
    %1694 = vmatprep.subr.mxu0 0.0
    %1695 = vmatpush1.msra.mxu0 0.0
    %1696 = vmatprep.subr.mxu0 0.0
    %1697 = vmatpush1.msra.mxu0 0.0
    %1698 = vmatprep.mubr.f32.mxu0 0.0
    %1699 = vmatmul.mubr.f32.gmra.mrb[0].mxu0 %v1618
    %v1700 = vpop.f32.mrb[0].mxu0
    %v1701 = vadd.f32 0.0, %v1700
    %v1702 = vpop.f32.mrb[0].mxu0
    %1703 = vmatprep.mubr.f32.mxu0 0.0
    %1704 = vmatmul.mubr.f32.gmra.mrb[0].mxu0 %v1619
    %v1705 = vpop.f32.mrb[0].mxu0
    %v1706 = vadd.f32 0.0, %v1705
    %v1707 = vpop.f32.mrb[0].mxu0
    %1708 = vmatprep.mubr.f32.mxu0 0.0
    %1709 = vmatmul.mubr.f32.gmra.mrb[0].mxu0 %v1620
    %v1710 = vpop.f32.mrb[0].mxu0
    %v1711 = vadd.f32 0.0, %v1710
    %v1712 = vpop.f32.mrb[0].mxu0
    %1713 = vmatprep.mubr.f32.mxu0 0.0
    %1714 = vmatmul.mubr.f32.gmra.mrb[0].mxu0 %v1621
    %v1715 = vpop.f32.mrb[0].mxu0
    %v1716 = vadd.f32 0.0, %v1715
    %v1717 = vpop.f32.mrb[0].mxu0
    %1718 = vmatprep.mubr.f32.mxu0 0.0
    %1719 = vmatmul.mubr.f32.gmra.mrb[0].mxu0 %v1622
    %v1720 = vpop.f32.mrb[0].mxu0
    %v1721 = vadd.f32 0.0, %v1720
    %v1722 = vpop.f32.mrb[0].mxu0
    %1723 = vmatprep.mubr.f32.mxu0 0.0
    %1724 = vmatmul.mubr.f32.gmra.mrb[0].mxu0 %v1623
    %v1725 = vpop.f32.mrb[0].mxu0
    %v1726 = vadd.f32 0.0, %v1725
    %v1727 = vpop.f32.mrb[0].mxu0
    %1728 = vmatprep.mubr.f32.mxu0 0.0
    %1729 = vmatmul.mubr.f32.gmra.mrb[0].mxu0 %v1624
    %v1730 = vpop.f32.mrb[0].mxu0
    %v1731 = vadd.f32 0.0, %v1730
    %v1732 = vpop.f32.mrb[0].mxu0
    %1733 = vmatprep.mubr.f32.mxu0 0.0
    %1734 = vmatmul.mubr.f32.gmra.mrb[0].mxu0 %v1625
    %v1735 = vpop.f32.mrb[0].mxu0
    %v1736 = vadd.f32 0.0, %v1735
    %v1737 = vpop.f32.mrb[0].mxu0
    %1738 = vmatprep.mubr.f32.mxu0 0.0
    %1739 = vmatmul.mubr.f32.gmra.mrb[0].mxu0 %v1626
    %v1740 = vpop.f32.mrb[0].mxu0
    %v1741 = vadd.f32 0.0, %v1740
    %v1742 = vpop.f32.mrb[0].mxu0
    %1743 = vmatprep.mubr.f32.mxu0 0.0
    %1744 = vmatmul.mubr.f32.gmra.mrb[0].mxu0 %v1627
    %v1745 = vpop.f32.mrb[0].mxu0
    %v1746 = vadd.f32 0.0, %v1745
    %v1747 = vpop.f32.mrb[0].mxu0
    %1748 = vmatprep.mubr.f32.mxu0 0.0
    %1749 = vmatmul.mubr.f32.gmra.mrb[0].mxu0 %v1628
    %v1750 = vpop.f32.mrb[0].mxu0
    %v1751 = vadd.f32 0.0, %v1750
    %v1752 = vpop.f32.mrb[0].mxu0
    %1753 = vmatprep.mubr.f32.mxu0 0.0
    %1754 = vmatmul.mubr.f32.gmra.mrb[0].mxu0 %v1629
    %v1755 = vpop.f32.mrb[0].mxu0
    %v1756 = vadd.f32 0.0, %v1755
    %v1757 = vpop.f32.mrb[0].mxu0
    %1758 = vmatprep.mubr.f32.mxu0 0.0
    %1759 = vmatmul.mubr.f32.gmra.mrb[0].mxu0 %v1630
    %v1760 = vpop.f32.mrb[0].mxu0
    %v1761 = vadd.f32 0.0, %v1760
    %v1762 = vpop.f32.mrb[0].mxu0
    %1763 = vmatprep.mubr.f32.mxu0 0.0
    %1764 = vmatmul.mubr.f32.gmra.mrb[0].mxu0 %v1631
    %v1765 = vpop.f32.mrb[0].mxu0
    %v1766 = vadd.f32 0.0, %v1765
    %v1767 = vpop.f32.mrb[0].mxu0
    %1768 = vmatprep.mubr.f32.mxu0 0.0
    %1769 = vmatmul.mubr.f32.gmra.mrb[0].mxu0 %v1632
    %v1770 = vpop.f32.mrb[0].mxu0
    %v1771 = vadd.f32 0.0, %v1770
    %v1772 = vpop.f32.mrb[0].mxu0
    %1773 = vmatprep.mubr.f32.mxu0 0.0
    %1774 = vmatmul.mubr.f32.gmra.mrb[0].mxu0 %v1633
    %v1775 = vpop.f32.mrb[0].mxu0
    %v1776 = vadd.f32 0.0, %v1775
    %v1777 = vpop.f32.mrb[0].mxu0
    %1778 = vdwg.mxu0
    %v1779 = vmul.f32 %v1701, %v1701
    %v1780 = vmul.f32 %v1706, %v1706
    %v1781 = vmul.f32 %v1711, %v1711
    %v1782 = vmul.f32 %v1716, %v1716
    %v1783 = vmul.f32 %v1721, %v1721
    %v1784 = vmul.f32 %v1726, %v1726
    %v1785 = vmul.f32 %v1731, %v1731
    %v1786 = vmul.f32 %v1736, %v1736
    %v1787 = vmul.f32 %v1741, %v1741
    %v1788 = vmul.f32 %v1746, %v1746
    %v1789 = vmul.f32 %v1751, %v1751
    %v1790 = vmul.f32 %v1756, %v1756
    %v1791 = vmul.f32 %v1761, %v1761
    %v1792 = vmul.f32 %v1766, %v1766
    %v1793 = vmul.f32 %v1771, %v1771
    %v1794 = vmul.f32 %v1776, %v1776
    %1811 = vrot.lane.b32.xlu0 %v1779, 8
    %v1812 = vpop.permute.xlu0 %1811
    %1813 = vrot.lane.b32.xlu0 %v1780, 8
    %v1814 = vpop.permute.xlu0 %1813
    %1815 = vrot.lane.b32.xlu0 %v1781, 8
    %v1816 = vpop.permute.xlu0 %1815
    %1817 = vrot.lane.b32.xlu0 %v1782, 8
    %v1818 = vpop.permute.xlu0 %1817
    %1819 = vrot.lane.b32.xlu0 %v1783, 8
    %v1820 = vpop.permute.xlu0 %1819
    %1821 = vrot.lane.b32.xlu0 %v1784, 8
    %v1822 = vpop.permute.xlu0 %1821
    %1823 = vrot.lane.b32.xlu0 %v1785, 8
    %v1824 = vpop.permute.xlu0 %1823
    %1825 = vrot.lane.b32.xlu0 %v1786, 8
    %v1826 = vpop.permute.xlu0 %1825
    %1827 = vrot.lane.b32.xlu0 %v1787, 8
    %v1828 = vpop.permute.xlu0 %1827
    %1829 = vrot.lane.b32.xlu0 %v1788, 8
    %v1830 = vpop.permute.xlu0 %1829
    %1831 = vrot.lane.b32.xlu0 %v1789, 8
    %v1832 = vpop.permute.xlu0 %1831
    %1833 = vrot.lane.b32.xlu0 %v1790, 8
    %v1834 = vpop.permute.xlu0 %1833
    %1835 = vrot.lane.b32.xlu0 %v1791, 8
    %v1836 = vpop.permute.xlu0 %1835
    %1837 = vrot.lane.b32.xlu0 %v1792, 8
    %v1838 = vpop.permute.xlu0 %1837
    %1839 = vrot.lane.b32.xlu0 %v1793, 8
    %v1840 = vpop.permute.xlu0 %1839
    %1841 = vrot.lane.b32.xlu0 %v1794, 8
    %v1842 = vpop.permute.xlu0 %1841
    %v1859 = vsub.f32 %v1701, %v1812
    %v1860 = vsub.f32 %v1706, %v1814
    %v1861 = vsub.f32 %v1711, %v1816
    %v1862 = vsub.f32 %v1716, %v1818
    %v1863 = vsub.f32 %v1721, %v1820
    %v1864 = vsub.f32 %v1726, %v1822
    %v1865 = vsub.f32 %v1731, %v1824
    %v1866 = vsub.f32 %v1736, %v1826
    %v1867 = vsub.f32 %v1741, %v1828
    %v1868 = vsub.f32 %v1746, %v1830
    %v1869 = vsub.f32 %v1751, %v1832
    %v1870 = vsub.f32 %v1756, %v1834
    %v1871 = vsub.f32 %v1761, %v1836
    %v1872 = vsub.f32 %v1766, %v1838
    %v1873 = vsub.f32 %v1771, %v1840
    %v1874 = vsub.f32 %v1776, %v1842
    %v1875 = vmax.f32 %v1859, 0.0
    %v1876 = vmax.f32 %v1860, 0.0
    %v1877 = vmax.f32 %v1861, 0.0
    %v1878 = vmax.f32 %v1862, 0.0
    %v1879 = vmax.f32 %v1863, 0.0
    %v1880 = vmax.f32 %v1864, 0.0
    %v1881 = vmax.f32 %v1865, 0.0
    %v1882 = vmax.f32 %v1866, 0.0
    %v1883 = vmax.f32 %v1867, 0.0
    %v1884 = vmax.f32 %v1868, 0.0
    %v1885 = vmax.f32 %v1869, 0.0
    %v1886 = vmax.f32 %v1870, 0.0
    %v1887 = vmax.f32 %v1871, 0.0
    %v1888 = vmax.f32 %v1872, 0.0
    %v1889 = vmax.f32 %v1873, 0.0
    %v1890 = vmax.f32 %v1874, 0.0
    %v1891 = vadd.f32 %v1875, 1e-06
    %v1892 = vadd.f32 %v1876, 1e-06
    %v1893 = vadd.f32 %v1877, 1e-06
    %v1894 = vadd.f32 %v1878, 1e-06
    %v1895 = vadd.f32 %v1879, 1e-06
    %v1896 = vadd.f32 %v1880, 1e-06
    %v1897 = vadd.f32 %v1881, 1e-06
    %v1898 = vadd.f32 %v1882, 1e-06
    %v1899 = vadd.f32 %v1883, 1e-06
    %v1900 = vadd.f32 %v1884, 1e-06
    %v1901 = vadd.f32 %v1885, 1e-06
    %v1902 = vadd.f32 %v1886, 1e-06
    %v1903 = vadd.f32 %v1887, 1e-06
    %v1904 = vadd.f32 %v1888, 1e-06
    %v1905 = vadd.f32 %v1889, 1e-06
    %v1906 = vadd.f32 %v1890, 1e-06
    %v1907 = vrsqrt.pop %v1891
    %v1908 = vrsqrt.pop %v1892
    %v1909 = vrsqrt.pop %v1893
    %v1910 = vrsqrt.pop %v1894
    %v1911 = vrsqrt.pop %v1895
    %v1912 = vrsqrt.pop %v1896
    %v1913 = vrsqrt.pop %v1897
    %v1914 = vrsqrt.pop %v1898
    %v1915 = vrsqrt.pop %v1899
    %v1916 = vrsqrt.pop %v1900
    %v1917 = vrsqrt.pop %v1901
    %v1918 = vrsqrt.pop %v1902
    %v1919 = vrsqrt.pop %v1903
    %v1920 = vrsqrt.pop %v1904
    %v1921 = vrsqrt.pop %v1905
    %v1922 = vrsqrt.pop %v1906
    %1924 = vset.pattern.permute.xlu0 0
    %1925 = vperm.xlu0 %1924, %v1281
    %v1926 = vpop.permute.xlu0 %1925
    %1929 = vset.pattern.permute.xlu0 0
    %1930 = vperm.xlu0 %1929, %v1282
    %v1931 = vpop.permute.xlu0 %1930
    %1934 = vset.pattern.permute.xlu0 0
    %1935 = vperm.xlu0 %1934, %v1283
    %v1936 = vpop.permute.xlu0 %1935
    %1939 = vset.pattern.permute.xlu0 0
    %1940 = vperm.xlu0 %1939, %v1284
    %v1941 = vpop.permute.xlu0 %1940
    %1944 = vset.pattern.permute.xlu0 0
    %1945 = vperm.xlu0 %1944, %v1285
    %v1946 = vpop.permute.xlu0 %1945
    %1949 = vset.pattern.permute.xlu0 0
    %1950 = vperm.xlu0 %1949, %v1286
    %v1951 = vpop.permute.xlu0 %1950
    %1954 = vset.pattern.permute.xlu0 0
    %1955 = vperm.xlu0 %1954, %v1287
    %v1956 = vpop.permute.xlu0 %1955
    %1959 = vset.pattern.permute.xlu0 0
    %1960 = vperm.xlu0 %1959, %v1288
    %v1961 = vpop.permute.xlu0 %1960
    %1964 = vset.pattern.permute.xlu0 0
    %1965 = vperm.xlu0 %1964, %v1289
    %v1966 = vpop.permute.xlu0 %1965
    %1969 = vset.pattern.permute.xlu0 0
    %1970 = vperm.xlu0 %1969, %v1290
    %v1971 = vpop.permute.xlu0 %1970
    %1974 = vset.pattern.permute.xlu0 0
    %1975 = vperm.xlu0 %1974, %v1291
    %v1976 = vpop.permute.xlu0 %1975
    %1979 = vset.pattern.permute.xlu0 0
    %1980 = vperm.xlu0 %1979, %v1292
    %v1981 = vpop.permute.xlu0 %1980
    %1984 = vset.pattern.permute.xlu0 0
    %1985 = vperm.xlu0 %1984, %v1293
    %v1986 = vpop.permute.xlu0 %1985
    %1989 = vset.pattern.permute.xlu0 0
    %1990 = vperm.xlu0 %1989, %v1294
    %v1991 = vpop.permute.xlu0 %1990
    %1994 = vset.pattern.permute.xlu0 0
    %1995 = vperm.xlu0 %1994, %v1295
    %v1996 = vpop.permute.xlu0 %1995
    %1999 = vset.pattern.permute.xlu0 0
    %2000 = vperm.xlu0 %1999, %v1296
    %v2001 = vpop.permute.xlu0 %2000
    %v2003 = vmul.f32 %v1926, %v1907
    %v2004 = vmul.f32 %v1931, %v1908
    %v2005 = vmul.f32 %v1936, %v1909
    %v2006 = vmul.f32 %v1941, %v1910
    %v2007 = vmul.f32 %v1946, %v1911
    %v2008 = vmul.f32 %v1951, %v1912
    %v2009 = vmul.f32 %v1956, %v1913
    %v2010 = vmul.f32 %v1961, %v1914
    %v2011 = vmul.f32 %v1966, %v1915
    %v2012 = vmul.f32 %v1971, %v1916
    %v2013 = vmul.f32 %v1976, %v1917
    %v2014 = vmul.f32 %v1981, %v1918
    %v2015 = vmul.f32 %v1986, %v1919
    %v2016 = vmul.f32 %v1991, %v1920
    %v2017 = vmul.f32 %v1996, %v1921
    %v2018 = vmul.f32 %v2001, %v1922
    %2035 = vrot.lane.b32.xlu0 %v2003, 120
    %v2036 = vpop.permute.xlu0 %2035
    %2037 = vrot.lane.b32.xlu0 %v2004, 120
    %v2038 = vpop.permute.xlu0 %2037
    %2039 = vrot.lane.b32.xlu0 %v2005, 120
    %v2040 = vpop.permute.xlu0 %2039
    %2041 = vrot.lane.b32.xlu0 %v2006, 120
    %v2042 = vpop.permute.xlu0 %2041
    %2043 = vrot.lane.b32.xlu0 %v2007, 120
    %v2044 = vpop.permute.xlu0 %2043
    %2045 = vrot.lane.b32.xlu0 %v2008, 120
    %v2046 = vpop.permute.xlu0 %2045
    %2047 = vrot.lane.b32.xlu0 %v2009, 120
    %v2048 = vpop.permute.xlu0 %2047
    %2049 = vrot.lane.b32.xlu0 %v2010, 120
    %v2050 = vpop.permute.xlu0 %2049
    %2051 = vrot.lane.b32.xlu0 %v2011, 120
    %v2052 = vpop.permute.xlu0 %2051
    %2053 = vrot.lane.b32.xlu0 %v2012, 120
    %v2054 = vpop.permute.xlu0 %2053
    %2055 = vrot.lane.b32.xlu0 %v2013, 120
    %v2056 = vpop.permute.xlu0 %2055
    %2057 = vrot.lane.b32.xlu0 %v2014, 120
    %v2058 = vpop.permute.xlu0 %2057
    %2059 = vrot.lane.b32.xlu0 %v2015, 120
    %v2060 = vpop.permute.xlu0 %2059
    %2061 = vrot.lane.b32.xlu0 %v2016, 120
    %v2062 = vpop.permute.xlu0 %2061
    %2063 = vrot.lane.b32.xlu0 %v2017, 120
    %v2064 = vpop.permute.xlu0 %2063
    %2065 = vrot.lane.b32.xlu0 %v2018, 120
    %v2066 = vpop.permute.xlu0 %2065
    %v2083 = vmul.f32 %v1701, %v2036
    %v2084 = vmul.f32 %v1706, %v2038
    %v2085 = vmul.f32 %v1711, %v2040
    %v2086 = vmul.f32 %v1716, %v2042
    %v2087 = vmul.f32 %v1721, %v2044
    %v2088 = vmul.f32 %v1726, %v2046
    %v2089 = vmul.f32 %v1731, %v2048
    %v2090 = vmul.f32 %v1736, %v2050
    %v2091 = vmul.f32 %v1741, %v2052
    %v2092 = vmul.f32 %v1746, %v2054
    %v2093 = vmul.f32 %v1751, %v2056
    %v2094 = vmul.f32 %v1756, %v2058
    %v2095 = vmul.f32 %v1761, %v2060
    %v2096 = vmul.f32 %v1766, %v2062
    %v2097 = vmul.f32 %v1771, %v2064
    %v2098 = vmul.f32 %v1776, %v2066
    %2100 = vset.pattern.permute.xlu0 0
    %2101 = vperm.xlu0 %2100, %v1297
    %v2102 = vpop.permute.xlu0 %2101
    %2105 = vset.pattern.permute.xlu0 0
    %2106 = vperm.xlu0 %2105, %v1298
    %v2107 = vpop.permute.xlu0 %2106
    %2110 = vset.pattern.permute.xlu0 0
    %2111 = vperm.xlu0 %2110, %v1299
    %v2112 = vpop.permute.xlu0 %2111
    %2115 = vset.pattern.permute.xlu0 0
    %2116 = vperm.xlu0 %2115, %v1300
    %v2117 = vpop.permute.xlu0 %2116
    %2120 = vset.pattern.permute.xlu0 0
    %2121 = vperm.xlu0 %2120, %v1301
    %v2122 = vpop.permute.xlu0 %2121
    %2125 = vset.pattern.permute.xlu0 0
    %2126 = vperm.xlu0 %2125, %v1302
    %v2127 = vpop.permute.xlu0 %2126
    %2130 = vset.pattern.permute.xlu0 0
    %2131 = vperm.xlu0 %2130, %v1303
    %v2132 = vpop.permute.xlu0 %2131
    %2135 = vset.pattern.permute.xlu0 0
    %2136 = vperm.xlu0 %2135, %v1304
    %v2137 = vpop.permute.xlu0 %2136
    %2140 = vset.pattern.permute.xlu0 0
    %2141 = vperm.xlu0 %2140, %v1305
    %v2142 = vpop.permute.xlu0 %2141
    %2145 = vset.pattern.permute.xlu0 0
    %2146 = vperm.xlu0 %2145, %v1306
    %v2147 = vpop.permute.xlu0 %2146
    %2150 = vset.pattern.permute.xlu0 0
    %2151 = vperm.xlu0 %2150, %v1307
    %v2152 = vpop.permute.xlu0 %2151
    %2155 = vset.pattern.permute.xlu0 0
    %2156 = vperm.xlu0 %2155, %v1308
    %v2157 = vpop.permute.xlu0 %2156
    %2160 = vset.pattern.permute.xlu0 0
    %2161 = vperm.xlu0 %2160, %v1309
    %v2162 = vpop.permute.xlu0 %2161
    %2165 = vset.pattern.permute.xlu0 0
    %2166 = vperm.xlu0 %2165, %v1310
    %v2167 = vpop.permute.xlu0 %2166
    %2170 = vset.pattern.permute.xlu0 0
    %2171 = vperm.xlu0 %2170, %v1311
    %v2172 = vpop.permute.xlu0 %2171
    %2175 = vset.pattern.permute.xlu0 0
    %2176 = vperm.xlu0 %2175, %v1312
    %v2177 = vpop.permute.xlu0 %2176
    %v2179 = vsub.f32 %v2102, %v2083
    %v2180 = vsub.f32 %v2107, %v2084
    %v2181 = vsub.f32 %v2112, %v2085
    %v2182 = vsub.f32 %v2117, %v2086
    %v2183 = vsub.f32 %v2122, %v2087
    %v2184 = vsub.f32 %v2127, %v2088
    %v2185 = vsub.f32 %v2132, %v2089
    %v2186 = vsub.f32 %v2137, %v2090
    %v2187 = vsub.f32 %v2142, %v2091
    %v2188 = vsub.f32 %v2147, %v2092
    %v2189 = vsub.f32 %v2152, %v2093
    %v2190 = vsub.f32 %v2157, %v2094
    %v2191 = vsub.f32 %v2162, %v2095
    %v2192 = vsub.f32 %v2167, %v2096
    %v2193 = vsub.f32 %v2172, %v2097
    %v2194 = vsub.f32 %v2177, %v2098
    %2211 = vrot.lane.b32.xlu0 %v2179, 8
    %v2212 = vpop.permute.xlu0 %2211
    %2213 = vrot.lane.b32.xlu0 %v2180, 8
    %v2214 = vpop.permute.xlu0 %2213
    %2215 = vrot.lane.b32.xlu0 %v2181, 8
    %v2216 = vpop.permute.xlu0 %2215
    %2217 = vrot.lane.b32.xlu0 %v2182, 8
    %v2218 = vpop.permute.xlu0 %2217
    %2219 = vrot.lane.b32.xlu0 %v2183, 8
    %v2220 = vpop.permute.xlu0 %2219
    %2221 = vrot.lane.b32.xlu0 %v2184, 8
    %v2222 = vpop.permute.xlu0 %2221
    %2223 = vrot.lane.b32.xlu0 %v2185, 8
    %v2224 = vpop.permute.xlu0 %2223
    %2225 = vrot.lane.b32.xlu0 %v2186, 8
    %v2226 = vpop.permute.xlu0 %2225
    %2227 = vrot.lane.b32.xlu0 %v2187, 8
    %v2228 = vpop.permute.xlu0 %2227
    %2229 = vrot.lane.b32.xlu0 %v2188, 8
    %v2230 = vpop.permute.xlu0 %2229
    %2231 = vrot.lane.b32.xlu0 %v2189, 8
    %v2232 = vpop.permute.xlu0 %2231
    %2233 = vrot.lane.b32.xlu0 %v2190, 8
    %v2234 = vpop.permute.xlu0 %2233
    %2235 = vrot.lane.b32.xlu0 %v2191, 8
    %v2236 = vpop.permute.xlu0 %2235
    %2237 = vrot.lane.b32.xlu0 %v2192, 8
    %v2238 = vpop.permute.xlu0 %2237
    %2239 = vrot.lane.b32.xlu0 %v2193, 8
    %v2240 = vpop.permute.xlu0 %2239
    %2241 = vrot.lane.b32.xlu0 %v2194, 8
    %v2242 = vpop.permute.xlu0 %2241
    %v2259 = vpack.c.bf16 %v2004, %v2003
    %v2260 = vpack.c.bf16 %v2006, %v2005
    %v2261 = vpack.c.bf16 %v2008, %v2007
    %v2262 = vpack.c.bf16 %v2010, %v2009
    %v2263 = vpack.c.bf16 %v2012, %v2011
    %v2264 = vpack.c.bf16 %v2014, %v2013
    %v2265 = vpack.c.bf16 %v2016, %v2015
    %v2266 = vpack.c.bf16 %v2018, %v2017
    %v2267 = vpack.c.bf16 %v2214, %v2212
    %v2268 = vpack.c.bf16 %v2218, %v2216
    %v2269 = vpack.c.bf16 %v2222, %v2220
    %v2270 = vpack.c.bf16 %v2226, %v2224
    %v2271 = vpack.c.bf16 %v2230, %v2228
    %v2272 = vpack.c.bf16 %v2234, %v2232
    %v2273 = vpack.c.bf16 %v2238, %v2236
    %v2274 = vpack.c.bf16 %v2242, %v2240
    %2291 = vrot.lane.b32.xlu0 %v2259, 120
    %v2292 = vpop.permute.xlu0 %2291
    %2293 = vrot.lane.b32.xlu0 %v2260, 120
    %v2294 = vpop.permute.xlu0 %2293
    %2295 = vrot.lane.b32.xlu0 %v2261, 120
    %v2296 = vpop.permute.xlu0 %2295
    %2297 = vrot.lane.b32.xlu0 %v2262, 120
    %v2298 = vpop.permute.xlu0 %2297
    %2299 = vrot.lane.b32.xlu0 %v2263, 120
    %v2300 = vpop.permute.xlu0 %2299
    %2301 = vrot.lane.b32.xlu0 %v2264, 120
    %v2302 = vpop.permute.xlu0 %2301
    %2303 = vrot.lane.b32.xlu0 %v2265, 120
    %v2304 = vpop.permute.xlu0 %2303
    %2305 = vrot.lane.b32.xlu0 %v2266, 120
    %v2306 = vpop.permute.xlu0 %2305
    %2307 = vrot.lane.b32.xlu0 %v2267, 120
    %v2308 = vpop.permute.xlu0 %2307
    %2309 = vrot.lane.b32.xlu0 %v2268, 120
    %v2310 = vpop.permute.xlu0 %2309
    %2311 = vrot.lane.b32.xlu0 %v2269, 120
    %v2312 = vpop.permute.xlu0 %2311
    %2313 = vrot.lane.b32.xlu0 %v2270, 120
    %v2314 = vpop.permute.xlu0 %2313
    %2315 = vrot.lane.b32.xlu0 %v2271, 120
    %v2316 = vpop.permute.xlu0 %2315
    %2317 = vrot.lane.b32.xlu0 %v2272, 120
    %v2318 = vpop.permute.xlu0 %2317
    %2319 = vrot.lane.b32.xlu0 %v2273, 120
    %v2320 = vpop.permute.xlu0 %2319
    %2321 = vrot.lane.b32.xlu0 %v2274, 120
    %v2322 = vpop.permute.xlu0 %2321
    %v2324 = vsel %vm304, %v2292, 0
    %v2327 = vsel %vm304, %v2294, 0
    %v2330 = vsel %vm304, %v2296, 0
    %v2333 = vsel %vm304, %v2298, 0
    %v2336 = vsel %vm304, %v2300, 0
    %v2339 = vsel %vm304, %v2302, 0
    %v2342 = vsel %vm304, %v2304, 0
    %v2345 = vsel %vm304, %v2306, 0
    %v2348 = vsel %vm304, %v2308, 0
    %v2351 = vsel %vm304, %v2310, 0
    %v2354 = vsel %vm304, %v2312, 0
    %v2357 = vsel %vm304, %v2314, 0
    %v2360 = vsel %vm304, %v2316, 0
    %v2363 = vsel %vm304, %v2318, 0
    %v2366 = vsel %vm304, %v2320, 0
    %v2369 = vsel %vm304, %v2322, 0
    %2371 = vmatprep.subr.bf16.mxu0 0
    %2372 = vmatpush1.bf16.msra.mxu0 %v749
    %2373 = vmatprep.subr.bf16.mxu0 0
    %2374 = vmatpush1.bf16.msra.mxu0 0
    %2375 = vmatprep.subr.bf16.mxu0 0
    %2376 = vmatpush1.bf16.msra.mxu0 0
    %2377 = vmatprep.subr.bf16.mxu0 0
    %2378 = vmatpush1.bf16.msra.mxu0 0
    %2379 = vmatprep.subr.bf16.mxu0 0
    %2380 = vmatpush1.bf16.msra.mxu0 0
    %2381 = vmatprep.subr.bf16.mxu0 0
    %2382 = vmatpush1.bf16.msra.mxu0 0
    %2383 = vmatprep.subr.bf16.mxu0 0
    %2384 = vmatpush1.bf16.msra.mxu0 0
    %2385 = vmatprep.subr.bf16.mxu0 0
    %2386 = vmatpush1.bf16.msra.mxu0 0
    %2387 = vmatprep.subr.bf16.mxu0 0
    %2388 = vmatpush1.bf16.msra.mxu0 0
    %2389 = vmatprep.subr.bf16.mxu0 0
    %2390 = vmatpush1.bf16.msra.mxu0 0
    %2391 = vmatprep.subr.bf16.mxu0 0
    %2392 = vmatpush1.bf16.msra.mxu0 0
    %2393 = vmatprep.subr.bf16.mxu0 0
    %2394 = vmatpush1.bf16.msra.mxu0 0
    %2395 = vmatprep.subr.bf16.mxu0 0
    %2396 = vmatpush1.bf16.msra.mxu0 0
    %2397 = vmatprep.subr.bf16.mxu0 0
    %2398 = vmatpush1.bf16.msra.mxu0 0
    %2399 = vmatprep.subr.bf16.mxu0 0
    %2400 = vmatpush1.bf16.msra.mxu0 0
    %2401 = vmatprep.subr.bf16.mxu0 0
    %2402 = vmatpush1.bf16.msra.mxu0 0
    %2403 = vmatprep.mubr.bf16.mxu0 0
    %2404 = vmatmul.mubr.bf16.gmra.mrb[0].mxu0 %v2324
    %v2405 = vpop.f32.mrb[0].mxu0
    %v2406 = vadd.f32 0.0, %v2405
    %v2407 = vpop.f32.mrb[0].mxu0
    %v2408 = vpop.f32.mrb[0].mxu0
    %v2409 = vadd.f32 0.0, %v2408
    %v2410 = vpop.f32.mrb[0].mxu0
    %2411 = vmatprep.mubr.bf16.mxu0 0
    %2412 = vmatmul.mubr.bf16.gmra.mrb[0].mxu0 %v2327
    %v2413 = vpop.f32.mrb[0].mxu0
    %v2414 = vadd.f32 0.0, %v2413
    %v2415 = vpop.f32.mrb[0].mxu0
    %v2416 = vpop.f32.mrb[0].mxu0
    %v2417 = vadd.f32 0.0, %v2416
    %v2418 = vpop.f32.mrb[0].mxu0
    %2419 = vmatprep.mubr.bf16.mxu0 0
    %2420 = vmatmul.mubr.bf16.gmra.mrb[0].mxu0 %v2330
    %v2421 = vpop.f32.mrb[0].mxu0
    %v2422 = vadd.f32 0.0, %v2421
    %v2423 = vpop.f32.mrb[0].mxu0
    %v2424 = vpop.f32.mrb[0].mxu0
    %v2425 = vadd.f32 0.0, %v2424
    %v2426 = vpop.f32.mrb[0].mxu0
    %2427 = vmatprep.mubr.bf16.mxu0 0
    %2428 = vmatmul.mubr.bf16.gmra.mrb[0].mxu0 %v2333
    %v2429 = vpop.f32.mrb[0].mxu0
    %v2430 = vadd.f32 0.0, %v2429
    %v2431 = vpop.f32.mrb[0].mxu0
    %v2432 = vpop.f32.mrb[0].mxu0
    %v2433 = vadd.f32 0.0, %v2432
    %v2434 = vpop.f32.mrb[0].mxu0
    %2435 = vmatprep.mubr.bf16.mxu0 0
    %2436 = vmatmul.mubr.bf16.gmra.mrb[0].mxu0 %v2336
    %v2437 = vpop.f32.mrb[0].mxu0
    %v2438 = vadd.f32 0.0, %v2437
    %v2439 = vpop.f32.mrb[0].mxu0
    %v2440 = vpop.f32.mrb[0].mxu0
    %v2441 = vadd.f32 0.0, %v2440
    %v2442 = vpop.f32.mrb[0].mxu0
    %2443 = vmatprep.mubr.bf16.mxu0 0
    %2444 = vmatmul.mubr.bf16.gmra.mrb[0].mxu0 %v2339
    %v2445 = vpop.f32.mrb[0].mxu0
    %v2446 = vadd.f32 0.0, %v2445
    %v2447 = vpop.f32.mrb[0].mxu0
    %v2448 = vpop.f32.mrb[0].mxu0
    %v2449 = vadd.f32 0.0, %v2448
    %v2450 = vpop.f32.mrb[0].mxu0
    %2451 = vmatprep.mubr.bf16.mxu0 0
    %2452 = vmatmul.mubr.bf16.gmra.mrb[0].mxu0 %v2342
    %v2453 = vpop.f32.mrb[0].mxu0
    %v2454 = vadd.f32 0.0, %v2453
    %v2455 = vpop.f32.mrb[0].mxu0
    %v2456 = vpop.f32.mrb[0].mxu0
    %v2457 = vadd.f32 0.0, %v2456
    %v2458 = vpop.f32.mrb[0].mxu0
    %2459 = vmatprep.mubr.bf16.mxu0 0
    %2460 = vmatmul.mubr.bf16.gmra.mrb[0].mxu0 %v2345
    %v2461 = vpop.f32.mrb[0].mxu0
    %v2462 = vadd.f32 0.0, %v2461
    %v2463 = vpop.f32.mrb[0].mxu0
    %v2464 = vpop.f32.mrb[0].mxu0
    %v2465 = vadd.f32 0.0, %v2464
    %v2466 = vpop.f32.mrb[0].mxu0
    %2467 = vmatprep.mubr.bf16.mxu0 0
    %2468 = vmatmul.mubr.bf16.gmra.mrb[0].mxu0 %v2348
    %v2469 = vpop.f32.mrb[0].mxu0
    %v2470 = vadd.f32 0.0, %v2469
    %v2471 = vpop.f32.mrb[0].mxu0
    %v2472 = vpop.f32.mrb[0].mxu0
    %v2473 = vadd.f32 0.0, %v2472
    %v2474 = vpop.f32.mrb[0].mxu0
    %2475 = vmatprep.mubr.bf16.mxu0 0
    %2476 = vmatmul.mubr.bf16.gmra.mrb[0].mxu0 %v2351
    %v2477 = vpop.f32.mrb[0].mxu0
    %v2478 = vadd.f32 0.0, %v2477
    %v2479 = vpop.f32.mrb[0].mxu0
    %v2480 = vpop.f32.mrb[0].mxu0
    %v2481 = vadd.f32 0.0, %v2480
    %v2482 = vpop.f32.mrb[0].mxu0
    %2483 = vmatprep.mubr.bf16.mxu0 0
    %2484 = vmatmul.mubr.bf16.gmra.mrb[0].mxu0 %v2354
    %v2485 = vpop.f32.mrb[0].mxu0
    %v2486 = vadd.f32 0.0, %v2485
    %v2487 = vpop.f32.mrb[0].mxu0
    %v2488 = vpop.f32.mrb[0].mxu0
    %v2489 = vadd.f32 0.0, %v2488
    %v2490 = vpop.f32.mrb[0].mxu0
    %2491 = vmatprep.mubr.bf16.mxu0 0
    %2492 = vmatmul.mubr.bf16.gmra.mrb[0].mxu0 %v2357
    %v2493 = vpop.f32.mrb[0].mxu0
    %v2494 = vadd.f32 0.0, %v2493
    %v2495 = vpop.f32.mrb[0].mxu0
    %v2496 = vpop.f32.mrb[0].mxu0
    %v2497 = vadd.f32 0.0, %v2496
    %v2498 = vpop.f32.mrb[0].mxu0
    %2499 = vmatprep.mubr.bf16.mxu0 0
    %2500 = vmatmul.mubr.bf16.gmra.mrb[0].mxu0 %v2360
    %v2501 = vpop.f32.mrb[0].mxu0
    %v2502 = vadd.f32 0.0, %v2501
    %v2503 = vpop.f32.mrb[0].mxu0
    %v2504 = vpop.f32.mrb[0].mxu0
    %v2505 = vadd.f32 0.0, %v2504
    %v2506 = vpop.f32.mrb[0].mxu0
    %2507 = vmatprep.mubr.bf16.mxu0 0
    %2508 = vmatmul.mubr.bf16.gmra.mrb[0].mxu0 %v2363
    %v2509 = vpop.f32.mrb[0].mxu0
    %v2510 = vadd.f32 0.0, %v2509
    %v2511 = vpop.f32.mrb[0].mxu0
    %v2512 = vpop.f32.mrb[0].mxu0
    %v2513 = vadd.f32 0.0, %v2512
    %v2514 = vpop.f32.mrb[0].mxu0
    %2515 = vmatprep.mubr.bf16.mxu0 0
    %2516 = vmatmul.mubr.bf16.gmra.mrb[0].mxu0 %v2366
    %v2517 = vpop.f32.mrb[0].mxu0
    %v2518 = vadd.f32 0.0, %v2517
    %v2519 = vpop.f32.mrb[0].mxu0
    %v2520 = vpop.f32.mrb[0].mxu0
    %v2521 = vadd.f32 0.0, %v2520
    %v2522 = vpop.f32.mrb[0].mxu0
    %2523 = vmatprep.mubr.bf16.mxu0 0
    %2524 = vmatmul.mubr.bf16.gmra.mrb[0].mxu0 %v2369
    %v2525 = vpop.f32.mrb[0].mxu0
    %v2526 = vadd.f32 0.0, %v2525
    %v2527 = vpop.f32.mrb[0].mxu0
    %v2528 = vpop.f32.mrb[0].mxu0
    %v2529 = vadd.f32 0.0, %v2528
    %v2530 = vpop.f32.mrb[0].mxu0
    %2531 = vdwg.mxu0
    %v2532 = vmul.f32 %v1219, %v2406
    %v2533 = vmul.f32 %v1222, %v2409
    %v2534 = vmul.f32 %v1227, %v2414
    %v2535 = vmul.f32 %v1230, %v2417
    %v2536 = vmul.f32 %v1235, %v2422
    %v2537 = vmul.f32 %v1238, %v2425
    %v2538 = vmul.f32 %v1243, %v2430
    %v2539 = vmul.f32 %v1246, %v2433
    %v2540 = vmul.f32 %v1251, %v2438
    %v2541 = vmul.f32 %v1254, %v2441
    %v2542 = vmul.f32 %v1259, %v2446
    %v2543 = vmul.f32 %v1262, %v2449
    %v2544 = vmul.f32 %v1267, %v2454
    %v2545 = vmul.f32 %v1270, %v2457
    %v2546 = vmul.f32 %v1275, %v2462
    %v2547 = vmul.f32 %v1278, %v2465
    %v2548 = vadd.f32 %v2532, %v2470
    %v2549 = vadd.f32 %v2533, %v2473
    %v2550 = vadd.f32 %v2534, %v2478
    %v2551 = vadd.f32 %v2535, %v2481
    %v2552 = vadd.f32 %v2536, %v2486
    %v2553 = vadd.f32 %v2537, %v2489
    %v2554 = vadd.f32 %v2538, %v2494
    %v2555 = vadd.f32 %v2539, %v2497
    %v2556 = vadd.f32 %v2540, %v2502
    %v2557 = vadd.f32 %v2541, %v2505
    %v2558 = vadd.f32 %v2542, %v2510
    %v2559 = vadd.f32 %v2543, %v2513
    %v2560 = vadd.f32 %v2544, %v2518
    %v2561 = vadd.f32 %v2545, %v2521
    %v2562 = vadd.f32 %v2546, %v2526
    %v2563 = vadd.f32 %v2547, %v2529
    %v2564 = vmul.f32 %v2548, 0.5
    %v2565 = vmul.f32 %v2549, 0.5
    %v2566 = vmul.f32 %v2550, 0.5
    %v2567 = vmul.f32 %v2551, 0.5
    %v2568 = vmul.f32 %v2552, 0.5
    %v2569 = vmul.f32 %v2553, 0.5
    %v2570 = vmul.f32 %v2554, 0.5
    %v2571 = vmul.f32 %v2555, 0.5
    %v2572 = vmul.f32 %v2556, 0.5
    %v2573 = vmul.f32 %v2557, 0.5
    %v2574 = vmul.f32 %v2558, 0.5
    %v2575 = vmul.f32 %v2559, 0.5
    %v2576 = vmul.f32 %v2560, 0.5
    %v2577 = vmul.f32 %v2561, 0.5
    %v2578 = vmul.f32 %v2562, 0.5
    %v2579 = vmul.f32 %v2563, 0.5
    %v2580 = vtanh.pop %v2564
    %v2581 = vtanh.pop %v2565
    %v2582 = vtanh.pop %v2566
    %v2583 = vtanh.pop %v2567
    %v2584 = vtanh.pop %v2568
    %v2585 = vtanh.pop %v2569
    %v2586 = vtanh.pop %v2570
    %v2587 = vtanh.pop %v2571
    %v2588 = vtanh.pop %v2572
    %v2589 = vtanh.pop %v2573
    %v2590 = vtanh.pop %v2574
    %v2591 = vtanh.pop %v2575
    %v2592 = vtanh.pop %v2576
    %v2593 = vtanh.pop %v2577
    %v2594 = vtanh.pop %v2578
    %v2595 = vtanh.pop %v2579
    %v2596 = vmul.f32 %v2580, 0.5
    %v2597 = vmul.f32 %v2581, 0.5
    %v2598 = vmul.f32 %v2582, 0.5
    %v2599 = vmul.f32 %v2583, 0.5
    %v2600 = vmul.f32 %v2584, 0.5
    %v2601 = vmul.f32 %v2585, 0.5
    %v2602 = vmul.f32 %v2586, 0.5
    %v2603 = vmul.f32 %v2587, 0.5
    %v2604 = vmul.f32 %v2588, 0.5
    %v2605 = vmul.f32 %v2589, 0.5
    %v2606 = vmul.f32 %v2590, 0.5
    %v2607 = vmul.f32 %v2591, 0.5
    %v2608 = vmul.f32 %v2592, 0.5
    %v2609 = vmul.f32 %v2593, 0.5
    %v2610 = vmul.f32 %v2594, 0.5
    %v2611 = vmul.f32 %v2595, 0.5
    %v2612 = vadd.f32 %v2596, 0.5
    %v2613 = vadd.f32 %v2597, 0.5
    %v2614 = vadd.f32 %v2598, 0.5
    %v2615 = vadd.f32 %v2599, 0.5
    %v2616 = vadd.f32 %v2600, 0.5
    %v2617 = vadd.f32 %v2601, 0.5
    %v2618 = vadd.f32 %v2602, 0.5
    %v2619 = vadd.f32 %v2603, 0.5
    %v2620 = vadd.f32 %v2604, 0.5
    %v2621 = vadd.f32 %v2605, 0.5
    %v2622 = vadd.f32 %v2606, 0.5
    %v2623 = vadd.f32 %v2607, 0.5
    %v2624 = vadd.f32 %v2608, 0.5
    %v2625 = vadd.f32 %v2609, 0.5
    %v2626 = vadd.f32 %v2610, 0.5
    %v2627 = vadd.f32 %v2611, 0.5
    %v2628 = vmul.f32 %v2548, %v2612
    %v2629 = vmul.f32 %v2549, %v2613
    %v2630 = vmul.f32 %v2550, %v2614
    %v2631 = vmul.f32 %v2551, %v2615
    %v2632 = vmul.f32 %v2552, %v2616
    %v2633 = vmul.f32 %v2553, %v2617
    %v2634 = vmul.f32 %v2554, %v2618
    %v2635 = vmul.f32 %v2555, %v2619
    %v2636 = vmul.f32 %v2556, %v2620
    %v2637 = vmul.f32 %v2557, %v2621
    %v2638 = vmul.f32 %v2558, %v2622
    %v2639 = vmul.f32 %v2559, %v2623
    %v2640 = vmul.f32 %v2560, %v2624
    %v2641 = vmul.f32 %v2561, %v2625
    %v2642 = vmul.f32 %v2562, %v2626
    %v2643 = vmul.f32 %v2563, %v2627
    %2644 = vrot.lane.b32.xlu0 %v2628, 1
    %v2645 = vpop.permute.xlu0 %2644
    %2646 = vrot.lane.b32.xlu0 %v2629, 1
    %v2647 = vpop.permute.xlu0 %2646
    %2648 = vrot.lane.b32.xlu0 %v2630, 1
    %v2649 = vpop.permute.xlu0 %2648
    %2650 = vrot.lane.b32.xlu0 %v2631, 1
    %v2651 = vpop.permute.xlu0 %2650
    %2652 = vrot.lane.b32.xlu0 %v2632, 1
    %v2653 = vpop.permute.xlu0 %2652
    %2654 = vrot.lane.b32.xlu0 %v2633, 1
    %v2655 = vpop.permute.xlu0 %2654
    %2656 = vrot.lane.b32.xlu0 %v2634, 1
    %v2657 = vpop.permute.xlu0 %2656
    %2658 = vrot.lane.b32.xlu0 %v2635, 1
    %v2659 = vpop.permute.xlu0 %2658
    %2660 = vrot.lane.b32.xlu0 %v2636, 1
    %v2661 = vpop.permute.xlu0 %2660
    %2662 = vrot.lane.b32.xlu0 %v2637, 1
    %v2663 = vpop.permute.xlu0 %2662
    %2664 = vrot.lane.b32.xlu0 %v2638, 1
    %v2665 = vpop.permute.xlu0 %2664
    %2666 = vrot.lane.b32.xlu0 %v2639, 1
    %v2667 = vpop.permute.xlu0 %2666
    %2668 = vrot.lane.b32.xlu0 %v2640, 1
    %v2669 = vpop.permute.xlu0 %2668
    %2670 = vrot.lane.b32.xlu0 %v2641, 1
    %v2671 = vpop.permute.xlu0 %2670
    %2672 = vrot.lane.b32.xlu0 %v2642, 1
    %v2673 = vpop.permute.xlu0 %2672
    %2674 = vrot.lane.b32.xlu0 %v2643, 1
    %v2675 = vpop.permute.xlu0 %2674
    %v2676 = vmul.f32 %v2645, %v940
    %v2677 = vmul.f32 %v2647, %v940
    %v2678 = vmul.f32 %v2649, %v940
    %v2679 = vmul.f32 %v2651, %v940
    %v2680 = vmul.f32 %v2653, %v940
    %v2681 = vmul.f32 %v2655, %v940
    %v2682 = vmul.f32 %v2657, %v940
    %v2683 = vmul.f32 %v2659, %v940
    %v2684 = vmul.f32 %v2661, %v940
    %v2685 = vmul.f32 %v2663, %v940
    %v2686 = vmul.f32 %v2665, %v940
    %v2687 = vmul.f32 %v2667, %v940
    %v2688 = vmul.f32 %v2669, %v940
    %v2689 = vmul.f32 %v2671, %v940
    %v2690 = vmul.f32 %v2673, %v940
    %v2691 = vmul.f32 %v2675, %v940
    %v2692 = vpack.c.bf16 %v2677, %v2676
    %v2693 = vpack.c.bf16 %v2679, %v2678
    %v2694 = vpack.c.bf16 %v2681, %v2680
    %v2695 = vpack.c.bf16 %v2683, %v2682
    %v2696 = vpack.c.bf16 %v2685, %v2684
    %v2697 = vpack.c.bf16 %v2687, %v2686
    %v2698 = vpack.c.bf16 %v2689, %v2688
    %v2699 = vpack.c.bf16 %v2691, %v2690
    %2700 = vrot.lane.b32.xlu0 %v2628, 127
    %v2701 = vpop.permute.xlu0 %2700
    %2702 = vrot.lane.b32.xlu0 %v2629, 127
    %v2703 = vpop.permute.xlu0 %2702
    %2704 = vrot.lane.b32.xlu0 %v2630, 127
    %v2705 = vpop.permute.xlu0 %2704
    %2706 = vrot.lane.b32.xlu0 %v2631, 127
    %v2707 = vpop.permute.xlu0 %2706
    %2708 = vrot.lane.b32.xlu0 %v2632, 127
    %v2709 = vpop.permute.xlu0 %2708
    %2710 = vrot.lane.b32.xlu0 %v2633, 127
    %v2711 = vpop.permute.xlu0 %2710
    %2712 = vrot.lane.b32.xlu0 %v2634, 127
    %v2713 = vpop.permute.xlu0 %2712
    %2714 = vrot.lane.b32.xlu0 %v2635, 127
    %v2715 = vpop.permute.xlu0 %2714
    %2716 = vrot.lane.b32.xlu0 %v2636, 127
    %v2717 = vpop.permute.xlu0 %2716
    %2718 = vrot.lane.b32.xlu0 %v2637, 127
    %v2719 = vpop.permute.xlu0 %2718
    %2720 = vrot.lane.b32.xlu0 %v2638, 127
    %v2721 = vpop.permute.xlu0 %2720
    %2722 = vrot.lane.b32.xlu0 %v2639, 127
    %v2723 = vpop.permute.xlu0 %2722
    %2724 = vrot.lane.b32.xlu0 %v2640, 127
    %v2725 = vpop.permute.xlu0 %2724
    %2726 = vrot.lane.b32.xlu0 %v2641, 127
    %v2727 = vpop.permute.xlu0 %2726
    %2728 = vrot.lane.b32.xlu0 %v2642, 127
    %v2729 = vpop.permute.xlu0 %2728
    %2730 = vrot.lane.b32.xlu0 %v2643, 127
    %v2731 = vpop.permute.xlu0 %2730
    %v2732 = vmul.f32 %v2701, %v974
    %v2733 = vmul.f32 %v2703, %v974
    %v2734 = vmul.f32 %v2705, %v974
    %v2735 = vmul.f32 %v2707, %v974
    %v2736 = vmul.f32 %v2709, %v974
    %v2737 = vmul.f32 %v2711, %v974
    %v2738 = vmul.f32 %v2713, %v974
    %v2739 = vmul.f32 %v2715, %v974
    %v2740 = vmul.f32 %v2717, %v974
    %v2741 = vmul.f32 %v2719, %v974
    %v2742 = vmul.f32 %v2721, %v974
    %v2743 = vmul.f32 %v2723, %v974
    %v2744 = vmul.f32 %v2725, %v974
    %v2745 = vmul.f32 %v2727, %v974
    %v2746 = vmul.f32 %v2729, %v974
    %v2747 = vmul.f32 %v2731, %v974
    %v2748 = vpack.c.bf16 %v2733, %v2732
    %v2749 = vpack.c.bf16 %v2735, %v2734
    %v2750 = vpack.c.bf16 %v2737, %v2736
    %v2751 = vpack.c.bf16 %v2739, %v2738
    %v2752 = vpack.c.bf16 %v2741, %v2740
    %v2753 = vpack.c.bf16 %v2743, %v2742
    %v2754 = vpack.c.bf16 %v2745, %v2744
    %v2755 = vpack.c.bf16 %v2747, %v2746
    %v2756 = vpack.c.bf16 %v2629, %v2628
    %v2757 = vpack.c.bf16 %v2631, %v2630
    %v2758 = vpack.c.bf16 %v2633, %v2632
    %v2759 = vpack.c.bf16 %v2635, %v2634
    %v2760 = vpack.c.bf16 %v2637, %v2636
    %v2761 = vpack.c.bf16 %v2639, %v2638
    %v2762 = vpack.c.bf16 %v2641, %v2640
    %v2763 = vpack.c.bf16 %v2643, %v2642
    %v2764 = vld [vmem:[%s6] sm:$0xff]
    %v2765 = vld [vmem:[%s6 + $0x8] sm:$0xff]
    %v2766 = vld [vmem:[%s6 + $0x10] sm:$0xff]
    %v2767 = vld [vmem:[%s6 + $0x18] sm:$0xff]
    %v2768 = vld [vmem:[%s6 + $0x20] sm:$0xff]
    %v2769 = vld [vmem:[%s6 + $0x28] sm:$0xff]
    %v2770 = vld [vmem:[%s6 + $0x30] sm:$0xff]
    %v2771 = vld [vmem:[%s6 + $0x38] sm:$0xff]
    %v2772 = vld [vmem:[%s6 + $0x40] sm:$0xff]
    %v2773 = vld [vmem:[%s6 + $0x48] sm:$0xff]
    %v2774 = vld [vmem:[%s6 + $0x50] sm:$0xff]
    %v2775 = vld [vmem:[%s6 + $0x58] sm:$0xff]
    %v2776 = vld [vmem:[%s6 + $0x60] sm:$0xff]
    %v2777 = vld [vmem:[%s6 + $0x68] sm:$0xff]
    %v2778 = vld [vmem:[%s6 + $0x70] sm:$0xff]
    %v2779 = vld [vmem:[%s6 + $0x78] sm:$0xff]
    %v2780 = vld [vmem:[%s6 + $0x80] sm:$0xff]
    %v2781 = vld [vmem:[%s6 + $0x88] sm:$0xff]
    %v2782 = vld [vmem:[%s6 + $0x90] sm:$0xff]
    %v2783 = vld [vmem:[%s6 + $0x98] sm:$0xff]
    %v2784 = vld [vmem:[%s6 + $0xa0] sm:$0xff]
    %v2785 = vld [vmem:[%s6 + $0xa8] sm:$0xff]
    %v2786 = vld [vmem:[%s6 + $0xb0] sm:$0xff]
    %v2787 = vld [vmem:[%s6 + $0xb8] sm:$0xff]
    %v2788 = vld [vmem:[%s6 + $0xc0] sm:$0xff]
    %v2789 = vld [vmem:[%s6 + $0xc8] sm:$0xff]
    %v2790 = vld [vmem:[%s6 + $0xd0] sm:$0xff]
    %v2791 = vld [vmem:[%s6 + $0xd8] sm:$0xff]
    %v2792 = vld [vmem:[%s6 + $0xe0] sm:$0xff]
    %v2793 = vld [vmem:[%s6 + $0xe8] sm:$0xff]
    %v2794 = vld [vmem:[%s6 + $0xf0] sm:$0xff]
    %v2795 = vld [vmem:[%s6 + $0xf8] sm:$0xff]
    %v2796 = vld [vmem:[%s7] sm:$0xff]
    %v2797 = vld [vmem:[%s7 + $0x8] sm:$0xff]
    %v2798 = vld [vmem:[%s7 + $0x10] sm:$0xff]
    %v2799 = vld [vmem:[%s7 + $0x18] sm:$0xff]
    %v2800 = vld [vmem:[%s7 + $0x20] sm:$0xff]
    %v2801 = vld [vmem:[%s7 + $0x28] sm:$0xff]
    %v2802 = vld [vmem:[%s7 + $0x30] sm:$0xff]
    %v2803 = vld [vmem:[%s7 + $0x38] sm:$0xff]
    %v2804 = vld [vmem:[%s7 + $0x40] sm:$0xff]
    %v2805 = vld [vmem:[%s7 + $0x48] sm:$0xff]
    %v2806 = vld [vmem:[%s7 + $0x50] sm:$0xff]
    %v2807 = vld [vmem:[%s7 + $0x58] sm:$0xff]
    %v2808 = vld [vmem:[%s7 + $0x60] sm:$0xff]
    %v2809 = vld [vmem:[%s7 + $0x68] sm:$0xff]
    %v2810 = vld [vmem:[%s7 + $0x70] sm:$0xff]
    %v2811 = vld [vmem:[%s7 + $0x78] sm:$0xff]
    %2813 = vset.pattern.permute.xlu0 0
    %2814 = vperm.xlu0 %2813, %v2796
    %v2815 = vpop.permute.xlu0 %2814
    %2818 = vset.pattern.permute.xlu0 0
    %2819 = vperm.xlu0 %2818, %v2797
    %v2820 = vpop.permute.xlu0 %2819
    %2823 = vset.pattern.permute.xlu0 0
    %2824 = vperm.xlu0 %2823, %v2798
    %v2825 = vpop.permute.xlu0 %2824
    %2828 = vset.pattern.permute.xlu0 0
    %2829 = vperm.xlu0 %2828, %v2799
    %v2830 = vpop.permute.xlu0 %2829
    %2833 = vset.pattern.permute.xlu0 0
    %2834 = vperm.xlu0 %2833, %v2800
    %v2835 = vpop.permute.xlu0 %2834
    %2838 = vset.pattern.permute.xlu0 0
    %2839 = vperm.xlu0 %2838, %v2801
    %v2840 = vpop.permute.xlu0 %2839
    %2843 = vset.pattern.permute.xlu0 0
    %2844 = vperm.xlu0 %2843, %v2802
    %v2845 = vpop.permute.xlu0 %2844
    %2848 = vset.pattern.permute.xlu0 0
    %2849 = vperm.xlu0 %2848, %v2803
    %v2850 = vpop.permute.xlu0 %2849
    %2853 = vset.pattern.permute.xlu0 0
    %2854 = vperm.xlu0 %2853, %v2804
    %v2855 = vpop.permute.xlu0 %2854
    %2858 = vset.pattern.permute.xlu0 0
    %2859 = vperm.xlu0 %2858, %v2805
    %v2860 = vpop.permute.xlu0 %2859
    %2863 = vset.pattern.permute.xlu0 0
    %2864 = vperm.xlu0 %2863, %v2806
    %v2865 = vpop.permute.xlu0 %2864
    %2868 = vset.pattern.permute.xlu0 0
    %2869 = vperm.xlu0 %2868, %v2807
    %v2870 = vpop.permute.xlu0 %2869
    %2873 = vset.pattern.permute.xlu0 0
    %2874 = vperm.xlu0 %2873, %v2808
    %v2875 = vpop.permute.xlu0 %2874
    %2878 = vset.pattern.permute.xlu0 0
    %2879 = vperm.xlu0 %2878, %v2809
    %v2880 = vpop.permute.xlu0 %2879
    %2883 = vset.pattern.permute.xlu0 0
    %2884 = vperm.xlu0 %2883, %v2810
    %v2885 = vpop.permute.xlu0 %2884
    %2888 = vset.pattern.permute.xlu0 0
    %2889 = vperm.xlu0 %2888, %v2811
    %v2890 = vpop.permute.xlu0 %2889
    %v2924 = vunpack.c.l.b16 %v2764
    %v2925 = vunpack.c.h.b16 %v2764
    %v2926 = vunpack.c.l.b16 %v2765
    %v2927 = vunpack.c.h.b16 %v2765
    %v2928 = vunpack.c.l.b16 %v2766
    %v2929 = vunpack.c.h.b16 %v2766
    %v2930 = vunpack.c.l.b16 %v2767
    %v2931 = vunpack.c.h.b16 %v2767
    %v2932 = vunpack.c.l.b16 %v2768
    %v2933 = vunpack.c.h.b16 %v2768
    %v2934 = vunpack.c.l.b16 %v2769
    %v2935 = vunpack.c.h.b16 %v2769
    %v2936 = vunpack.c.l.b16 %v2770
    %v2937 = vunpack.c.h.b16 %v2770
    %v2938 = vunpack.c.l.b16 %v2771
    %v2939 = vunpack.c.h.b16 %v2771
    %v2940 = vunpack.c.l.b16 %v2772
    %v2941 = vunpack.c.h.b16 %v2772
    %v2942 = vunpack.c.l.b16 %v2773
    %v2943 = vunpack.c.h.b16 %v2773
    %v2944 = vunpack.c.l.b16 %v2774
    %v2945 = vunpack.c.h.b16 %v2774
    %v2946 = vunpack.c.l.b16 %v2775
    %v2947 = vunpack.c.h.b16 %v2775
    %v2948 = vunpack.c.l.b16 %v2776
    %v2949 = vunpack.c.h.b16 %v2776
    %v2950 = vunpack.c.l.b16 %v2777
    %v2951 = vunpack.c.h.b16 %v2777
    %v2952 = vunpack.c.l.b16 %v2778
    %v2953 = vunpack.c.h.b16 %v2778
    %v2954 = vunpack.c.l.b16 %v2779
    %v2955 = vunpack.c.h.b16 %v2779
    %v2956 = vunpack.c.l.b16 %v2780
    %v2957 = vunpack.c.h.b16 %v2780
    %v2958 = vunpack.c.l.b16 %v2781
    %v2959 = vunpack.c.h.b16 %v2781
    %v2960 = vunpack.c.l.b16 %v2782
    %v2961 = vunpack.c.h.b16 %v2782
    %v2962 = vunpack.c.l.b16 %v2783
    %v2963 = vunpack.c.h.b16 %v2783
    %v2964 = vunpack.c.l.b16 %v2784
    %v2965 = vunpack.c.h.b16 %v2784
    %v2966 = vunpack.c.l.b16 %v2785
    %v2967 = vunpack.c.h.b16 %v2785
    %v2968 = vunpack.c.l.b16 %v2786
    %v2969 = vunpack.c.h.b16 %v2786
    %v2970 = vunpack.c.l.b16 %v2787
    %v2971 = vunpack.c.h.b16 %v2787
    %v2972 = vunpack.c.l.b16 %v2788
    %v2973 = vunpack.c.h.b16 %v2788
    %v2974 = vunpack.c.l.b16 %v2789
    %v2975 = vunpack.c.h.b16 %v2789
    %v2976 = vunpack.c.l.b16 %v2790
    %v2977 = vunpack.c.h.b16 %v2790
    %v2978 = vunpack.c.l.b16 %v2791
    %v2979 = vunpack.c.h.b16 %v2791
    %v2980 = vunpack.c.l.b16 %v2792
    %v2981 = vunpack.c.h.b16 %v2792
    %v2982 = vunpack.c.l.b16 %v2793
    %v2983 = vunpack.c.h.b16 %v2793
    %v2984 = vunpack.c.l.b16 %v2794
    %v2985 = vunpack.c.h.b16 %v2794
    %v2986 = vunpack.c.l.b16 %v2795
    %v2987 = vunpack.c.h.b16 %v2795
    %v2988 = vpack.c.b16 %v2928, %v2924
    %v2989 = vpack.c.b16 %v2929, %v2925
    %v2990 = vpack.c.b16 %v2930, %v2926
    %v2991 = vpack.c.b16 %v2931, %v2927
    %v2992 = vpack.c.b16 %v2936, %v2932
    %v2993 = vpack.c.b16 %v2937, %v2933
    %v2994 = vpack.c.b16 %v2938, %v2934
    %v2995 = vpack.c.b16 %v2939, %v2935
    %v2996 = vpack.c.b16 %v2944, %v2940
    %v2997 = vpack.c.b16 %v2945, %v2941
    %v2998 = vpack.c.b16 %v2946, %v2942
    %v2999 = vpack.c.b16 %v2947, %v2943
    %v3000 = vpack.c.b16 %v2952, %v2948
    %v3001 = vpack.c.b16 %v2953, %v2949
    %v3002 = vpack.c.b16 %v2954, %v2950
    %v3003 = vpack.c.b16 %v2955, %v2951
    %v3004 = vpack.c.b16 %v2960, %v2956
    %v3005 = vpack.c.b16 %v2961, %v2957
    %v3006 = vpack.c.b16 %v2962, %v2958
    %v3007 = vpack.c.b16 %v2963, %v2959
    %v3008 = vpack.c.b16 %v2968, %v2964
    %v3009 = vpack.c.b16 %v2969, %v2965
    %v3010 = vpack.c.b16 %v2970, %v2966
    %v3011 = vpack.c.b16 %v2971, %v2967
    %v3012 = vpack.c.b16 %v2976, %v2972
    %v3013 = vpack.c.b16 %v2977, %v2973
    %v3014 = vpack.c.b16 %v2978, %v2974
    %v3015 = vpack.c.b16 %v2979, %v2975
    %v3016 = vpack.c.b16 %v2984, %v2980
    %v3017 = vpack.c.b16 %v2985, %v2981
    %v3018 = vpack.c.b16 %v2986, %v2982
    %v3019 = vpack.c.b16 %v2987, %v2983
    %v3045 = vsel %vm321, %v2991, 0
    %v3048 = vsel %vm321, %v2995, 0
    %v3051 = vsel %vm321, %v2999, 0
    %v3054 = vsel %vm321, %v3003, 0
    %v3057 = vsel %vm321, %v3007, 0
    %v3060 = vsel %vm321, %v3011, 0
    %v3063 = vsel %vm321, %v3015, 0
    %v3066 = vsel %vm321, %v3019, 0
    %3068 = vmatprep.subr.bf16.mxu0 0
    %3069 = vmatpush1.bf16.msra.mxu0 %v2692
    %3070 = vmatprep.subr.bf16.mxu0 0
    %3071 = vmatpush1.bf16.msra.mxu0 %v2693
    %3072 = vmatprep.subr.bf16.mxu0 0
    %3073 = vmatpush1.bf16.msra.mxu0 %v2694
    %3074 = vmatprep.subr.bf16.mxu0 0
    %3075 = vmatpush1.bf16.msra.mxu0 %v2695
    %3076 = vmatprep.subr.bf16.mxu0 0
    %3077 = vmatpush1.bf16.msra.mxu0 %v2696
    %3078 = vmatprep.subr.bf16.mxu0 0
    %3079 = vmatpush1.bf16.msra.mxu0 %v2697
    %3080 = vmatprep.subr.bf16.mxu0 0
    %3081 = vmatpush1.bf16.msra.mxu0 %v2698
    %3082 = vmatprep.subr.bf16.mxu0 0
    %3083 = vmatpush1.bf16.msra.mxu0 %v2699
    %3084 = vmatprep.subr.bf16.mxu0 0
    %3085 = vmatpush1.bf16.msra.mxu0 %v2756
    %3086 = vmatprep.subr.bf16.mxu0 0
    %3087 = vmatpush1.bf16.msra.mxu0 %v2757
    %3088 = vmatprep.subr.bf16.mxu0 0
    %3089 = vmatpush1.bf16.msra.mxu0 %v2758
    %3090 = vmatprep.subr.bf16.mxu0 0
    %3091 = vmatpush1.bf16.msra.mxu0 %v2759
    %3092 = vmatprep.subr.bf16.mxu0 0
    %3093 = vmatpush1.bf16.msra.mxu0 %v2760
    %3094 = vmatprep.subr.bf16.mxu0 0
    %3095 = vmatpush1.bf16.msra.mxu0 %v2761
    %3096 = vmatprep.subr.bf16.mxu0 0
    %3097 = vmatpush1.bf16.msra.mxu0 %v2762
    %3098 = vmatprep.subr.bf16.mxu0 0
    %3099 = vmatpush1.bf16.msra.mxu0 %v2763
    %3100 = vmatprep.mubr.bf16.mxu0 %v2989
    %3101 = vmatmul.mubr.bf16.gmra.mrb[0].mxu0 %v2988
    %v3102 = vpop.f32.mrb[0].mxu0
    %v3103 = vadd.f32 %v2815, %v3102
    %v3104 = vpop.f32.mrb[0].mxu0
    %v3105 = vpop.f32.mrb[0].mxu0
    %v3106 = vadd.f32 %v2820, %v3105
    %v3107 = vpop.f32.mrb[0].mxu0
    %3108 = vmatprep.mubr.bf16.mxu0 %v2993
    %3109 = vmatmul.mubr.bf16.gmra.mrb[0].mxu0 %v2992
    %v3110 = vpop.f32.mrb[0].mxu0
    %v3111 = vadd.f32 %v2825, %v3110
    %v3112 = vpop.f32.mrb[0].mxu0
    %v3113 = vpop.f32.mrb[0].mxu0
    %v3114 = vadd.f32 %v2830, %v3113
    %v3115 = vpop.f32.mrb[0].mxu0
    %3116 = vmatprep.mubr.bf16.mxu0 %v2997
    %3117 = vmatmul.mubr.bf16.gmra.mrb[0].mxu0 %v2996
    %v3118 = vpop.f32.mrb[0].mxu0
    %v3119 = vadd.f32 %v2835, %v3118
    %v3120 = vpop.f32.mrb[0].mxu0
    %v3121 = vpop.f32.mrb[0].mxu0
    %v3122 = vadd.f32 %v2840, %v3121
    %v3123 = vpop.f32.mrb[0].mxu0
    %3124 = vmatprep.mubr.bf16.mxu0 %v3001
    %3125 = vmatmul.mubr.bf16.gmra.mrb[0].mxu0 %v3000
    %v3126 = vpop.f32.mrb[0].mxu0
    %v3127 = vadd.f32 %v2845, %v3126
    %v3128 = vpop.f32.mrb[0].mxu0
    %v3129 = vpop.f32.mrb[0].mxu0
    %v3130 = vadd.f32 %v2850, %v3129
    %v3131 = vpop.f32.mrb[0].mxu0
    %3132 = vmatprep.mubr.bf16.mxu0 %v3005
    %3133 = vmatmul.mubr.bf16.gmra.mrb[0].mxu0 %v3004
    %v3134 = vpop.f32.mrb[0].mxu0
    %v3135 = vadd.f32 %v2855, %v3134
    %v3136 = vpop.f32.mrb[0].mxu0
    %v3137 = vpop.f32.mrb[0].mxu0
    %v3138 = vadd.f32 %v2860, %v3137
    %v3139 = vpop.f32.mrb[0].mxu0
    %3140 = vmatprep.mubr.bf16.mxu0 %v3009
    %3141 = vmatmul.mubr.bf16.gmra.mrb[0].mxu0 %v3008
    %v3142 = vpop.f32.mrb[0].mxu0
    %v3143 = vadd.f32 %v2865, %v3142
    %v3144 = vpop.f32.mrb[0].mxu0
    %v3145 = vpop.f32.mrb[0].mxu0
    %v3146 = vadd.f32 %v2870, %v3145
    %v3147 = vpop.f32.mrb[0].mxu0
    %3148 = vmatprep.mubr.bf16.mxu0 %v3013
    %3149 = vmatmul.mubr.bf16.gmra.mrb[0].mxu0 %v3012
    %v3150 = vpop.f32.mrb[0].mxu0
    %v3151 = vadd.f32 %v2875, %v3150
    %v3152 = vpop.f32.mrb[0].mxu0
    %v3153 = vpop.f32.mrb[0].mxu0
    %v3154 = vadd.f32 %v2880, %v3153
    %v3155 = vpop.f32.mrb[0].mxu0
    %3156 = vmatprep.mubr.bf16.mxu0 %v3017
    %3157 = vmatmul.mubr.bf16.gmra.mrb[0].mxu0 %v3016
    %v3158 = vpop.f32.mrb[0].mxu0
    %v3159 = vadd.f32 %v2885, %v3158
    %v3160 = vpop.f32.mrb[0].mxu0
    %v3161 = vpop.f32.mrb[0].mxu0
    %v3162 = vadd.f32 %v2890, %v3161
    %v3163 = vpop.f32.mrb[0].mxu0
    %3164 = vdwg.mxu0
    %3165 = vmatprep.subr.bf16.mxu0 0
    %3166 = vmatpush1.bf16.msra.mxu0 %v2748
    %3167 = vmatprep.subr.bf16.mxu0 0
    %3168 = vmatpush1.bf16.msra.mxu0 %v2749
    %3169 = vmatprep.subr.bf16.mxu0 0
    %3170 = vmatpush1.bf16.msra.mxu0 %v2750
    %3171 = vmatprep.subr.bf16.mxu0 0
    %3172 = vmatpush1.bf16.msra.mxu0 %v2751
    %3173 = vmatprep.subr.bf16.mxu0 0
    %3174 = vmatpush1.bf16.msra.mxu0 %v2752
    %3175 = vmatprep.subr.bf16.mxu0 0
    %3176 = vmatpush1.bf16.msra.mxu0 %v2753
    %3177 = vmatprep.subr.bf16.mxu0 0
    %3178 = vmatpush1.bf16.msra.mxu0 %v2754
    %3179 = vmatprep.subr.bf16.mxu0 0
    %3180 = vmatpush1.bf16.msra.mxu0 %v2755
    %3181 = vmatprep.subr.bf16.mxu0 0
    %3182 = vmatpush1.bf16.msra.mxu0 %v103
    %3183 = vmatprep.subr.bf16.mxu0 0
    %3184 = vmatpush1.bf16.msra.mxu0 %v104
    %3185 = vmatprep.subr.bf16.mxu0 0
    %3186 = vmatpush1.bf16.msra.mxu0 %v105
    %3187 = vmatprep.subr.bf16.mxu0 0
    %3188 = vmatpush1.bf16.msra.mxu0 %v106
    %3189 = vmatprep.subr.bf16.mxu0 0
    %3190 = vmatpush1.bf16.msra.mxu0 0
    %3191 = vmatprep.subr.bf16.mxu0 0
    %3192 = vmatpush1.bf16.msra.mxu0 0
    %3193 = vmatprep.subr.bf16.mxu0 0
    %3194 = vmatpush1.bf16.msra.mxu0 0
    %3195 = vmatprep.subr.bf16.mxu0 0
    %3196 = vmatpush1.bf16.msra.mxu0 0
    %3197 = vmatprep.mubr.bf16.mxu0 %v3045
    %3198 = vmatmul.mubr.bf16.gmra.mrb[0].mxu0 %v2990
    %v3199 = vpop.f32.mrb[0].mxu0
    %v3200 = vadd.f32 %v3103, %v3199
    %v3201 = vpop.f32.mrb[0].mxu0
    %v3202 = vpop.f32.mrb[0].mxu0
    %v3203 = vadd.f32 %v3106, %v3202
    %v3204 = vpop.f32.mrb[0].mxu0
    %3205 = vmatprep.mubr.bf16.mxu0 %v3048
    %3206 = vmatmul.mubr.bf16.gmra.mrb[0].mxu0 %v2994
    %v3207 = vpop.f32.mrb[0].mxu0
    %v3208 = vadd.f32 %v3111, %v3207
    %v3209 = vpop.f32.mrb[0].mxu0
    %v3210 = vpop.f32.mrb[0].mxu0
    %v3211 = vadd.f32 %v3114, %v3210
    %v3212 = vpop.f32.mrb[0].mxu0
    %3213 = vmatprep.mubr.bf16.mxu0 %v3051
    %3214 = vmatmul.mubr.bf16.gmra.mrb[0].mxu0 %v2998
    %v3215 = vpop.f32.mrb[0].mxu0
    %v3216 = vadd.f32 %v3119, %v3215
    %v3217 = vpop.f32.mrb[0].mxu0
    %v3218 = vpop.f32.mrb[0].mxu0
    %v3219 = vadd.f32 %v3122, %v3218
    %v3220 = vpop.f32.mrb[0].mxu0
    %3221 = vmatprep.mubr.bf16.mxu0 %v3054
    %3222 = vmatmul.mubr.bf16.gmra.mrb[0].mxu0 %v3002
    %v3223 = vpop.f32.mrb[0].mxu0
    %v3224 = vadd.f32 %v3127, %v3223
    %v3225 = vpop.f32.mrb[0].mxu0
    %v3226 = vpop.f32.mrb[0].mxu0
    %v3227 = vadd.f32 %v3130, %v3226
    %v3228 = vpop.f32.mrb[0].mxu0
    %3229 = vmatprep.mubr.bf16.mxu0 %v3057
    %3230 = vmatmul.mubr.bf16.gmra.mrb[0].mxu0 %v3006
    %v3231 = vpop.f32.mrb[0].mxu0
    %v3232 = vadd.f32 %v3135, %v3231
    %v3233 = vpop.f32.mrb[0].mxu0
    %v3234 = vpop.f32.mrb[0].mxu0
    %v3235 = vadd.f32 %v3138, %v3234
    %v3236 = vpop.f32.mrb[0].mxu0
    %3237 = vmatprep.mubr.bf16.mxu0 %v3060
    %3238 = vmatmul.mubr.bf16.gmra.mrb[0].mxu0 %v3010
    %v3239 = vpop.f32.mrb[0].mxu0
    %v3240 = vadd.f32 %v3143, %v3239
    %v3241 = vpop.f32.mrb[0].mxu0
    %v3242 = vpop.f32.mrb[0].mxu0
    %v3243 = vadd.f32 %v3146, %v3242
    %v3244 = vpop.f32.mrb[0].mxu0
    %3245 = vmatprep.mubr.bf16.mxu0 %v3063
    %3246 = vmatmul.mubr.bf16.gmra.mrb[0].mxu0 %v3014
    %v3247 = vpop.f32.mrb[0].mxu0
    %v3248 = vadd.f32 %v3151, %v3247
    %v3249 = vpop.f32.mrb[0].mxu0
    %v3250 = vpop.f32.mrb[0].mxu0
    %v3251 = vadd.f32 %v3154, %v3250
    %v3252 = vpop.f32.mrb[0].mxu0
    %3253 = vmatprep.mubr.bf16.mxu0 %v3066
    %3254 = vmatmul.mubr.bf16.gmra.mrb[0].mxu0 %v3018
    %v3255 = vpop.f32.mrb[0].mxu0
    %v3256 = vadd.f32 %v3159, %v3255
    %v3257 = vpop.f32.mrb[0].mxu0
    %v3258 = vpop.f32.mrb[0].mxu0
    %v3259 = vadd.f32 %v3162, %v3258
    %v3260 = vpop.f32.mrb[0].mxu0
    %3261 = vdwg.mxu0
    %3262 = vst [vmem:[#allocation2] sm:$0xff] %v3200
    %3263 = vst [vmem:[#allocation2 + $0x8] sm:$0xff] %v3203
    %3264 = vst [vmem:[#allocation2 + $0x10] sm:$0xff] %v3208
    %3265 = vst [vmem:[#allocation2 + $0x18] sm:$0xff] %v3211
    %3266 = vst [vmem:[#allocation2 + $0x20] sm:$0xff] %v3216
    %3267 = vst [vmem:[#allocation2 + $0x28] sm:$0xff] %v3219
    %3268 = vst [vmem:[#allocation2 + $0x30] sm:$0xff] %v3224
    %3269 = vst [vmem:[#allocation2 + $0x38] sm:$0xff] %v3227
    %3270 = vst [vmem:[#allocation2 + $0x40] sm:$0xff] %v3232
    %3271 = vst [vmem:[#allocation2 + $0x48] sm:$0xff] %v3235
    %3272 = vst [vmem:[#allocation2 + $0x50] sm:$0xff] %v3240
    %3273 = vst [vmem:[#allocation2 + $0x58] sm:$0xff] %v3243
    %3274 = vst [vmem:[#allocation2 + $0x60] sm:$0xff] %v3248
    %3275 = vst [vmem:[#allocation2 + $0x68] sm:$0xff] %v3251
    %3276 = vst [vmem:[#allocation2 + $0x70] sm:$0xff] %v3256
    %3277 = vst [vmem:[#allocation2 + $0x78] sm:$0xff] %v3259
    // Predicated region
    $region62: #{tpu_custom_call.1} parent=1 // pred_check
      _
    $region63: #{tpu_custom_call.1} parent=1 // pred_check_branch
      %3279 = sbr.rel (0) target = $region65
    $region64: #{tpu_custom_call.1} parent=1 // pred_region
      %s3281 = ssub.s32 2048, 2048
      %3282 = vsyncadd [#allocation3], %s3281
      %s3283 = sshll.u32 [#allocation2], 4
      %s3284 = int_to_ptr.vmem [resolvable:$true] %s3283
      %3289 = dma.vmem_to_hbm [thread:$0]  %s3284, 2048, %s15, [#allocation3], 128, 128, 8
    $region65: #{tpu_custom_call.1} parent=1 // pred_fallthru
      _
    // Predicated region
    $region66: #{tpu_custom_call.1} parent=1 // pred_check
      _
    $region67: #{tpu_custom_call.1} parent=1 // pred_check_branch
      %3291 = sbr.rel (0) target = $region69
    $region68: #{tpu_custom_call.1} parent=1 // pred_region
      %3292 = dma.done [#allocation3], 2048
    $region69: #{tpu_custom_call.1} parent=1 // pred_fallthru
      _
    %3293 = vsyncpa [#allocation3], 1

</llo_original>
